<compile_context>
chip_gen: v7x
topology: tpu7x:2x2x1
jax: 0.10.0
libtpu: 0.0.40
codegen_flags: <defaults>
</compile_context>

<pallas_src>
import functools

import jax
import jax.numpy as jnp
from jax.experimental import pallas as pl
from jax.experimental.pallas import tpu as pltpu


def _encoder_layer_kernel(num_heads, head_dim, block_q, eps, approx_recip,
                          # inputs
                          x_ref, ln1_g, ln1_b, wq, bq, wkv, bkv, wo_r, bo,
                          ln2_g, ln2_b, w1, b1, w2, b2,
                          # outputs
                          out_ref,
                          # scratch (persist across the q-tile axis)
                          h_scr, kt_scr, v_scr):
    qt = pl.program_id(1)
    S = x_ref.shape[1]
    D = num_heads * head_dim
    cdt = h_scr.dtype   # matmul operand dtype (bf16 fast path / f32 exact path)

    # ---- once per batch element: LayerNorm1 + fused K/V projection ----------
    # Q is projected per q-tile below (each Q row is consumed by exactly one
    # tile), so no full-sequence Q scratch is needed and the serial qt==0
    # prologue stays small.  K is staged pre-transposed (head_dim, S): the
    # per-tile score matmul then feeds the MXU directly (no per-tile XLU
    # transpose) and the staging stores are lane-dense in S.
    @pl.when(qt == 0)
    def _stage_kv():
        x = x_ref[0].astype(jnp.float32)                               # (S, D)
        mu = jnp.mean(x, axis=-1, keepdims=True)
        var = jnp.mean(jnp.square(x - mu), axis=-1, keepdims=True)
        h = (x - mu) * jax.lax.rsqrt(var + eps) * ln1_g[...] + ln1_b[...]
        h_scr[...] = h.astype(cdt)
        kv = jnp.dot(h.astype(cdt), wkv[...],
                     preferred_element_type=jnp.float32) + bkv[...]    # (S, 2D)
        for hh in range(num_heads):
            c0 = hh * head_dim
            kt_scr[hh] = kv[:, c0:c0 + head_dim].T.astype(cdt)         # (hd, S)
            v_scr[hh] = kv[:, D + c0:D + c0 + head_dim].astype(cdt)    # (S, hd)

    # ---- per query-row tile --------------------------------------------------
    row0 = pl.multiple_of(qt * block_q, block_q)
    x_t = x_ref[0, pl.ds(row0, block_q), :].astype(jnp.float32)        # (TQ, D)
    h_t = h_scr[pl.ds(row0, block_q), :]                               # (TQ, D)

    # Full-width Q projection (softmax scale folded into wq/bq in the wrapper).
    q_full = (jnp.dot(h_t, wq[...], preferred_element_type=jnp.float32)
              + bq[...]).astype(cdt)                                   # (TQ, D)

    # Per-head attention.  Every matmul is rank-2 on the MXU; the head concat
    # before the out-projection is folded into wo_r (H, hd, D): each head's
    # contribution accumulates directly in the (TQ, D) f32 accumulator.
    attn = jnp.zeros((block_q, D), jnp.float32)
    for hh in range(num_heads):
        c0 = hh * head_dim
        s = jnp.dot(q_full[:, c0:c0 + head_dim], kt_scr[hh],
                    preferred_element_type=jnp.float32)                # (TQ, S)
        s = s - jnp.max(s, axis=-1, keepdims=True)                     # f32 softmax
        p = jnp.exp(s)
        # EUP approx reciprocal on the bf16 fast path (documented extra
        # rounding); exact reciprocal on the f32 path.
        p = p * pl.reciprocal(jnp.sum(p, axis=-1, keepdims=True),
                              approx=approx_recip)
        o_h = jnp.dot(p.astype(cdt), v_scr[hh],
                      preferred_element_type=jnp.float32)              # (TQ, hd)
        attn = attn + jnp.dot(o_h.astype(cdt), wo_r[hh],
                              preferred_element_type=jnp.float32)      # (TQ, D)
    attn = attn + bo[...]

    x1 = x_t + attn                                                    # residual 1

    # ---- LayerNorm 2 + MLP (tanh GELU) ---------------------------------------
    mu2 = jnp.mean(x1, axis=-1, keepdims=True)
    var2 = jnp.mean(jnp.square(x1 - mu2), axis=-1, keepdims=True)
    h2 = (x1 - mu2) * jax.lax.rsqrt(var2 + eps) * ln2_g[...] + ln2_b[...]

    f = jnp.dot(h2.astype(cdt), w1[...],
                preferred_element_type=jnp.float32) + b1[...]
    g = 0.5 * f * (1.0 + jnp.tanh(0.7978845608028654
                                  * (f + 0.044715 * (f * f * f))))
    m = jnp.dot(g.astype(cdt), w2[...],
                preferred_element_type=jnp.float32) + b2[...]

    out_ref[0] = (x1 + m).astype(out_ref.dtype)                        # residual 2


def _vmem_cap_bytes():
    """Per-generation scoped-VMEM cap: physical minus headroom, max 112 MiB."""
    try:
        phys = int(pltpu.get_tpu_info().vmem_capacity_bytes)
    except Exception:
        phys = 64 << 20        # conservative default (v7x has the smallest VMEM)
    return min(phys - (8 << 20), 112 << 20)


def siglip_encoder_layer(x, params, *, num_heads, eps=1e-6, block_q=None,
                         matmul_dtype=jnp.bfloat16):
    B, S, D = x.shape
    head_dim = D // num_heads
    assert num_heads * head_dim == D, "hidden_size must be divisible by num_heads"
    inter = params["w1"].shape[1]
    f32 = jnp.float32
    cap = _vmem_cap_bytes()

    if block_q is None:
        if S <= 256:
            block_q = S
        else:
            # Smaller q-tiles on v7x (64 MiB VMEM); 256 on v5e/v6e (128 MiB).
            block_q = 128 if cap <= (64 << 20) else 256
    # TODO(synk): pad S to a multiple of block_q and mask padded rows in
    # softmax/LayerNorm to support real SigLIP sequence lengths (196, 729, ...).
    assert S % block_q == 0, "seq_len must be divisible by block_q"
    sublane = 8 * 4 // jnp.dtype(matmul_dtype).itemsize   # 8 f32 / 16 bf16
    assert block_q == S or block_q % sublane == 0, \
        "block_q must be a multiple of the scratch dtype sublane tile"
    num_q_tiles = S // block_q

    # Fold the softmax scale into Q; fuse K/V into one projection; reshape Wo
    # head-major so the per-head out-projection needs no lane concat.
    scale = float(head_dim) ** -0.5
    wq = (params["wq"] * scale).astype(matmul_dtype)
    bq = (params["bq"] * scale).astype(f32)
    wkv = jnp.concatenate([params["wk"], params["wv"]], axis=1).astype(matmul_dtype)
    bkv = jnp.concatenate([params["bk"], params["bv"]], axis=1).astype(f32)
    wo_r = params["wo"].reshape(num_heads, head_dim, D).astype(matmul_dtype)

    args = [
        x,
        params["ln1_g"].astype(f32), params["ln1_b"].astype(f32),
        wq, bq, wkv, bkv, wo_r, params["bo"].astype(f32),
        params["ln2_g"].astype(f32), params["ln2_b"].astype(f32),
        params["w1"].astype(matmul_dtype), params["b1"].astype(f32),
        params["w2"].astype(matmul_dtype), params["b2"].astype(f32),
    ]
    weight_bytes = sum(int(a.size) * a.dtype.itemsize for a in args[1:])

    kernel = functools.partial(_encoder_layer_kernel, num_heads, head_dim,
                               block_q, eps, matmul_dtype != jnp.float32)

    # Advisory cost estimate (5 matmuls + attention, exp + tanh, one weight pass).
    flops = (2 * B * S * D * (4 * D + 2 * inter)
             + 4 * B * num_heads * S * S * head_dim)
    cost = pl.CostEstimate(
        flops=int(flops),
        transcendentals=int(B * num_heads * S * S + B * S * inter),
        bytes_accessed=int(2 * x.size * x.dtype.itemsize + weight_bytes))

    def build(single_buffer_weights):
        def const_spec(a):
            zeros = (0,) * a.ndim
            if single_buffer_weights:
                # Constant index_map -> never re-DMAed; one buffer halves the
                # resident-weight VMEM (~30 MB saved at so400m sizes).
                return pl.BlockSpec(a.shape, lambda b, t: zeros,
                                    pipeline_mode=pl.Buffered(1))
            return pl.BlockSpec(a.shape, lambda b, t: zeros)

        in_specs = [pl.BlockSpec((1, S, D), lambda b, t: (b, 0, 0))]
        in_specs += [const_spec(a) for a in args[1:]]

        # VMEM hint: resident weights + double-buffered x/out tiles + scratch +
        # f32 temporaries (staging spike vs per-tile live set), with margin.
        lane = lambda n: -(-n // 128) * 128
        sub = lambda n: -(-n // 8) * 8
        ws = jnp.dtype(matmul_dtype).itemsize
        io_bytes = 2 * (sub(S) + sub(block_q)) * lane(D) * x.dtype.itemsize
        scratch_bytes = ws * (sub(S) * lane(D)
                              + num_heads * sub(head_dim) * lane(S)
                              + num_heads * sub(S) * lane(head_dim))
        stage_tmp = 4 * 4 * S * D                                   # x, h, kv (f32)
        tile_tmp = 4 * (2 * block_q * S + 6 * block_q * D + 2 * block_q * inter)
        need = ((1 if single_buffer_weights else 2) * weight_bytes
                + io_bytes + scratch_bytes + 2 * max(stage_tmp, tile_tmp))
        vmem_limit = int(min(cap, max(32 << 20, need)))

        return pl.pallas_call(
            kernel,
            out_shape=jax.ShapeDtypeStruct((B, S, D), x.dtype),
            grid_spec=pltpu.PrefetchScalarGridSpec(
                num_scalar_prefetch=0,
                grid=(B, num_q_tiles),
                in_specs=in_specs,
                out_specs=pl.BlockSpec((1, block_q, D), lambda b, t: (b, t, 0)),
                scratch_shapes=[
                    pltpu.VMEM((S, D), matmul_dtype),                     # LN1(x)
                    pltpu.VMEM((num_heads, head_dim, S), matmul_dtype),   # K^T
                    pltpu.VMEM((num_heads, S, head_dim), matmul_dtype),   # V
                ],
            ),
            compiler_params=pltpu.CompilerParams(
                # TODO(synk): for B=1 serving on v7x, split the q-tile axis
                # across the two TensorCores (needs per-core K/V staging).
                dimension_semantics=("parallel", "arbitrary"),
                vmem_limit_bytes=vmem_limit,
            ),
            cost_estimate=cost,
        )

    try:
        return build(single_buffer_weights=True)(*args)
    except Exception:
        # Fallback for JAX versions where pl.Buffered(1) on a pallas_call
        # BlockSpec is rejected; weights then use the default double buffering.
        return build(single_buffer_weights=False)(*args)


def _ref_forward(x, p, num_heads, eps=1e-6):
    """Pure-JAX reference mirroring the PyTorch module (high-precision matmuls)."""
    def ln(t, g, b):
        mu = t.mean(-1, keepdims=True)
        var = ((t - mu) ** 2).mean(-1, keepdims=True)
        return (t - mu) / jnp.sqrt(var + eps) * g + b

    with jax.default_matmul_precision("float32"):
        B, S, D = x.shape
        hd = D // num_heads
        h = ln(x, p["ln1_g"], p["ln1_b"])
        q = h @ p["wq"] + p["bq"]
        k = h @ p["wk"] + p["bk"]
        v = h @ p["wv"] + p["bv"]
        q = q.reshape(B, S, num_heads, hd).transpose(0, 2, 1, 3)
        k = k.reshape(B, S, num_heads, hd).transpose(0, 2, 1, 3)
        v = v.reshape(B, S, num_heads, hd).transpose(0, 2, 1, 3)
        w = jnp.einsum("bhqd,bhkd->bhqk", q, k) * hd ** -0.5
        w = jax.nn.softmax(w.astype(jnp.float32), axis=-1).astype(q.dtype)
        o = jnp.einsum("bhqk,bhkd->bhqd", w, v).transpose(0, 2, 1, 3).reshape(B, S, D)
        o = o @ p["wo"] + p["bo"]
        x = x + o
        h2 = ln(x, p["ln2_g"], p["ln2_b"])
        f = jax.nn.gelu(h2 @ p["w1"] + p["b1"], approximate=True)
        return x + f @ p["w2"] + p["b2"]


def _init_params(key, D, I):
    ks = jax.random.split(key, 12)
    n = lambda k, shape: (0.02 * jax.random.normal(k, shape)).astype(jnp.float32)
    return {
        "ln1_g": jnp.ones((1, D), jnp.float32),
        "ln1_b": jnp.zeros((1, D), jnp.float32),
        "wq": n(ks[0], (D, D)), "bq": n(ks[1], (1, D)),
        "wk": n(ks[2], (D, D)), "bk": n(ks[3], (1, D)),
        "wv": n(ks[4], (D, D)), "bv": n(ks[5], (1, D)),
        "wo": n(ks[6], (D, D)), "bo": n(ks[7], (1, D)),
        "ln2_g": jnp.ones((1, D), jnp.float32),
        "ln2_b": jnp.zeros((1, D), jnp.float32),
        "w1": n(ks[8], (D, I)), "b1": n(ks[9], (1, I)),
        "w2": n(ks[10], (I, D)), "b2": n(ks[11], (1, D)),
    }


if __name__ == "__main__":
    # batch, seq, hidden, heads, intermediate; block_q=16 -> 2 q-tiles per batch.
    B, S, D, H, I = 2, 32, 32, 4, 64
    key = jax.random.PRNGKey(0)
    kx, kp = jax.random.split(key)
    x = jax.random.normal(kx, (B, S, D), dtype=jnp.float32)
    params = _init_params(kp, D, I)

    ref = _ref_forward(x, params, num_heads=H, eps=1e-6)

    # Exact-math path (f32 matmul operands): tight structural check.
    out_f32 = siglip_encoder_layer(x, params, num_heads=H, eps=1e-6,
                                   block_q=16, matmul_dtype=jnp.float32)
    out_f32 = jax.block_until_ready(out_f32)
    assert out_f32.shape == (B, S, D)
    assert jnp.allclose(out_f32, ref, atol=1e-3, rtol=1e-3), \
        "f32 kernel mismatch vs JAX reference"

    # Fast path (bf16 matmul operands, f32 accumulation): looser tolerance.
    out_bf16 = siglip_encoder_layer(x, params, num_heads=H, eps=1e-6,
                                    block_q=16, matmul_dtype=jnp.bfloat16)
    out_bf16 = jax.block_until_ready(out_bf16)
    assert out_bf16.shape == (B, S, D)
    assert jnp.allclose(out_bf16, ref, atol=3e-2, rtol=3e-2), \
        "bf16 kernel mismatch vs JAX reference"

    print("KERNEL_OK")
</pallas_src>

<mosaic_0001>
module attributes {stable_mosaic.version = 11 : i64} {
  func.func @_encoder_layer_kernel(%arg0: i32, %arg1: i32, %arg2: memref<1x32x32xf32, #tpu.memory_space<vmem>>, %arg3: memref<1x32xf32, #tpu.memory_space<vmem>>, %arg4: memref<1x32xf32, #tpu.memory_space<vmem>>, %arg5: memref<32x32xf32, #tpu.memory_space<vmem>>, %arg6: memref<1x32xf32, #tpu.memory_space<vmem>>, %arg7: memref<32x64xf32, #tpu.memory_space<vmem>>, %arg8: memref<1x64xf32, #tpu.memory_space<vmem>>, %arg9: memref<4x8x32xf32, #tpu.memory_space<vmem>>, %arg10: memref<1x32xf32, #tpu.memory_space<vmem>>, %arg11: memref<1x32xf32, #tpu.memory_space<vmem>>, %arg12: memref<1x32xf32, #tpu.memory_space<vmem>>, %arg13: memref<32x64xf32, #tpu.memory_space<vmem>>, %arg14: memref<1x64xf32, #tpu.memory_space<vmem>>, %arg15: memref<64x32xf32, #tpu.memory_space<vmem>>, %arg16: memref<1x32xf32, #tpu.memory_space<vmem>>, %arg17: memref<1x16x32xf32, #tpu.memory_space<vmem>>, %arg18: memref<32x32xf32, #tpu.memory_space<vmem>>, %arg19: memref<4x8x32xf32, #tpu.memory_space<vmem>>, %arg20: memref<4x32x8xf32, #tpu.memory_space<vmem>>) attributes {dimension_semantics = [#tpu.dimension_semantics<parallel>, #tpu.dimension_semantics<arbitrary>], iteration_bounds = array<i64: 2, 2>, scalar_prefetch = 0 : i64, scratch_operands = 3 : i64, tpu.core_type = #tpu.core_type<tc>, window_params = [{transform_indices = @transform_0, window_bounds = array<i64: 1, 32, 32>}, {pipeline_mode = #tpu.pipeline_mode<synchronous>, transform_indices = @transform_1, window_bounds = array<i64: 1, 32>}, {pipeline_mode = #tpu.pipeline_mode<synchronous>, transform_indices = @transform_2, window_bounds = array<i64: 1, 32>}, {pipeline_mode = #tpu.pipeline_mode<synchronous>, transform_indices = @transform_3, window_bounds = array<i64: 32, 32>}, {pipeline_mode = #tpu.pipeline_mode<synchronous>, transform_indices = @transform_4, window_bounds = array<i64: 1, 32>}, {pipeline_mode = #tpu.pipeline_mode<synchronous>, transform_indices = @transform_5, window_bounds = array<i64: 32, 64>}, {pipeline_mode = #tpu.pipeline_mode<synchronous>, transform_indices = @transform_6, window_bounds = array<i64: 1, 64>}, {pipeline_mode = #tpu.pipeline_mode<synchronous>, transform_indices = @transform_7, window_bounds = array<i64: 4, 8, 32>}, {pipeline_mode = #tpu.pipeline_mode<synchronous>, transform_indices = @transform_8, window_bounds = array<i64: 1, 32>}, {pipeline_mode = #tpu.pipeline_mode<synchronous>, transform_indices = @transform_9, window_bounds = array<i64: 1, 32>}, {pipeline_mode = #tpu.pipeline_mode<synchronous>, transform_indices = @transform_10, window_bounds = array<i64: 1, 32>}, {pipeline_mode = #tpu.pipeline_mode<synchronous>, transform_indices = @transform_11, window_bounds = array<i64: 32, 64>}, {pipeline_mode = #tpu.pipeline_mode<synchronous>, transform_indices = @transform_12, window_bounds = array<i64: 1, 64>}, {pipeline_mode = #tpu.pipeline_mode<synchronous>, transform_indices = @transform_13, window_bounds = array<i64: 64, 32>}, {pipeline_mode = #tpu.pipeline_mode<synchronous>, transform_indices = @transform_14, window_bounds = array<i64: 1, 32>}, {transform_indices = @transform_15, window_bounds = array<i64: 1, 16, 32>}]} {
    %c0_i32 = arith.constant 0 : i32
    %0 = arith.cmpi eq, %arg1, %c0_i32 : i32
    %1 = arith.extui %0 : i1 to i32
    %c0_i32_0 = arith.constant 0 : i32
    %2 = arith.cmpi ne, %1, %c0_i32_0 : i32
    scf.if %2 {
      %c0_89 = arith.constant 0 : index
      %c0_90 = arith.constant 0 : index
      %c0_91 = arith.constant 0 : index
      %155 = vector.load %arg2[%c0_89, %c0_90, %c0_91] : memref<1x32x32xf32, #tpu.memory_space<vmem>>, vector<1x32x32xf32>
      %156 = vector.shape_cast %155 : vector<1x32x32xf32> to vector<32x32xf32>
      %cst_92 = arith.constant dense<0.000000e+00> : vector<32xf32>
      %157 = vector.multi_reduction <add>, %156, %cst_92 [1] : vector<32x32xf32> to vector<32xf32>
      %158 = vector.shape_cast %157 : vector<32xf32> to vector<32x1xf32>
      %cst_93 = arith.constant 3.200000e+01 : f32
      %159 = vector.broadcast %cst_93 : f32 to vector<32x1xf32>
      %160 = arith.divf %158, %159 : vector<32x1xf32>
      %161 = vector.broadcast %160 : vector<32x1xf32> to vector<32x32xf32>
      %162 = arith.subf %156, %161 : vector<32x32xf32>
      %163 = arith.mulf %162, %162 : vector<32x32xf32>
      %cst_94 = arith.constant dense<0.000000e+00> : vector<32xf32>
      %164 = vector.multi_reduction <add>, %163, %cst_94 [1] : vector<32x32xf32> to vector<32xf32>
      %165 = vector.shape_cast %164 : vector<32xf32> to vector<32x1xf32>
      %cst_95 = arith.constant 3.200000e+01 : f32
      %166 = vector.broadcast %cst_95 : f32 to vector<32x1xf32>
      %167 = arith.divf %165, %166 : vector<32x1xf32>
      %168 = vector.broadcast %160 : vector<32x1xf32> to vector<32x32xf32>
      %169 = arith.subf %156, %168 : vector<32x32xf32>
      %cst_96 = arith.constant 9.99999997E-7 : f32
      %170 = vector.broadcast %cst_96 : f32 to vector<32x1xf32>
      %171 = arith.addf %167, %170 : vector<32x1xf32>
      %172 = math.rsqrt %171 : vector<32x1xf32>
      %173 = vector.broadcast %172 : vector<32x1xf32> to vector<32x32xf32>
      %174 = arith.mulf %169, %173 : vector<32x32xf32>
      %c0_97 = arith.constant 0 : index
      %c0_98 = arith.constant 0 : index
      %175 = vector.load %arg3[%c0_97, %c0_98] : memref<1x32xf32, #tpu.memory_space<vmem>>, vector<1x32xf32>
      %176 = vector.broadcast %175 : vector<1x32xf32> to vector<32x32xf32>
      %177 = arith.mulf %174, %176 : vector<32x32xf32>
      %c0_99 = arith.constant 0 : index
      %c0_100 = arith.constant 0 : index
      %178 = vector.load %arg4[%c0_99, %c0_100] : memref<1x32xf32, #tpu.memory_space<vmem>>, vector<1x32xf32>
      %179 = vector.broadcast %178 : vector<1x32xf32> to vector<32x32xf32>
      %180 = arith.addf %177, %179 : vector<32x32xf32>
      %c0_101 = arith.constant 0 : index
      %c0_102 = arith.constant 0 : index
      %181 = vector.load %arg18[%c0_101, %c0_102] : memref<32x32xf32, #tpu.memory_space<vmem>>, vector<32x32xf32>
      tpu.vector_store %arg18[%c0_101, %c0_102], %180 {strides = array<i32>} : memref<32x32xf32, #tpu.memory_space<vmem>>, vector<32x32xf32>,
      %c0_103 = arith.constant 0 : index
      %c0_104 = arith.constant 0 : index
      %182 = vector.load %arg7[%c0_103, %c0_104] : memref<32x64xf32, #tpu.memory_space<vmem>>, vector<32x64xf32>
      %cst_105 = arith.constant dense<0.000000e+00> : vector<32x64xf32>
      %183 = tpu.matmul %180, %182, %cst_105 {dimension_numbers = #tpu.dot_dimension_numbers<[1], [0], [0], [1], [0, 0, 1, 1], [], []>} : vector<32x32xf32>, vector<32x64xf32>, vector<32x64xf32> -> vector<32x64xf32>
      %c0_106 = arith.constant 0 : index
      %c0_107 = arith.constant 0 : index
      %184 = vector.load %arg8[%c0_106, %c0_107] : memref<1x64xf32, #tpu.memory_space<vmem>>, vector<1x64xf32>
      %185 = vector.broadcast %184 : vector<1x64xf32> to vector<32x64xf32>
      %186 = arith.addf %183, %185 : vector<32x64xf32>
      %187 = vector.extract_strided_slice %186 {offsets = [0, 0], sizes = [32, 8], strides = [1, 1]} : vector<32x64xf32> to vector<32x8xf32>
      %188 = tpu.transpose %187, [1, 0] : vector<32x8xf32> -> vector<8x32xf32>
      %c0_108 = arith.constant 0 : index
      %c0_109 = arith.constant 0 : index
      %c0_110 = arith.constant 0 : index
      %189 = vector.load %arg19[%c0_108, %c0_109, %c0_110] : memref<4x8x32xf32, #tpu.memory_space<vmem>>, vector<1x8x32xf32>
      %190 = vector.shape_cast %189 : vector<1x8x32xf32> to vector<8x32xf32>
      %191 = vector.shape_cast %188 : vector<8x32xf32> to vector<1x8x32xf32>
      tpu.vector_store %arg19[%c0_108, %c0_109, %c0_110], %191 {strides = array<i32>} : memref<4x8x32xf32, #tpu.memory_space<vmem>>, vector<1x8x32xf32>,
      %192 = vector.extract_strided_slice %186 {offsets = [0, 32], sizes = [32, 8], strides = [1, 1]} : vector<32x64xf32> to vector<32x8xf32>
      %c0_111 = arith.constant 0 : index
      %c0_112 = arith.constant 0 : index
      %c0_113 = arith.constant 0 : index
      %193 = vector.load %arg20[%c0_111, %c0_112, %c0_113] : memref<4x32x8xf32, #tpu.memory_space<vmem>>, vector<1x32x8xf32>
      %194 = vector.shape_cast %193 : vector<1x32x8xf32> to vector<32x8xf32>
      %195 = vector.shape_cast %192 : vector<32x8xf32> to vector<1x32x8xf32>
      tpu.vector_store %arg20[%c0_111, %c0_112, %c0_113], %195 {strides = array<i32>} : memref<4x32x8xf32, #tpu.memory_space<vmem>>, vector<1x32x8xf32>,
      %196 = vector.extract_strided_slice %186 {offsets = [0, 8], sizes = [32, 8], strides = [1, 1]} : vector<32x64xf32> to vector<32x8xf32>
      %197 = tpu.transpose %196, [1, 0] : vector<32x8xf32> -> vector<8x32xf32>
      %c1_114 = arith.constant 1 : index
      %c0_115 = arith.constant 0 : index
      %c0_116 = arith.constant 0 : index
      %198 = vector.load %arg19[%c1_114, %c0_115, %c0_116] : memref<4x8x32xf32, #tpu.memory_space<vmem>>, vector<1x8x32xf32>
      %199 = vector.shape_cast %198 : vector<1x8x32xf32> to vector<8x32xf32>
      %200 = vector.shape_cast %197 : vector<8x32xf32> to vector<1x8x32xf32>
      tpu.vector_store %arg19[%c1_114, %c0_115, %c0_116], %200 {strides = array<i32>} : memref<4x8x32xf32, #tpu.memory_space<vmem>>, vector<1x8x32xf32>,
      %201 = vector.extract_strided_slice %186 {offsets = [0, 40], sizes = [32, 8], strides = [1, 1]} : vector<32x64xf32> to vector<32x8xf32>
      %c1_117 = arith.constant 1 : index
      %c0_118 = arith.constant 0 : index
      %c0_119 = arith.constant 0 : index
      %202 = vector.load %arg20[%c1_117, %c0_118, %c0_119] : memref<4x32x8xf32, #tpu.memory_space<vmem>>, vector<1x32x8xf32>
      %203 = vector.shape_cast %202 : vector<1x32x8xf32> to vector<32x8xf32>
      %204 = vector.shape_cast %201 : vector<32x8xf32> to vector<1x32x8xf32>
      tpu.vector_store %arg20[%c1_117, %c0_118, %c0_119], %204 {strides = array<i32>} : memref<4x32x8xf32, #tpu.memory_space<vmem>>, vector<1x32x8xf32>,
      %205 = vector.extract_strided_slice %186 {offsets = [0, 16], sizes = [32, 8], strides = [1, 1]} : vector<32x64xf32> to vector<32x8xf32>
      %206 = tpu.transpose %205, [1, 0] : vector<32x8xf32> -> vector<8x32xf32>
      %c2_120 = arith.constant 2 : index
      %c0_121 = arith.constant 0 : index
      %c0_122 = arith.constant 0 : index
      %207 = vector.load %arg19[%c2_120, %c0_121, %c0_122] : memref<4x8x32xf32, #tpu.memory_space<vmem>>, vector<1x8x32xf32>
      %208 = vector.shape_cast %207 : vector<1x8x32xf32> to vector<8x32xf32>
      %209 = vector.shape_cast %206 : vector<8x32xf32> to vector<1x8x32xf32>
      tpu.vector_store %arg19[%c2_120, %c0_121, %c0_122], %209 {strides = array<i32>} : memref<4x8x32xf32, #tpu.memory_space<vmem>>, vector<1x8x32xf32>,
      %210 = vector.extract_strided_slice %186 {offsets = [0, 48], sizes = [32, 8], strides = [1, 1]} : vector<32x64xf32> to vector<32x8xf32>
      %c2_123 = arith.constant 2 : index
      %c0_124 = arith.constant 0 : index
      %c0_125 = arith.constant 0 : index
      %211 = vector.load %arg20[%c2_123, %c0_124, %c0_125] : memref<4x32x8xf32, #tpu.memory_space<vmem>>, vector<1x32x8xf32>
      %212 = vector.shape_cast %211 : vector<1x32x8xf32> to vector<32x8xf32>
      %213 = vector.shape_cast %210 : vector<32x8xf32> to vector<1x32x8xf32>
      tpu.vector_store %arg20[%c2_123, %c0_124, %c0_125], %213 {strides = array<i32>} : memref<4x32x8xf32, #tpu.memory_space<vmem>>, vector<1x32x8xf32>,
      %214 = vector.extract_strided_slice %186 {offsets = [0, 24], sizes = [32, 8], strides = [1, 1]} : vector<32x64xf32> to vector<32x8xf32>
      %215 = tpu.transpose %214, [1, 0] : vector<32x8xf32> -> vector<8x32xf32>
      %c3_126 = arith.constant 3 : index
      %c0_127 = arith.constant 0 : index
      %c0_128 = arith.constant 0 : index
      %216 = vector.load %arg19[%c3_126, %c0_127, %c0_128] : memref<4x8x32xf32, #tpu.memory_space<vmem>>, vector<1x8x32xf32>
      %217 = vector.shape_cast %216 : vector<1x8x32xf32> to vector<8x32xf32>
      %218 = vector.shape_cast %215 : vector<8x32xf32> to vector<1x8x32xf32>
      tpu.vector_store %arg19[%c3_126, %c0_127, %c0_128], %218 {strides = array<i32>} : memref<4x8x32xf32, #tpu.memory_space<vmem>>, vector<1x8x32xf32>,
      %219 = vector.extract_strided_slice %186 {offsets = [0, 56], sizes = [32, 8], strides = [1, 1]} : vector<32x64xf32> to vector<32x8xf32>
      %c3_129 = arith.constant 3 : index
      %c0_130 = arith.constant 0 : index
      %c0_131 = arith.constant 0 : index
      %220 = vector.load %arg20[%c3_129, %c0_130, %c0_131] : memref<4x32x8xf32, #tpu.memory_space<vmem>>, vector<1x32x8xf32>
      %221 = vector.shape_cast %220 : vector<1x32x8xf32> to vector<32x8xf32>
      %222 = vector.shape_cast %219 : vector<32x8xf32> to vector<1x32x8xf32>
      tpu.vector_store %arg20[%c3_129, %c0_130, %c0_131], %222 {strides = array<i32>} : memref<4x32x8xf32, #tpu.memory_space<vmem>>, vector<1x32x8xf32>,
    } else {
    }
    %c16_i32 = arith.constant 16 : i32
    %3 = arith.muli %arg1, %c16_i32 : i32
    %4 = tpu.assume_multiple %3, 16 : i32
    %c0 = arith.constant 0 : index
    %5 = arith.index_cast %4 : i32 to index
    %c0_1 = arith.constant 0 : index
    %6 = vector.load %arg2[%c0, %5, %c0_1] : memref<1x32x32xf32, #tpu.memory_space<vmem>>, vector<1x16x32xf32>
    %7 = vector.shape_cast %6 : vector<1x16x32xf32> to vector<16x32xf32>
    %8 = arith.index_cast %4 : i32 to index
    %c0_2 = arith.constant 0 : index
    %9 = vector.load %arg18[%8, %c0_2] : memref<32x32xf32, #tpu.memory_space<vmem>>, vector<16x32xf32>
    %c0_3 = arith.constant 0 : index
    %c0_4 = arith.constant 0 : index
    %10 = vector.load %arg5[%c0_3, %c0_4] : memref<32x32xf32, #tpu.memory_space<vmem>>, vector<32x32xf32>
    %cst = arith.constant dense<0.000000e+00> : vector<16x32xf32>
    %11 = tpu.matmul %9, %10, %cst {dimension_numbers = #tpu.dot_dimension_numbers<[1], [0], [0], [1], [0, 0, 1, 1], [], []>} : vector<16x32xf32>, vector<32x32xf32>, vector<16x32xf32> -> vector<16x32xf32>
    %c0_5 = arith.constant 0 : index
    %c0_6 = arith.constant 0 : index
    %12 = vector.load %arg6[%c0_5, %c0_6] : memref<1x32xf32, #tpu.memory_space<vmem>>, vector<1x32xf32>
    %13 = vector.broadcast %12 : vector<1x32xf32> to vector<16x32xf32>
    %14 = arith.addf %11, %13 : vector<16x32xf32>
    %cst_7 = arith.constant 0.000000e+00 : f32
    %15 = vector.broadcast %cst_7 : f32 to vector<16x32xf32>
    %16 = vector.extract_strided_slice %14 {offsets = [0, 0], sizes = [16, 8], strides = [1, 1]} : vector<16x32xf32> to vector<16x8xf32>
    %c0_8 = arith.constant 0 : index
    %c0_9 = arith.constant 0 : index
    %c0_10 = arith.constant 0 : index
    %17 = vector.load %arg19[%c0_8, %c0_9, %c0_10] : memref<4x8x32xf32, #tpu.memory_space<vmem>>, vector<1x8x32xf32>
    %18 = vector.shape_cast %17 : vector<1x8x32xf32> to vector<8x32xf32>
    %cst_11 = arith.constant dense<0.000000e+00> : vector<16x32xf32>
    %19 = tpu.matmul %16, %18, %cst_11 {dimension_numbers = #tpu.dot_dimension_numbers<[1], [0], [0], [1], [0, 0, 1, 1], [], []>} : vector<16x8xf32>, vector<8x32xf32>, vector<16x32xf32> -> vector<16x32xf32>
    %cst_12 = arith.constant dense<0xFF800000> : vector<16xf32>
    %20 = vector.multi_reduction <maximumf>, %19, %cst_12 [1] : vector<16x32xf32> to vector<16xf32>
    %21 = vector.shape_cast %20 : vector<16xf32> to vector<16x1xf32>
    %22 = vector.broadcast %21 : vector<16x1xf32> to vector<16x32xf32>
    %23 = arith.subf %19, %22 : vector<16x32xf32>
    %24 = math.exp %23 : vector<16x32xf32>
    %cst_13 = arith.constant dense<0.000000e+00> : vector<16xf32>
    %25 = vector.multi_reduction <add>, %24, %cst_13 [1] : vector<16x32xf32> to vector<16xf32>
    %26 = vector.shape_cast %25 : vector<16xf32> to vector<16x1xf32>
    %27 = tpu.reciprocal %26 : vector<16x1xf32> -> vector<16x1xf32>
    %28 = vector.broadcast %27 : vector<16x1xf32> to vector<16x32xf32>
    %29 = arith.mulf %24, %28 : vector<16x32xf32>
    %c0_14 = arith.constant 0 : index
    %c0_15 = arith.constant 0 : index
    %c0_16 = arith.constant 0 : index
    %30 = vector.load %arg20[%c0_14, %c0_15, %c0_16] : memref<4x32x8xf32, #tpu.memory_space<vmem>>, vector<1x32x8xf32>
    %31 = vector.shape_cast %30 : vector<1x32x8xf32> to vector<32x8xf32>
    %cst_17 = arith.constant dense<0.000000e+00> : vector<16x8xf32>
    %32 = tpu.matmul %29, %31, %cst_17 {dimension_numbers = #tpu.dot_dimension_numbers<[1], [0], [0], [1], [0, 0, 1, 1], [], []>} : vector<16x32xf32>, vector<32x8xf32>, vector<16x8xf32> -> vector<16x8xf32>
    %c0_18 = arith.constant 0 : index
    %c0_19 = arith.constant 0 : index
    %c0_20 = arith.constant 0 : index
    %33 = vector.load %arg9[%c0_18, %c0_19, %c0_20] : memref<4x8x32xf32, #tpu.memory_space<vmem>>, vector<1x8x32xf32>
    %34 = vector.shape_cast %33 : vector<1x8x32xf32> to vector<8x32xf32>
    %cst_21 = arith.constant dense<0.000000e+00> : vector<16x32xf32>
    %35 = tpu.matmul %32, %34, %cst_21 {dimension_numbers = #tpu.dot_dimension_numbers<[1], [0], [0], [1], [0, 0, 1, 1], [], []>} : vector<16x8xf32>, vector<8x32xf32>, vector<16x32xf32> -> vector<16x32xf32>
    %36 = arith.addf %15, %35 : vector<16x32xf32>
    %37 = vector.extract_strided_slice %14 {offsets = [0, 8], sizes = [16, 8], strides = [1, 1]} : vector<16x32xf32> to vector<16x8xf32>
    %c1 = arith.constant 1 : index
    %c0_22 = arith.constant 0 : index
    %c0_23 = arith.constant 0 : index
    %38 = vector.load %arg19[%c1, %c0_22, %c0_23] : memref<4x8x32xf32, #tpu.memory_space<vmem>>, vector<1x8x32xf32>
    %39 = vector.shape_cast %38 : vector<1x8x32xf32> to vector<8x32xf32>
    %cst_24 = arith.constant dense<0.000000e+00> : vector<16x32xf32>
    %40 = tpu.matmul %37, %39, %cst_24 {dimension_numbers = #tpu.dot_dimension_numbers<[1], [0], [0], [1], [0, 0, 1, 1], [], []>} : vector<16x8xf32>, vector<8x32xf32>, vector<16x32xf32> -> vector<16x32xf32>
    %cst_25 = arith.constant dense<0xFF800000> : vector<16xf32>
    %41 = vector.multi_reduction <maximumf>, %40, %cst_25 [1] : vector<16x32xf32> to vector<16xf32>
    %42 = vector.shape_cast %41 : vector<16xf32> to vector<16x1xf32>
    %43 = vector.broadcast %42 : vector<16x1xf32> to vector<16x32xf32>
    %44 = arith.subf %40, %43 : vector<16x32xf32>
    %45 = math.exp %44 : vector<16x32xf32>
    %cst_26 = arith.constant dense<0.000000e+00> : vector<16xf32>
    %46 = vector.multi_reduction <add>, %45, %cst_26 [1] : vector<16x32xf32> to vector<16xf32>
    %47 = vector.shape_cast %46 : vector<16xf32> to vector<16x1xf32>
    %48 = tpu.reciprocal %47 : vector<16x1xf32> -> vector<16x1xf32>
    %49 = vector.broadcast %48 : vector<16x1xf32> to vector<16x32xf32>
    %50 = arith.mulf %45, %49 : vector<16x32xf32>
    %c1_27 = arith.constant 1 : index
    %c0_28 = arith.constant 0 : index
    %c0_29 = arith.constant 0 : index
    %51 = vector.load %arg20[%c1_27, %c0_28, %c0_29] : memref<4x32x8xf32, #tpu.memory_space<vmem>>, vector<1x32x8xf32>
    %52 = vector.shape_cast %51 : vector<1x32x8xf32> to vector<32x8xf32>
    %cst_30 = arith.constant dense<0.000000e+00> : vector<16x8xf32>
    %53 = tpu.matmul %50, %52, %cst_30 {dimension_numbers = #tpu.dot_dimension_numbers<[1], [0], [0], [1], [0, 0, 1, 1], [], []>} : vector<16x32xf32>, vector<32x8xf32>, vector<16x8xf32> -> vector<16x8xf32>
    %c1_31 = arith.constant 1 : index
    %c0_32 = arith.constant 0 : index
    %c0_33 = arith.constant 0 : index
    %54 = vector.load %arg9[%c1_31, %c0_32, %c0_33] : memref<4x8x32xf32, #tpu.memory_space<vmem>>, vector<1x8x32xf32>
    %55 = vector.shape_cast %54 : vector<1x8x32xf32> to vector<8x32xf32>
    %cst_34 = arith.constant dense<0.000000e+00> : vector<16x32xf32>
    %56 = tpu.matmul %53, %55, %cst_34 {dimension_numbers = #tpu.dot_dimension_numbers<[1], [0], [0], [1], [0, 0, 1, 1], [], []>} : vector<16x8xf32>, vector<8x32xf32>, vector<16x32xf32> -> vector<16x32xf32>
    %57 = arith.addf %36, %56 : vector<16x32xf32>
    %58 = vector.extract_strided_slice %14 {offsets = [0, 16], sizes = [16, 8], strides = [1, 1]} : vector<16x32xf32> to vector<16x8xf32>
    %c2 = arith.constant 2 : index
    %c0_35 = arith.constant 0 : index
    %c0_36 = arith.constant 0 : index
    %59 = vector.load %arg19[%c2, %c0_35, %c0_36] : memref<4x8x32xf32, #tpu.memory_space<vmem>>, vector<1x8x32xf32>
    %60 = vector.shape_cast %59 : vector<1x8x32xf32> to vector<8x32xf32>
    %cst_37 = arith.constant dense<0.000000e+00> : vector<16x32xf32>
    %61 = tpu.matmul %58, %60, %cst_37 {dimension_numbers = #tpu.dot_dimension_numbers<[1], [0], [0], [1], [0, 0, 1, 1], [], []>} : vector<16x8xf32>, vector<8x32xf32>, vector<16x32xf32> -> vector<16x32xf32>
    %cst_38 = arith.constant dense<0xFF800000> : vector<16xf32>
    %62 = vector.multi_reduction <maximumf>, %61, %cst_38 [1] : vector<16x32xf32> to vector<16xf32>
    %63 = vector.shape_cast %62 : vector<16xf32> to vector<16x1xf32>
    %64 = vector.broadcast %63 : vector<16x1xf32> to vector<16x32xf32>
    %65 = arith.subf %61, %64 : vector<16x32xf32>
    %66 = math.exp %65 : vector<16x32xf32>
    %cst_39 = arith.constant dense<0.000000e+00> : vector<16xf32>
    %67 = vector.multi_reduction <add>, %66, %cst_39 [1] : vector<16x32xf32> to vector<16xf32>
    %68 = vector.shape_cast %67 : vector<16xf32> to vector<16x1xf32>
    %69 = tpu.reciprocal %68 : vector<16x1xf32> -> vector<16x1xf32>
    %70 = vector.broadcast %69 : vector<16x1xf32> to vector<16x32xf32>
    %71 = arith.mulf %66, %70 : vector<16x32xf32>
    %c2_40 = arith.constant 2 : index
    %c0_41 = arith.constant 0 : index
    %c0_42 = arith.constant 0 : index
    %72 = vector.load %arg20[%c2_40, %c0_41, %c0_42] : memref<4x32x8xf32, #tpu.memory_space<vmem>>, vector<1x32x8xf32>
    %73 = vector.shape_cast %72 : vector<1x32x8xf32> to vector<32x8xf32>
    %cst_43 = arith.constant dense<0.000000e+00> : vector<16x8xf32>
    %74 = tpu.matmul %71, %73, %cst_43 {dimension_numbers = #tpu.dot_dimension_numbers<[1], [0], [0], [1], [0, 0, 1, 1], [], []>} : vector<16x32xf32>, vector<32x8xf32>, vector<16x8xf32> -> vector<16x8xf32>
    %c2_44 = arith.constant 2 : index
    %c0_45 = arith.constant 0 : index
    %c0_46 = arith.constant 0 : index
    %75 = vector.load %arg9[%c2_44, %c0_45, %c0_46] : memref<4x8x32xf32, #tpu.memory_space<vmem>>, vector<1x8x32xf32>
    %76 = vector.shape_cast %75 : vector<1x8x32xf32> to vector<8x32xf32>
    %cst_47 = arith.constant dense<0.000000e+00> : vector<16x32xf32>
    %77 = tpu.matmul %74, %76, %cst_47 {dimension_numbers = #tpu.dot_dimension_numbers<[1], [0], [0], [1], [0, 0, 1, 1], [], []>} : vector<16x8xf32>, vector<8x32xf32>, vector<16x32xf32> -> vector<16x32xf32>
    %78 = arith.addf %57, %77 : vector<16x32xf32>
    %79 = vector.extract_strided_slice %14 {offsets = [0, 24], sizes = [16, 8], strides = [1, 1]} : vector<16x32xf32> to vector<16x8xf32>
    %c3 = arith.constant 3 : index
    %c0_48 = arith.constant 0 : index
    %c0_49 = arith.constant 0 : index
    %80 = vector.load %arg19[%c3, %c0_48, %c0_49] : memref<4x8x32xf32, #tpu.memory_space<vmem>>, vector<1x8x32xf32>
    %81 = vector.shape_cast %80 : vector<1x8x32xf32> to vector<8x32xf32>
    %cst_50 = arith.constant dense<0.000000e+00> : vector<16x32xf32>
    %82 = tpu.matmul %79, %81, %cst_50 {dimension_numbers = #tpu.dot_dimension_numbers<[1], [0], [0], [1], [0, 0, 1, 1], [], []>} : vector<16x8xf32>, vector<8x32xf32>, vector<16x32xf32> -> vector<16x32xf32>
    %cst_51 = arith.constant dense<0xFF800000> : vector<16xf32>
    %83 = vector.multi_reduction <maximumf>, %82, %cst_51 [1] : vector<16x32xf32> to vector<16xf32>
    %84 = vector.shape_cast %83 : vector<16xf32> to vector<16x1xf32>
    %85 = vector.broadcast %84 : vector<16x1xf32> to vector<16x32xf32>
    %86 = arith.subf %82, %85 : vector<16x32xf32>
    %87 = math.exp %86 : vector<16x32xf32>
    %cst_52 = arith.constant dense<0.000000e+00> : vector<16xf32>
    %88 = vector.multi_reduction <add>, %87, %cst_52 [1] : vector<16x32xf32> to vector<16xf32>
    %89 = vector.shape_cast %88 : vector<16xf32> to vector<16x1xf32>
    %90 = tpu.reciprocal %89 : vector<16x1xf32> -> vector<16x1xf32>
    %91 = vector.broadcast %90 : vector<16x1xf32> to vector<16x32xf32>
    %92 = arith.mulf %87, %91 : vector<16x32xf32>
    %c3_53 = arith.constant 3 : index
    %c0_54 = arith.constant 0 : index
    %c0_55 = arith.constant 0 : index
    %93 = vector.load %arg20[%c3_53, %c0_54, %c0_55] : memref<4x32x8xf32, #tpu.memory_space<vmem>>, vector<1x32x8xf32>
    %94 = vector.shape_cast %93 : vector<1x32x8xf32> to vector<32x8xf32>
    %cst_56 = arith.constant dense<0.000000e+00> : vector<16x8xf32>
    %95 = tpu.matmul %92, %94, %cst_56 {dimension_numbers = #tpu.dot_dimension_numbers<[1], [0], [0], [1], [0, 0, 1, 1], [], []>} : vector<16x32xf32>, vector<32x8xf32>, vector<16x8xf32> -> vector<16x8xf32>
    %c3_57 = arith.constant 3 : index
    %c0_58 = arith.constant 0 : index
    %c0_59 = arith.constant 0 : index
    %96 = vector.load %arg9[%c3_57, %c0_58, %c0_59] : memref<4x8x32xf32, #tpu.memory_space<vmem>>, vector<1x8x32xf32>
    %97 = vector.shape_cast %96 : vector<1x8x32xf32> to vector<8x32xf32>
    %cst_60 = arith.constant dense<0.000000e+00> : vector<16x32xf32>
    %98 = tpu.matmul %95, %97, %cst_60 {dimension_numbers = #tpu.dot_dimension_numbers<[1], [0], [0], [1], [0, 0, 1, 1], [], []>} : vector<16x8xf32>, vector<8x32xf32>, vector<16x32xf32> -> vector<16x32xf32>
    %99 = arith.addf %78, %98 : vector<16x32xf32>
    %c0_61 = arith.constant 0 : index
    %c0_62 = arith.constant 0 : index
    %100 = vector.load %arg10[%c0_61, %c0_62] : memref<1x32xf32, #tpu.memory_space<vmem>>, vector<1x32xf32>
    %101 = vector.broadcast %100 : vector<1x32xf32> to vector<16x32xf32>
    %102 = arith.addf %99, %101 : vector<16x32xf32>
    %103 = arith.addf %7, %102 : vector<16x32xf32>
    %cst_63 = arith.constant dense<0.000000e+00> : vector<16xf32>
    %104 = vector.multi_reduction <add>, %103, %cst_63 [1] : vector<16x32xf32> to vector<16xf32>
    %105 = vector.shape_cast %104 : vector<16xf32> to vector<16x1xf32>
    %cst_64 = arith.constant 3.200000e+01 : f32
    %106 = vector.broadcast %cst_64 : f32 to vector<16x1xf32>
    %107 = arith.divf %105, %106 : vector<16x1xf32>
    %108 = vector.broadcast %107 : vector<16x1xf32> to vector<16x32xf32>
    %109 = arith.subf %103, %108 : vector<16x32xf32>
    %110 = arith.mulf %109, %109 : vector<16x32xf32>
    %cst_65 = arith.constant dense<0.000000e+00> : vector<16xf32>
    %111 = vector.multi_reduction <add>, %110, %cst_65 [1] : vector<16x32xf32> to vector<16xf32>
    %112 = vector.shape_cast %111 : vector<16xf32> to vector<16x1xf32>
    %cst_66 = arith.constant 3.200000e+01 : f32
    %113 = vector.broadcast %cst_66 : f32 to vector<16x1xf32>
    %114 = arith.divf %112, %113 : vector<16x1xf32>
    %115 = vector.broadcast %107 : vector<16x1xf32> to vector<16x32xf32>
    %116 = arith.subf %103, %115 : vector<16x32xf32>
    %cst_67 = arith.constant 9.99999997E-7 : f32
    %117 = vector.broadcast %cst_67 : f32 to vector<16x1xf32>
    %118 = arith.addf %114, %117 : vector<16x1xf32>
    %119 = math.rsqrt %118 : vector<16x1xf32>
    %120 = vector.broadcast %119 : vector<16x1xf32> to vector<16x32xf32>
    %121 = arith.mulf %116, %120 : vector<16x32xf32>
    %c0_68 = arith.constant 0 : index
    %c0_69 = arith.constant 0 : index
    %122 = vector.load %arg11[%c0_68, %c0_69] : memref<1x32xf32, #tpu.memory_space<vmem>>, vector<1x32xf32>
    %123 = vector.broadcast %122 : vector<1x32xf32> to vector<16x32xf32>
    %124 = arith.mulf %121, %123 : vector<16x32xf32>
    %c0_70 = arith.constant 0 : index
    %c0_71 = arith.constant 0 : index
    %125 = vector.load %arg12[%c0_70, %c0_71] : memref<1x32xf32, #tpu.memory_space<vmem>>, vector<1x32xf32>
    %126 = vector.broadcast %125 : vector<1x32xf32> to vector<16x32xf32>
    %127 = arith.addf %124, %126 : vector<16x32xf32>
    %c0_72 = arith.constant 0 : index
    %c0_73 = arith.constant 0 : index
    %128 = vector.load %arg13[%c0_72, %c0_73] : memref<32x64xf32, #tpu.memory_space<vmem>>, vector<32x64xf32>
    %cst_74 = arith.constant dense<0.000000e+00> : vector<16x64xf32>
    %129 = tpu.matmul %127, %128, %cst_74 {dimension_numbers = #tpu.dot_dimension_numbers<[1], [0], [0], [1], [0, 0, 1, 1], [], []>} : vector<16x32xf32>, vector<32x64xf32>, vector<16x64xf32> -> vector<16x64xf32>
    %c0_75 = arith.constant 0 : index
    %c0_76 = arith.constant 0 : index
    %130 = vector.load %arg14[%c0_75, %c0_76] : memref<1x64xf32, #tpu.memory_space<vmem>>, vector<1x64xf32>
    %131 = vector.broadcast %130 : vector<1x64xf32> to vector<16x64xf32>
    %132 = arith.addf %129, %131 : vector<16x64xf32>
    %cst_77 = arith.constant 5.000000e-01 : f32
    %133 = vector.broadcast %cst_77 : f32 to vector<16x64xf32>
    %134 = arith.mulf %133, %132 : vector<16x64xf32>
    %135 = arith.mulf %132, %132 : vector<16x64xf32>
    %136 = arith.mulf %135, %132 : vector<16x64xf32>
    %cst_78 = arith.constant 4.471500e-02 : f32
    %137 = vector.broadcast %cst_78 : f32 to vector<16x64xf32>
    %138 = arith.mulf %137, %136 : vector<16x64xf32>
    %139 = arith.addf %132, %138 : vector<16x64xf32>
    %cst_79 = arith.constant 0.797884583 : f32
    %140 = vector.broadcast %cst_79 : f32 to vector<16x64xf32>
    %141 = arith.mulf %140, %139 : vector<16x64xf32>
    %142 = math.tanh %141 : vector<16x64xf32>
    %cst_80 = arith.constant 1.000000e+00 : f32
    %143 = vector.broadcast %cst_80 : f32 to vector<16x64xf32>
    %144 = arith.addf %143, %142 : vector<16x64xf32>
    %145 = arith.mulf %134, %144 : vector<16x64xf32>
    %c0_81 = arith.constant 0 : index
    %c0_82 = arith.constant 0 : index
    %146 = vector.load %arg15[%c0_81, %c0_82] : memref<64x32xf32, #tpu.memory_space<vmem>>, vector<64x32xf32>
    %cst_83 = arith.constant dense<0.000000e+00> : vector<16x32xf32>
    %147 = tpu.matmul %145, %146, %cst_83 {dimension_numbers = #tpu.dot_dimension_numbers<[1], [0], [0], [1], [0, 0, 1, 1], [], []>} : vector<16x64xf32>, vector<64x32xf32>, vector<16x32xf32> -> vector<16x32xf32>
    %c0_84 = arith.constant 0 : index
    %c0_85 = arith.constant 0 : index
    %148 = vector.load %arg16[%c0_84, %c0_85] : memref<1x32xf32, #tpu.memory_space<vmem>>, vector<1x32xf32>
    %149 = vector.broadcast %148 : vector<1x32xf32> to vector<16x32xf32>
    %150 = arith.addf %147, %149 : vector<16x32xf32>
    %151 = arith.addf %103, %150 : vector<16x32xf32>
    %c0_86 = arith.constant 0 : index
    %c0_87 = arith.constant 0 : index
    %c0_88 = arith.constant 0 : index
    %152 = vector.load %arg17[%c0_86, %c0_87, %c0_88] : memref<1x16x32xf32, #tpu.memory_space<vmem>>, vector<1x16x32xf32>
    %153 = vector.shape_cast %152 : vector<1x16x32xf32> to vector<16x32xf32>
    %154 = vector.shape_cast %151 : vector<16x32xf32> to vector<1x16x32xf32>
    tpu.vector_store %arg17[%c0_86, %c0_87, %c0_88], %154 {strides = array<i32>} : memref<1x16x32xf32, #tpu.memory_space<vmem>>, vector<1x16x32xf32>,
    return
  }
  func.func @transform_0(%arg0: i32, %arg1: i32) -> (i32, i32, i32) {
    %c0_i32 = arith.constant 0 : i32
    %c0_i32_0 = arith.constant 0 : i32
    %c0_i32_1 = arith.constant 0 : i32
    return %arg0, %c0_i32, %c0_i32_0 : i32, i32, i32
  }
  func.func @transform_1(%arg0: i32, %arg1: i32) -> (i32, i32) {
    %c0_i32 = arith.constant 0 : i32
    %c0_i32_0 = arith.constant 0 : i32
    %c0_i32_1 = arith.constant 0 : i32
    return %c0_i32, %c0_i32_0 : i32, i32
  }
  func.func @transform_2(%arg0: i32, %arg1: i32) -> (i32, i32) {
    %c0_i32 = arith.constant 0 : i32
    %c0_i32_0 = arith.constant 0 : i32
    %c0_i32_1 = arith.constant 0 : i32
    return %c0_i32, %c0_i32_0 : i32, i32
  }
  func.func @transform_3(%arg0: i32, %arg1: i32) -> (i32, i32) {
    %c0_i32 = arith.constant 0 : i32
    %c0_i32_0 = arith.constant 0 : i32
    %c0_i32_1 = arith.constant 0 : i32
    return %c0_i32, %c0_i32_0 : i32, i32
  }
  func.func @transform_4(%arg0: i32, %arg1: i32) -> (i32, i32) {
    %c0_i32 = arith.constant 0 : i32
    %c0_i32_0 = arith.constant 0 : i32
    %c0_i32_1 = arith.constant 0 : i32
    return %c0_i32, %c0_i32_0 : i32, i32
  }
  func.func @transform_5(%arg0: i32, %arg1: i32) -> (i32, i32) {
    %c0_i32 = arith.constant 0 : i32
    %c0_i32_0 = arith.constant 0 : i32
    %c0_i32_1 = arith.constant 0 : i32
    return %c0_i32, %c0_i32_0 : i32, i32
  }
  func.func @transform_6(%arg0: i32, %arg1: i32) -> (i32, i32) {
    %c0_i32 = arith.constant 0 : i32
    %c0_i32_0 = arith.constant 0 : i32
    %c0_i32_1 = arith.constant 0 : i32
    return %c0_i32, %c0_i32_0 : i32, i32
  }
  func.func @transform_7(%arg0: i32, %arg1: i32) -> (i32, i32, i32) {
    %c0_i32 = arith.constant 0 : i32
    %c0_i32_0 = arith.constant 0 : i32
    %c0_i32_1 = arith.constant 0 : i32
    %c0_i32_2 = arith.constant 0 : i32
    return %c0_i32, %c0_i32_0, %c0_i32_1 : i32, i32, i32
  }
  func.func @transform_8(%arg0: i32, %arg1: i32) -> (i32, i32) {
    %c0_i32 = arith.constant 0 : i32
    %c0_i32_0 = arith.constant 0 : i32
    %c0_i32_1 = arith.constant 0 : i32
    return %c0_i32, %c0_i32_0 : i32, i32
  }
  func.func @transform_9(%arg0: i32, %arg1: i32) -> (i32, i32) {
    %c0_i32 = arith.constant 0 : i32
    %c0_i32_0 = arith.constant 0 : i32
    %c0_i32_1 = arith.constant 0 : i32
    return %c0_i32, %c0_i32_0 : i32, i32
  }
  func.func @transform_10(%arg0: i32, %arg1: i32) -> (i32, i32) {
    %c0_i32 = arith.constant 0 : i32
    %c0_i32_0 = arith.constant 0 : i32
    %c0_i32_1 = arith.constant 0 : i32
    return %c0_i32, %c0_i32_0 : i32, i32
  }
  func.func @transform_11(%arg0: i32, %arg1: i32) -> (i32, i32) {
    %c0_i32 = arith.constant 0 : i32
    %c0_i32_0 = arith.constant 0 : i32
    %c0_i32_1 = arith.constant 0 : i32
    return %c0_i32, %c0_i32_0 : i32, i32
  }
  func.func @transform_12(%arg0: i32, %arg1: i32) -> (i32, i32) {
    %c0_i32 = arith.constant 0 : i32
    %c0_i32_0 = arith.constant 0 : i32
    %c0_i32_1 = arith.constant 0 : i32
    return %c0_i32, %c0_i32_0 : i32, i32
  }
  func.func @transform_13(%arg0: i32, %arg1: i32) -> (i32, i32) {
    %c0_i32 = arith.constant 0 : i32
    %c0_i32_0 = arith.constant 0 : i32
    %c0_i32_1 = arith.constant 0 : i32
    return %c0_i32, %c0_i32_0 : i32, i32
  }
  func.func @transform_14(%arg0: i32, %arg1: i32) -> (i32, i32) {
    %c0_i32 = arith.constant 0 : i32
    %c0_i32_0 = arith.constant 0 : i32
    %c0_i32_1 = arith.constant 0 : i32
    return %c0_i32, %c0_i32_0 : i32, i32
  }
  func.func @transform_15(%arg0: i32, %arg1: i32) -> (i32, i32, i32) {
    %c0_i32 = arith.constant 0 : i32
    %c0_i32_0 = arith.constant 0 : i32
    return %arg0, %arg1, %c0_i32 : i32, i32, i32
  }
}

module attributes {stable_mosaic.version = 11 : i64} {
  func.func @_encoder_layer_kernel(%arg0: i32, %arg1: i32, %arg2: memref<1x32x32xf32, #tpu.memory_space<vmem>>, %arg3: memref<1x32xf32, #tpu.memory_space<vmem>>, %arg4: memref<1x32xf32, #tpu.memory_space<vmem>>, %arg5: memref<32x32xf32, #tpu.memory_space<vmem>>, %arg6: memref<1x32xf32, #tpu.memory_space<vmem>>, %arg7: memref<32x64xf32, #tpu.memory_space<vmem>>, %arg8: memref<1x64xf32, #tpu.memory_space<vmem>>, %arg9: memref<4x8x32xf32, #tpu.memory_space<vmem>>, %arg10: memref<1x32xf32, #tpu.memory_space<vmem>>, %arg11: memref<1x32xf32, #tpu.memory_space<vmem>>, %arg12: memref<1x32xf32, #tpu.memory_space<vmem>>, %arg13: memref<32x64xf32, #tpu.memory_space<vmem>>, %arg14: memref<1x64xf32, #tpu.memory_space<vmem>>, %arg15: memref<64x32xf32, #tpu.memory_space<vmem>>, %arg16: memref<1x32xf32, #tpu.memory_space<vmem>>, %arg17: memref<1x16x32xf32, #tpu.memory_space<vmem>>, %arg18: memref<32x32xf32, #tpu.memory_space<vmem>>, %arg19: memref<4x8x32xf32, #tpu.memory_space<vmem>>, %arg20: memref<4x32x8xf32, #tpu.memory_space<vmem>>) attributes {dimension_semantics = [#tpu.dimension_semantics<parallel>, #tpu.dimension_semantics<arbitrary>], iteration_bounds = array<i64: 2, 2>, scalar_prefetch = 0 : i64, scratch_operands = 3 : i64, tpu.core_type = #tpu.core_type<tc>, window_params = [{transform_indices = @transform_0, window_bounds = array<i64: 1, 32, 32>}, {pipeline_mode = #tpu.pipeline_mode<synchronous>, transform_indices = @transform_1, window_bounds = array<i64: 1, 32>}, {pipeline_mode = #tpu.pipeline_mode<synchronous>, transform_indices = @transform_2, window_bounds = array<i64: 1, 32>}, {pipeline_mode = #tpu.pipeline_mode<synchronous>, transform_indices = @transform_3, window_bounds = array<i64: 32, 32>}, {pipeline_mode = #tpu.pipeline_mode<synchronous>, transform_indices = @transform_4, window_bounds = array<i64: 1, 32>}, {pipeline_mode = #tpu.pipeline_mode<synchronous>, transform_indices = @transform_5, window_bounds = array<i64: 32, 64>}, {pipeline_mode = #tpu.pipeline_mode<synchronous>, transform_indices = @transform_6, window_bounds = array<i64: 1, 64>}, {pipeline_mode = #tpu.pipeline_mode<synchronous>, transform_indices = @transform_7, window_bounds = array<i64: 4, 8, 32>}, {pipeline_mode = #tpu.pipeline_mode<synchronous>, transform_indices = @transform_8, window_bounds = array<i64: 1, 32>}, {pipeline_mode = #tpu.pipeline_mode<synchronous>, transform_indices = @transform_9, window_bounds = array<i64: 1, 32>}, {pipeline_mode = #tpu.pipeline_mode<synchronous>, transform_indices = @transform_10, window_bounds = array<i64: 1, 32>}, {pipeline_mode = #tpu.pipeline_mode<synchronous>, transform_indices = @transform_11, window_bounds = array<i64: 32, 64>}, {pipeline_mode = #tpu.pipeline_mode<synchronous>, transform_indices = @transform_12, window_bounds = array<i64: 1, 64>}, {pipeline_mode = #tpu.pipeline_mode<synchronous>, transform_indices = @transform_13, window_bounds = array<i64: 64, 32>}, {pipeline_mode = #tpu.pipeline_mode<synchronous>, transform_indices = @transform_14, window_bounds = array<i64: 1, 32>}, {transform_indices = @transform_15, window_bounds = array<i64: 1, 16, 32>}]} {
    %c0_i32 = arith.constant 0 : i32
    %0 = arith.cmpi eq, %arg1, %c0_i32 : i32
    %1 = arith.extui %0 : i1 to i32
    %c0_i32_0 = arith.constant 0 : i32
    %2 = arith.cmpi ne, %1, %c0_i32_0 : i32
    scf.if %2 {
      %c0_89 = arith.constant 0 : index
      %c0_90 = arith.constant 0 : index
      %c0_91 = arith.constant 0 : index
      %155 = vector.load %arg2[%c0_89, %c0_90, %c0_91] : memref<1x32x32xf32, #tpu.memory_space<vmem>>, vector<1x32x32xf32>
      %156 = vector.shape_cast %155 : vector<1x32x32xf32> to vector<32x32xf32>
      %cst_92 = arith.constant dense<0.000000e+00> : vector<32xf32>
      %157 = vector.multi_reduction <add>, %156, %cst_92 [1] : vector<32x32xf32> to vector<32xf32>
      %158 = vector.shape_cast %157 : vector<32xf32> to vector<32x1xf32>
      %cst_93 = arith.constant 3.200000e+01 : f32
      %159 = vector.broadcast %cst_93 : f32 to vector<32x1xf32>
      %160 = arith.divf %158, %159 : vector<32x1xf32>
      %161 = vector.broadcast %160 : vector<32x1xf32> to vector<32x32xf32>
      %162 = arith.subf %156, %161 : vector<32x32xf32>
      %163 = arith.mulf %162, %162 : vector<32x32xf32>
      %cst_94 = arith.constant dense<0.000000e+00> : vector<32xf32>
      %164 = vector.multi_reduction <add>, %163, %cst_94 [1] : vector<32x32xf32> to vector<32xf32>
      %165 = vector.shape_cast %164 : vector<32xf32> to vector<32x1xf32>
      %cst_95 = arith.constant 3.200000e+01 : f32
      %166 = vector.broadcast %cst_95 : f32 to vector<32x1xf32>
      %167 = arith.divf %165, %166 : vector<32x1xf32>
      %168 = vector.broadcast %160 : vector<32x1xf32> to vector<32x32xf32>
      %169 = arith.subf %156, %168 : vector<32x32xf32>
      %cst_96 = arith.constant 9.99999997E-7 : f32
      %170 = vector.broadcast %cst_96 : f32 to vector<32x1xf32>
      %171 = arith.addf %167, %170 : vector<32x1xf32>
      %172 = math.rsqrt %171 : vector<32x1xf32>
      %173 = vector.broadcast %172 : vector<32x1xf32> to vector<32x32xf32>
      %174 = arith.mulf %169, %173 : vector<32x32xf32>
      %c0_97 = arith.constant 0 : index
      %c0_98 = arith.constant 0 : index
      %175 = vector.load %arg3[%c0_97, %c0_98] : memref<1x32xf32, #tpu.memory_space<vmem>>, vector<1x32xf32>
      %176 = vector.broadcast %175 : vector<1x32xf32> to vector<32x32xf32>
      %177 = arith.mulf %174, %176 : vector<32x32xf32>
      %c0_99 = arith.constant 0 : index
      %c0_100 = arith.constant 0 : index
      %178 = vector.load %arg4[%c0_99, %c0_100] : memref<1x32xf32, #tpu.memory_space<vmem>>, vector<1x32xf32>
      %179 = vector.broadcast %178 : vector<1x32xf32> to vector<32x32xf32>
      %180 = arith.addf %177, %179 : vector<32x32xf32>
      %c0_101 = arith.constant 0 : index
      %c0_102 = arith.constant 0 : index
      %181 = vector.load %arg18[%c0_101, %c0_102] : memref<32x32xf32, #tpu.memory_space<vmem>>, vector<32x32xf32>
      tpu.vector_store %arg18[%c0_101, %c0_102], %180 {strides = array<i32>} : memref<32x32xf32, #tpu.memory_space<vmem>>, vector<32x32xf32>,
      %c0_103 = arith.constant 0 : index
      %c0_104 = arith.constant 0 : index
      %182 = vector.load %arg7[%c0_103, %c0_104] : memref<32x64xf32, #tpu.memory_space<vmem>>, vector<32x64xf32>
      %cst_105 = arith.constant dense<0.000000e+00> : vector<32x64xf32>
      %183 = tpu.matmul %180, %182, %cst_105 {dimension_numbers = #tpu.dot_dimension_numbers<[1], [0], [0], [1], [0, 0, 1, 1], [], []>} : vector<32x32xf32>, vector<32x64xf32>, vector<32x64xf32> -> vector<32x64xf32>
      %c0_106 = arith.constant 0 : index
      %c0_107 = arith.constant 0 : index
      %184 = vector.load %arg8[%c0_106, %c0_107] : memref<1x64xf32, #tpu.memory_space<vmem>>, vector<1x64xf32>
      %185 = vector.broadcast %184 : vector<1x64xf32> to vector<32x64xf32>
      %186 = arith.addf %183, %185 : vector<32x64xf32>
      %187 = vector.extract_strided_slice %186 {offsets = [0, 0], sizes = [32, 8], strides = [1, 1]} : vector<32x64xf32> to vector<32x8xf32>
      %188 = tpu.transpose %187, [1, 0] : vector<32x8xf32> -> vector<8x32xf32>
      %c0_108 = arith.constant 0 : index
      %c0_109 = arith.constant 0 : index
      %c0_110 = arith.constant 0 : index
      %189 = vector.load %arg19[%c0_108, %c0_109, %c0_110] : memref<4x8x32xf32, #tpu.memory_space<vmem>>, vector<1x8x32xf32>
      %190 = vector.shape_cast %189 : vector<1x8x32xf32> to vector<8x32xf32>
      %191 = vector.shape_cast %188 : vector<8x32xf32> to vector<1x8x32xf32>
      tpu.vector_store %arg19[%c0_108, %c0_109, %c0_110], %191 {strides = array<i32>} : memref<4x8x32xf32, #tpu.memory_space<vmem>>, vector<1x8x32xf32>,
      %192 = vector.extract_strided_slice %186 {offsets = [0, 32], sizes = [32, 8], strides = [1, 1]} : vector<32x64xf32> to vector<32x8xf32>
      %c0_111 = arith.constant 0 : index
      %c0_112 = arith.constant 0 : index
      %c0_113 = arith.constant 0 : index
      %193 = vector.load %arg20[%c0_111, %c0_112, %c0_113] : memref<4x32x8xf32, #tpu.memory_space<vmem>>, vector<1x32x8xf32>
      %194 = vector.shape_cast %193 : vector<1x32x8xf32> to vector<32x8xf32>
      %195 = vector.shape_cast %192 : vector<32x8xf32> to vector<1x32x8xf32>
      tpu.vector_store %arg20[%c0_111, %c0_112, %c0_113], %195 {strides = array<i32>} : memref<4x32x8xf32, #tpu.memory_space<vmem>>, vector<1x32x8xf32>,
      %196 = vector.extract_strided_slice %186 {offsets = [0, 8], sizes = [32, 8], strides = [1, 1]} : vector<32x64xf32> to vector<32x8xf32>
      %197 = tpu.transpose %196, [1, 0] : vector<32x8xf32> -> vector<8x32xf32>
      %c1_114 = arith.constant 1 : index
      %c0_115 = arith.constant 0 : index
      %c0_116 = arith.constant 0 : index
      %198 = vector.load %arg19[%c1_114, %c0_115, %c0_116] : memref<4x8x32xf32, #tpu.memory_space<vmem>>, vector<1x8x32xf32>
      %199 = vector.shape_cast %198 : vector<1x8x32xf32> to vector<8x32xf32>
      %200 = vector.shape_cast %197 : vector<8x32xf32> to vector<1x8x32xf32>
      tpu.vector_store %arg19[%c1_114, %c0_115, %c0_116], %200 {strides = array<i32>} : memref<4x8x32xf32, #tpu.memory_space<vmem>>, vector<1x8x32xf32>,
      %201 = vector.extract_strided_slice %186 {offsets = [0, 40], sizes = [32, 8], strides = [1, 1]} : vector<32x64xf32> to vector<32x8xf32>
      %c1_117 = arith.constant 1 : index
      %c0_118 = arith.constant 0 : index
      %c0_119 = arith.constant 0 : index
      %202 = vector.load %arg20[%c1_117, %c0_118, %c0_119] : memref<4x32x8xf32, #tpu.memory_space<vmem>>, vector<1x32x8xf32>
      %203 = vector.shape_cast %202 : vector<1x32x8xf32> to vector<32x8xf32>
      %204 = vector.shape_cast %201 : vector<32x8xf32> to vector<1x32x8xf32>
      tpu.vector_store %arg20[%c1_117, %c0_118, %c0_119], %204 {strides = array<i32>} : memref<4x32x8xf32, #tpu.memory_space<vmem>>, vector<1x32x8xf32>,
      %205 = vector.extract_strided_slice %186 {offsets = [0, 16], sizes = [32, 8], strides = [1, 1]} : vector<32x64xf32> to vector<32x8xf32>
      %206 = tpu.transpose %205, [1, 0] : vector<32x8xf32> -> vector<8x32xf32>
      %c2_120 = arith.constant 2 : index
      %c0_121 = arith.constant 0 : index
      %c0_122 = arith.constant 0 : index
      %207 = vector.load %arg19[%c2_120, %c0_121, %c0_122] : memref<4x8x32xf32, #tpu.memory_space<vmem>>, vector<1x8x32xf32>
      %208 = vector.shape_cast %207 : vector<1x8x32xf32> to vector<8x32xf32>
      %209 = vector.shape_cast %206 : vector<8x32xf32> to vector<1x8x32xf32>
      tpu.vector_store %arg19[%c2_120, %c0_121, %c0_122], %209 {strides = array<i32>} : memref<4x8x32xf32, #tpu.memory_space<vmem>>, vector<1x8x32xf32>,
      %210 = vector.extract_strided_slice %186 {offsets = [0, 48], sizes = [32, 8], strides = [1, 1]} : vector<32x64xf32> to vector<32x8xf32>
      %c2_123 = arith.constant 2 : index
      %c0_124 = arith.constant 0 : index
      %c0_125 = arith.constant 0 : index
      %211 = vector.load %arg20[%c2_123, %c0_124, %c0_125] : memref<4x32x8xf32, #tpu.memory_space<vmem>>, vector<1x32x8xf32>
      %212 = vector.shape_cast %211 : vector<1x32x8xf32> to vector<32x8xf32>
      %213 = vector.shape_cast %210 : vector<32x8xf32> to vector<1x32x8xf32>
      tpu.vector_store %arg20[%c2_123, %c0_124, %c0_125], %213 {strides = array<i32>} : memref<4x32x8xf32, #tpu.memory_space<vmem>>, vector<1x32x8xf32>,
      %214 = vector.extract_strided_slice %186 {offsets = [0, 24], sizes = [32, 8], strides = [1, 1]} : vector<32x64xf32> to vector<32x8xf32>
      %215 = tpu.transpose %214, [1, 0] : vector<32x8xf32> -> vector<8x32xf32>
      %c3_126 = arith.constant 3 : index
      %c0_127 = arith.constant 0 : index
      %c0_128 = arith.constant 0 : index
      %216 = vector.load %arg19[%c3_126, %c0_127, %c0_128] : memref<4x8x32xf32, #tpu.memory_space<vmem>>, vector<1x8x32xf32>
      %217 = vector.shape_cast %216 : vector<1x8x32xf32> to vector<8x32xf32>
      %218 = vector.shape_cast %215 : vector<8x32xf32> to vector<1x8x32xf32>
      tpu.vector_store %arg19[%c3_126, %c0_127, %c0_128], %218 {strides = array<i32>} : memref<4x8x32xf32, #tpu.memory_space<vmem>>, vector<1x8x32xf32>,
      %219 = vector.extract_strided_slice %186 {offsets = [0, 56], sizes = [32, 8], strides = [1, 1]} : vector<32x64xf32> to vector<32x8xf32>
      %c3_129 = arith.constant 3 : index
      %c0_130 = arith.constant 0 : index
      %c0_131 = arith.constant 0 : index
      %220 = vector.load %arg20[%c3_129, %c0_130, %c0_131] : memref<4x32x8xf32, #tpu.memory_space<vmem>>, vector<1x32x8xf32>
      %221 = vector.shape_cast %220 : vector<1x32x8xf32> to vector<32x8xf32>
      %222 = vector.shape_cast %219 : vector<32x8xf32> to vector<1x32x8xf32>
      tpu.vector_store %arg20[%c3_129, %c0_130, %c0_131], %222 {strides = array<i32>} : memref<4x32x8xf32, #tpu.memory_space<vmem>>, vector<1x32x8xf32>,
    } else {
    }
    %c16_i32 = arith.constant 16 : i32
    %3 = arith.muli %arg1, %c16_i32 : i32
    %4 = tpu.assume_multiple %3, 16 : i32
    %c0 = arith.constant 0 : index
    %5 = arith.index_cast %4 : i32 to index
    %c0_1 = arith.constant 0 : index
    %6 = vector.load %arg2[%c0, %5, %c0_1] : memref<1x32x32xf32, #tpu.memory_space<vmem>>, vector<1x16x32xf32>
    %7 = vector.shape_cast %6 : vector<1x16x32xf32> to vector<16x32xf32>
    %8 = arith.index_cast %4 : i32 to index
    %c0_2 = arith.constant 0 : index
    %9 = vector.load %arg18[%8, %c0_2] : memref<32x32xf32, #tpu.memory_space<vmem>>, vector<16x32xf32>
    %c0_3 = arith.constant 0 : index
    %c0_4 = arith.constant 0 : index
    %10 = vector.load %arg5[%c0_3, %c0_4] : memref<32x32xf32, #tpu.memory_space<vmem>>, vector<32x32xf32>
    %cst = arith.constant dense<0.000000e+00> : vector<16x32xf32>
    %11 = tpu.matmul %9, %10, %cst {dimension_numbers = #tpu.dot_dimension_numbers<[1], [0], [0], [1], [0, 0, 1, 1], [], []>} : vector<16x32xf32>, vector<32x32xf32>, vector<16x32xf32> -> vector<16x32xf32>
    %c0_5 = arith.constant 0 : index
    %c0_6 = arith.constant 0 : index
    %12 = vector.load %arg6[%c0_5, %c0_6] : memref<1x32xf32, #tpu.memory_space<vmem>>, vector<1x32xf32>
    %13 = vector.broadcast %12 : vector<1x32xf32> to vector<16x32xf32>
    %14 = arith.addf %11, %13 : vector<16x32xf32>
    %cst_7 = arith.constant 0.000000e+00 : f32
    %15 = vector.broadcast %cst_7 : f32 to vector<16x32xf32>
    %16 = vector.extract_strided_slice %14 {offsets = [0, 0], sizes = [16, 8], strides = [1, 1]} : vector<16x32xf32> to vector<16x8xf32>
    %c0_8 = arith.constant 0 : index
    %c0_9 = arith.constant 0 : index
    %c0_10 = arith.constant 0 : index
    %17 = vector.load %arg19[%c0_8, %c0_9, %c0_10] : memref<4x8x32xf32, #tpu.memory_space<vmem>>, vector<1x8x32xf32>
    %18 = vector.shape_cast %17 : vector<1x8x32xf32> to vector<8x32xf32>
    %cst_11 = arith.constant dense<0.000000e+00> : vector<16x32xf32>
    %19 = tpu.matmul %16, %18, %cst_11 {dimension_numbers = #tpu.dot_dimension_numbers<[1], [0], [0], [1], [0, 0, 1, 1], [], []>} : vector<16x8xf32>, vector<8x32xf32>, vector<16x32xf32> -> vector<16x32xf32>
    %cst_12 = arith.constant dense<0xFF800000> : vector<16xf32>
    %20 = vector.multi_reduction <maximumf>, %19, %cst_12 [1] : vector<16x32xf32> to vector<16xf32>
    %21 = vector.shape_cast %20 : vector<16xf32> to vector<16x1xf32>
    %22 = vector.broadcast %21 : vector<16x1xf32> to vector<16x32xf32>
    %23 = arith.subf %19, %22 : vector<16x32xf32>
    %24 = math.exp %23 : vector<16x32xf32>
    %cst_13 = arith.constant dense<0.000000e+00> : vector<16xf32>
    %25 = vector.multi_reduction <add>, %24, %cst_13 [1] : vector<16x32xf32> to vector<16xf32>
    %26 = vector.shape_cast %25 : vector<16xf32> to vector<16x1xf32>
    %27 = tpu.reciprocal %26 : vector<16x1xf32> -> vector<16x1xf32>
    %28 = vector.broadcast %27 : vector<16x1xf32> to vector<16x32xf32>
    %29 = arith.mulf %24, %28 : vector<16x32xf32>
    %c0_14 = arith.constant 0 : index
    %c0_15 = arith.constant 0 : index
    %c0_16 = arith.constant 0 : index
    %30 = vector.load %arg20[%c0_14, %c0_15, %c0_16] : memref<4x32x8xf32, #tpu.memory_space<vmem>>, vector<1x32x8xf32>
    %31 = vector.shape_cast %30 : vector<1x32x8xf32> to vector<32x8xf32>
    %cst_17 = arith.constant dense<0.000000e+00> : vector<16x8xf32>
    %32 = tpu.matmul %29, %31, %cst_17 {dimension_numbers = #tpu.dot_dimension_numbers<[1], [0], [0], [1], [0, 0, 1, 1], [], []>} : vector<16x32xf32>, vector<32x8xf32>, vector<16x8xf32> -> vector<16x8xf32>
    %c0_18 = arith.constant 0 : index
    %c0_19 = arith.constant 0 : index
    %c0_20 = arith.constant 0 : index
    %33 = vector.load %arg9[%c0_18, %c0_19, %c0_20] : memref<4x8x32xf32, #tpu.memory_space<vmem>>, vector<1x8x32xf32>
    %34 = vector.shape_cast %33 : vector<1x8x32xf32> to vector<8x32xf32>
    %cst_21 = arith.constant dense<0.000000e+00> : vector<16x32xf32>
    %35 = tpu.matmul %32, %34, %cst_21 {dimension_numbers = #tpu.dot_dimension_numbers<[1], [0], [0], [1], [0, 0, 1, 1], [], []>} : vector<16x8xf32>, vector<8x32xf32>, vector<16x32xf32> -> vector<16x32xf32>
    %36 = arith.addf %15, %35 : vector<16x32xf32>
    %37 = vector.extract_strided_slice %14 {offsets = [0, 8], sizes = [16, 8], strides = [1, 1]} : vector<16x32xf32> to vector<16x8xf32>
    %c1 = arith.constant 1 : index
    %c0_22 = arith.constant 0 : index
    %c0_23 = arith.constant 0 : index
    %38 = vector.load %arg19[%c1, %c0_22, %c0_23] : memref<4x8x32xf32, #tpu.memory_space<vmem>>, vector<1x8x32xf32>
    %39 = vector.shape_cast %38 : vector<1x8x32xf32> to vector<8x32xf32>
    %cst_24 = arith.constant dense<0.000000e+00> : vector<16x32xf32>
    %40 = tpu.matmul %37, %39, %cst_24 {dimension_numbers = #tpu.dot_dimension_numbers<[1], [0], [0], [1], [0, 0, 1, 1], [], []>} : vector<16x8xf32>, vector<8x32xf32>, vector<16x32xf32> -> vector<16x32xf32>
    %cst_25 = arith.constant dense<0xFF800000> : vector<16xf32>
    %41 = vector.multi_reduction <maximumf>, %40, %cst_25 [1] : vector<16x32xf32> to vector<16xf32>
    %42 = vector.shape_cast %41 : vector<16xf32> to vector<16x1xf32>
    %43 = vector.broadcast %42 : vector<16x1xf32> to vector<16x32xf32>
    %44 = arith.subf %40, %43 : vector<16x32xf32>
    %45 = math.exp %44 : vector<16x32xf32>
    %cst_26 = arith.constant dense<0.000000e+00> : vector<16xf32>
    %46 = vector.multi_reduction <add>, %45, %cst_26 [1] : vector<16x32xf32> to vector<16xf32>
    %47 = vector.shape_cast %46 : vector<16xf32> to vector<16x1xf32>
    %48 = tpu.reciprocal %47 : vector<16x1xf32> -> vector<16x1xf32>
    %49 = vector.broadcast %48 : vector<16x1xf32> to vector<16x32xf32>
    %50 = arith.mulf %45, %49 : vector<16x32xf32>
    %c1_27 = arith.constant 1 : index
    %c0_28 = arith.constant 0 : index
    %c0_29 = arith.constant 0 : index
    %51 = vector.load %arg20[%c1_27, %c0_28, %c0_29] : memref<4x32x8xf32, #tpu.memory_space<vmem>>, vector<1x32x8xf32>
    %52 = vector.shape_cast %51 : vector<1x32x8xf32> to vector<32x8xf32>
    %cst_30 = arith.constant dense<0.000000e+00> : vector<16x8xf32>
    %53 = tpu.matmul %50, %52, %cst_30 {dimension_numbers = #tpu.dot_dimension_numbers<[1], [0], [0], [1], [0, 0, 1, 1], [], []>} : vector<16x32xf32>, vector<32x8xf32>, vector<16x8xf32> -> vector<16x8xf32>
    %c1_31 = arith.constant 1 : index
    %c0_32 = arith.constant 0 : index
    %c0_33 = arith.constant 0 : index
    %54 = vector.load %arg9[%c1_31, %c0_32, %c0_33] : memref<4x8x32xf32, #tpu.memory_space<vmem>>, vector<1x8x32xf32>
    %55 = vector.shape_cast %54 : vector<1x8x32xf32> to vector<8x32xf32>
    %cst_34 = arith.constant dense<0.000000e+00> : vector<16x32xf32>
    %56 = tpu.matmul %53, %55, %cst_34 {dimension_numbers = #tpu.dot_dimension_numbers<[1], [0], [0], [1], [0, 0, 1, 1], [], []>} : vector<16x8xf32>, vector<8x32xf32>, vector<16x32xf32> -> vector<16x32xf32>
    %57 = arith.addf %36, %56 : vector<16x32xf32>
    %58 = vector.extract_strided_slice %14 {offsets = [0, 16], sizes = [16, 8], strides = [1, 1]} : vector<16x32xf32> to vector<16x8xf32>
    %c2 = arith.constant 2 : index
    %c0_35 = arith.constant 0 : index
    %c0_36 = arith.constant 0 : index
    %59 = vector.load %arg19[%c2, %c0_35, %c0_36] : memref<4x8x32xf32, #tpu.memory_space<vmem>>, vector<1x8x32xf32>
    %60 = vector.shape_cast %59 : vector<1x8x32xf32> to vector<8x32xf32>
    %cst_37 = arith.constant dense<0.000000e+00> : vector<16x32xf32>
    %61 = tpu.matmul %58, %60, %cst_37 {dimension_numbers = #tpu.dot_dimension_numbers<[1], [0], [0], [1], [0, 0, 1, 1], [], []>} : vector<16x8xf32>, vector<8x32xf32>, vector<16x32xf32> -> vector<16x32xf32>
    %cst_38 = arith.constant dense<0xFF800000> : vector<16xf32>
    %62 = vector.multi_reduction <maximumf>, %61, %cst_38 [1] : vector<16x32xf32> to vector<16xf32>
    %63 = vector.shape_cast %62 : vector<16xf32> to vector<16x1xf32>
    %64 = vector.broadcast %63 : vector<16x1xf32> to vector<16x32xf32>
    %65 = arith.subf %61, %64 : vector<16x32xf32>
    %66 = math.exp %65 : vector<16x32xf32>
    %cst_39 = arith.constant dense<0.000000e+00> : vector<16xf32>
    %67 = vector.multi_reduction <add>, %66, %cst_39 [1] : vector<16x32xf32> to vector<16xf32>
    %68 = vector.shape_cast %67 : vector<16xf32> to vector<16x1xf32>
    %69 = tpu.reciprocal %68 : vector<16x1xf32> -> vector<16x1xf32>
    %70 = vector.broadcast %69 : vector<16x1xf32> to vector<16x32xf32>
    %71 = arith.mulf %66, %70 : vector<16x32xf32>
    %c2_40 = arith.constant 2 : index
    %c0_41 = arith.constant 0 : index
    %c0_42 = arith.constant 0 : index
    %72 = vector.load %arg20[%c2_40, %c0_41, %c0_42] : memref<4x32x8xf32, #tpu.memory_space<vmem>>, vector<1x32x8xf32>
    %73 = vector.shape_cast %72 : vector<1x32x8xf32> to vector<32x8xf32>
    %cst_43 = arith.constant dense<0.000000e+00> : vector<16x8xf32>
    %74 = tpu.matmul %71, %73, %cst_43 {dimension_numbers = #tpu.dot_dimension_numbers<[1], [0], [0], [1], [0, 0, 1, 1], [], []>} : vector<16x32xf32>, vector<32x8xf32>, vector<16x8xf32> -> vector<16x8xf32>
    %c2_44 = arith.constant 2 : index
    %c0_45 = arith.constant 0 : index
    %c0_46 = arith.constant 0 : index
    %75 = vector.load %arg9[%c2_44, %c0_45, %c0_46] : memref<4x8x32xf32, #tpu.memory_space<vmem>>, vector<1x8x32xf32>
    %76 = vector.shape_cast %75 : vector<1x8x32xf32> to vector<8x32xf32>
    %cst_47 = arith.constant dense<0.000000e+00> : vector<16x32xf32>
    %77 = tpu.matmul %74, %76, %cst_47 {dimension_numbers = #tpu.dot_dimension_numbers<[1], [0], [0], [1], [0, 0, 1, 1], [], []>} : vector<16x8xf32>, vector<8x32xf32>, vector<16x32xf32> -> vector<16x32xf32>
    %78 = arith.addf %57, %77 : vector<16x32xf32>
    %79 = vector.extract_strided_slice %14 {offsets = [0, 24], sizes = [16, 8], strides = [1, 1]} : vector<16x32xf32> to vector<16x8xf32>
    %c3 = arith.constant 3 : index
    %c0_48 = arith.constant 0 : index
    %c0_49 = arith.constant 0 : index
    %80 = vector.load %arg19[%c3, %c0_48, %c0_49] : memref<4x8x32xf32, #tpu.memory_space<vmem>>, vector<1x8x32xf32>
    %81 = vector.shape_cast %80 : vector<1x8x32xf32> to vector<8x32xf32>
    %cst_50 = arith.constant dense<0.000000e+00> : vector<16x32xf32>
    %82 = tpu.matmul %79, %81, %cst_50 {dimension_numbers = #tpu.dot_dimension_numbers<[1], [0], [0], [1], [0, 0, 1, 1], [], []>} : vector<16x8xf32>, vector<8x32xf32>, vector<16x32xf32> -> vector<16x32xf32>
    %cst_51 = arith.constant dense<0xFF800000> : vector<16xf32>
    %83 = vector.multi_reduction <maximumf>, %82, %cst_51 [1] : vector<16x32xf32> to vector<16xf32>
    %84 = vector.shape_cast %83 : vector<16xf32> to vector<16x1xf32>
    %85 = vector.broadcast %84 : vector<16x1xf32> to vector<16x32xf32>
    %86 = arith.subf %82, %85 : vector<16x32xf32>
    %87 = math.exp %86 : vector<16x32xf32>
    %cst_52 = arith.constant dense<0.000000e+00> : vector<16xf32>
    %88 = vector.multi_reduction <add>, %87, %cst_52 [1] : vector<16x32xf32> to vector<16xf32>
    %89 = vector.shape_cast %88 : vector<16xf32> to vector<16x1xf32>
    %90 = tpu.reciprocal %89 : vector<16x1xf32> -> vector<16x1xf32>
    %91 = vector.broadcast %90 : vector<16x1xf32> to vector<16x32xf32>
    %92 = arith.mulf %87, %91 : vector<16x32xf32>
    %c3_53 = arith.constant 3 : index
    %c0_54 = arith.constant 0 : index
    %c0_55 = arith.constant 0 : index
    %93 = vector.load %arg20[%c3_53, %c0_54, %c0_55] : memref<4x32x8xf32, #tpu.memory_space<vmem>>, vector<1x32x8xf32>
    %94 = vector.shape_cast %93 : vector<1x32x8xf32> to vector<32x8xf32>
    %cst_56 = arith.constant dense<0.000000e+00> : vector<16x8xf32>
    %95 = tpu.matmul %92, %94, %cst_56 {dimension_numbers = #tpu.dot_dimension_numbers<[1], [0], [0], [1], [0, 0, 1, 1], [], []>} : vector<16x32xf32>, vector<32x8xf32>, vector<16x8xf32> -> vector<16x8xf32>
    %c3_57 = arith.constant 3 : index
    %c0_58 = arith.constant 0 : index
    %c0_59 = arith.constant 0 : index
    %96 = vector.load %arg9[%c3_57, %c0_58, %c0_59] : memref<4x8x32xf32, #tpu.memory_space<vmem>>, vector<1x8x32xf32>
    %97 = vector.shape_cast %96 : vector<1x8x32xf32> to vector<8x32xf32>
    %cst_60 = arith.constant dense<0.000000e+00> : vector<16x32xf32>
    %98 = tpu.matmul %95, %97, %cst_60 {dimension_numbers = #tpu.dot_dimension_numbers<[1], [0], [0], [1], [0, 0, 1, 1], [], []>} : vector<16x8xf32>, vector<8x32xf32>, vector<16x32xf32> -> vector<16x32xf32>
    %99 = arith.addf %78, %98 : vector<16x32xf32>
    %c0_61 = arith.constant 0 : index
    %c0_62 = arith.constant 0 : index
    %100 = vector.load %arg10[%c0_61, %c0_62] : memref<1x32xf32, #tpu.memory_space<vmem>>, vector<1x32xf32>
    %101 = vector.broadcast %100 : vector<1x32xf32> to vector<16x32xf32>
    %102 = arith.addf %99, %101 : vector<16x32xf32>
    %103 = arith.addf %7, %102 : vector<16x32xf32>
    %cst_63 = arith.constant dense<0.000000e+00> : vector<16xf32>
    %104 = vector.multi_reduction <add>, %103, %cst_63 [1] : vector<16x32xf32> to vector<16xf32>
    %105 = vector.shape_cast %104 : vector<16xf32> to vector<16x1xf32>
    %cst_64 = arith.constant 3.200000e+01 : f32
    %106 = vector.broadcast %cst_64 : f32 to vector<16x1xf32>
    %107 = arith.divf %105, %106 : vector<16x1xf32>
    %108 = vector.broadcast %107 : vector<16x1xf32> to vector<16x32xf32>
    %109 = arith.subf %103, %108 : vector<16x32xf32>
    %110 = arith.mulf %109, %109 : vector<16x32xf32>
    %cst_65 = arith.constant dense<0.000000e+00> : vector<16xf32>
    %111 = vector.multi_reduction <add>, %110, %cst_65 [1] : vector<16x32xf32> to vector<16xf32>
    %112 = vector.shape_cast %111 : vector<16xf32> to vector<16x1xf32>
    %cst_66 = arith.constant 3.200000e+01 : f32
    %113 = vector.broadcast %cst_66 : f32 to vector<16x1xf32>
    %114 = arith.divf %112, %113 : vector<16x1xf32>
    %115 = vector.broadcast %107 : vector<16x1xf32> to vector<16x32xf32>
    %116 = arith.subf %103, %115 : vector<16x32xf32>
    %cst_67 = arith.constant 9.99999997E-7 : f32
    %117 = vector.broadcast %cst_67 : f32 to vector<16x1xf32>
    %118 = arith.addf %114, %117 : vector<16x1xf32>
    %119 = math.rsqrt %118 : vector<16x1xf32>
    %120 = vector.broadcast %119 : vector<16x1xf32> to vector<16x32xf32>
    %121 = arith.mulf %116, %120 : vector<16x32xf32>
    %c0_68 = arith.constant 0 : index
    %c0_69 = arith.constant 0 : index
    %122 = vector.load %arg11[%c0_68, %c0_69] : memref<1x32xf32, #tpu.memory_space<vmem>>, vector<1x32xf32>
    %123 = vector.broadcast %122 : vector<1x32xf32> to vector<16x32xf32>
    %124 = arith.mulf %121, %123 : vector<16x32xf32>
    %c0_70 = arith.constant 0 : index
    %c0_71 = arith.constant 0 : index
    %125 = vector.load %arg12[%c0_70, %c0_71] : memref<1x32xf32, #tpu.memory_space<vmem>>, vector<1x32xf32>
    %126 = vector.broadcast %125 : vector<1x32xf32> to vector<16x32xf32>
    %127 = arith.addf %124, %126 : vector<16x32xf32>
    %c0_72 = arith.constant 0 : index
    %c0_73 = arith.constant 0 : index
    %128 = vector.load %arg13[%c0_72, %c0_73] : memref<32x64xf32, #tpu.memory_space<vmem>>, vector<32x64xf32>
    %cst_74 = arith.constant dense<0.000000e+00> : vector<16x64xf32>
    %129 = tpu.matmul %127, %128, %cst_74 {dimension_numbers = #tpu.dot_dimension_numbers<[1], [0], [0], [1], [0, 0, 1, 1], [], []>} : vector<16x32xf32>, vector<32x64xf32>, vector<16x64xf32> -> vector<16x64xf32>
    %c0_75 = arith.constant 0 : index
    %c0_76 = arith.constant 0 : index
    %130 = vector.load %arg14[%c0_75, %c0_76] : memref<1x64xf32, #tpu.memory_space<vmem>>, vector<1x64xf32>
    %131 = vector.broadcast %130 : vector<1x64xf32> to vector<16x64xf32>
    %132 = arith.addf %129, %131 : vector<16x64xf32>
    %cst_77 = arith.constant 5.000000e-01 : f32
    %133 = vector.broadcast %cst_77 : f32 to vector<16x64xf32>
    %134 = arith.mulf %133, %132 : vector<16x64xf32>
    %135 = arith.mulf %132, %132 : vector<16x64xf32>
    %136 = arith.mulf %135, %132 : vector<16x64xf32>
    %cst_78 = arith.constant 4.471500e-02 : f32
    %137 = vector.broadcast %cst_78 : f32 to vector<16x64xf32>
    %138 = arith.mulf %137, %136 : vector<16x64xf32>
    %139 = arith.addf %132, %138 : vector<16x64xf32>
    %cst_79 = arith.constant 0.797884583 : f32
    %140 = vector.broadcast %cst_79 : f32 to vector<16x64xf32>
    %141 = arith.mulf %140, %139 : vector<16x64xf32>
    %142 = math.tanh %141 : vector<16x64xf32>
    %cst_80 = arith.constant 1.000000e+00 : f32
    %143 = vector.broadcast %cst_80 : f32 to vector<16x64xf32>
    %144 = arith.addf %143, %142 : vector<16x64xf32>
    %145 = arith.mulf %134, %144 : vector<16x64xf32>
    %c0_81 = arith.constant 0 : index
    %c0_82 = arith.constant 0 : index
    %146 = vector.load %arg15[%c0_81, %c0_82] : memref<64x32xf32, #tpu.memory_space<vmem>>, vector<64x32xf32>
    %cst_83 = arith.constant dense<0.000000e+00> : vector<16x32xf32>
    %147 = tpu.matmul %145, %146, %cst_83 {dimension_numbers = #tpu.dot_dimension_numbers<[1], [0], [0], [1], [0, 0, 1, 1], [], []>} : vector<16x64xf32>, vector<64x32xf32>, vector<16x32xf32> -> vector<16x32xf32>
    %c0_84 = arith.constant 0 : index
    %c0_85 = arith.constant 0 : index
    %148 = vector.load %arg16[%c0_84, %c0_85] : memref<1x32xf32, #tpu.memory_space<vmem>>, vector<1x32xf32>
    %149 = vector.broadcast %148 : vector<1x32xf32> to vector<16x32xf32>
    %150 = arith.addf %147, %149 : vector<16x32xf32>
    %151 = arith.addf %103, %150 : vector<16x32xf32>
    %c0_86 = arith.constant 0 : index
    %c0_87 = arith.constant 0 : index
    %c0_88 = arith.constant 0 : index
    %152 = vector.load %arg17[%c0_86, %c0_87, %c0_88] : memref<1x16x32xf32, #tpu.memory_space<vmem>>, vector<1x16x32xf32>
    %153 = vector.shape_cast %152 : vector<1x16x32xf32> to vector<16x32xf32>
    %154 = vector.shape_cast %151 : vector<16x32xf32> to vector<1x16x32xf32>
    tpu.vector_store %arg17[%c0_86, %c0_87, %c0_88], %154 {strides = array<i32>} : memref<1x16x32xf32, #tpu.memory_space<vmem>>, vector<1x16x32xf32>,
    return
  }
  func.func @transform_0(%arg0: i32, %arg1: i32) -> (i32, i32, i32) {
    %c0_i32 = arith.constant 0 : i32
    %c0_i32_0 = arith.constant 0 : i32
    %c0_i32_1 = arith.constant 0 : i32
    return %arg0, %c0_i32, %c0_i32_0 : i32, i32, i32
  }
  func.func @transform_1(%arg0: i32, %arg1: i32) -> (i32, i32) {
    %c0_i32 = arith.constant 0 : i32
    %c0_i32_0 = arith.constant 0 : i32
    %c0_i32_1 = arith.constant 0 : i32
    return %c0_i32, %c0_i32_0 : i32, i32
  }
  func.func @transform_2(%arg0: i32, %arg1: i32) -> (i32, i32) {
    %c0_i32 = arith.constant 0 : i32
    %c0_i32_0 = arith.constant 0 : i32
    %c0_i32_1 = arith.constant 0 : i32
    return %c0_i32, %c0_i32_0 : i32, i32
  }
  func.func @transform_3(%arg0: i32, %arg1: i32) -> (i32, i32) {
    %c0_i32 = arith.constant 0 : i32
    %c0_i32_0 = arith.constant 0 : i32
    %c0_i32_1 = arith.constant 0 : i32
    return %c0_i32, %c0_i32_0 : i32, i32
  }
  func.func @transform_4(%arg0: i32, %arg1: i32) -> (i32, i32) {
    %c0_i32 = arith.constant 0 : i32
    %c0_i32_0 = arith.constant 0 : i32
    %c0_i32_1 = arith.constant 0 : i32
    return %c0_i32, %c0_i32_0 : i32, i32
  }
  func.func @transform_5(%arg0: i32, %arg1: i32) -> (i32, i32) {
    %c0_i32 = arith.constant 0 : i32
    %c0_i32_0 = arith.constant 0 : i32
    %c0_i32_1 = arith.constant 0 : i32
    return %c0_i32, %c0_i32_0 : i32, i32
  }
  func.func @transform_6(%arg0: i32, %arg1: i32) -> (i32, i32) {
    %c0_i32 = arith.constant 0 : i32
    %c0_i32_0 = arith.constant 0 : i32
    %c0_i32_1 = arith.constant 0 : i32
    return %c0_i32, %c0_i32_0 : i32, i32
  }
  func.func @transform_7(%arg0: i32, %arg1: i32) -> (i32, i32, i32) {
    %c0_i32 = arith.constant 0 : i32
    %c0_i32_0 = arith.constant 0 : i32
    %c0_i32_1 = arith.constant 0 : i32
    %c0_i32_2 = arith.constant 0 : i32
    return %c0_i32, %c0_i32_0, %c0_i32_1 : i32, i32, i32
  }
  func.func @transform_8(%arg0: i32, %arg1: i32) -> (i32, i32) {
    %c0_i32 = arith.constant 0 : i32
    %c0_i32_0 = arith.constant 0 : i32
    %c0_i32_1 = arith.constant 0 : i32
    return %c0_i32, %c0_i32_0 : i32, i32
  }
  func.func @transform_9(%arg0: i32, %arg1: i32) -> (i32, i32) {
    %c0_i32 = arith.constant 0 : i32
    %c0_i32_0 = arith.constant 0 : i32
    %c0_i32_1 = arith.constant 0 : i32
    return %c0_i32, %c0_i32_0 : i32, i32
  }
  func.func @transform_10(%arg0: i32, %arg1: i32) -> (i32, i32) {
    %c0_i32 = arith.constant 0 : i32
    %c0_i32_0 = arith.constant 0 : i32
    %c0_i32_1 = arith.constant 0 : i32
    return %c0_i32, %c0_i32_0 : i32, i32
  }
  func.func @transform_11(%arg0: i32, %arg1: i32) -> (i32, i32) {
    %c0_i32 = arith.constant 0 : i32
    %c0_i32_0 = arith.constant 0 : i32
    %c0_i32_1 = arith.constant 0 : i32
    return %c0_i32, %c0_i32_0 : i32, i32
  }
  func.func @transform_12(%arg0: i32, %arg1: i32) -> (i32, i32) {
    %c0_i32 = arith.constant 0 : i32
    %c0_i32_0 = arith.constant 0 : i32
    %c0_i32_1 = arith.constant 0 : i32
    return %c0_i32, %c0_i32_0 : i32, i32
  }
  func.func @transform_13(%arg0: i32, %arg1: i32) -> (i32, i32) {
    %c0_i32 = arith.constant 0 : i32
    %c0_i32_0 = arith.constant 0 : i32
    %c0_i32_1 = arith.constant 0 : i32
    return %c0_i32, %c0_i32_0 : i32, i32
  }
  func.func @transform_14(%arg0: i32, %arg1: i32) -> (i32, i32) {
    %c0_i32 = arith.constant 0 : i32
    %c0_i32_0 = arith.constant 0 : i32
    %c0_i32_1 = arith.constant 0 : i32
    return %c0_i32, %c0_i32_0 : i32, i32
  }
  func.func @transform_15(%arg0: i32, %arg1: i32) -> (i32, i32, i32) {
    %c0_i32 = arith.constant 0 : i32
    %c0_i32_0 = arith.constant 0 : i32
    return %arg0, %arg1, %c0_i32 : i32, i32, i32
  }
}

</mosaic_0001>

<llo_original>
// kernel: tpu_custom_call.1
$region0: #{tpu_custom_call.1}
  #allocation0 [shape = 'u32[]', space=smem, size = 0x4, offset = 0x4, fixed_abs, tag = 'smem constant byte address 0x4 - core index']
  #allocation1 [shape = 'u32[144,128]{1,0:T(1,128)}', space=vmem, size = 0x12000, scoped, tag = 'internal scratch']
  #allocation2 [shape = 'f32[32,32]{1,0:T(8,128)}', space=vmem, size = 0x4000, scoped, tag = 'scratch operand']
  #allocation3 [shape = 'f32[4,8,32]{2,1,0:T(8,128)}', space=vmem, size = 0x4000, scoped, tag = 'scratch operand']
  #allocation4 [shape = 'f32[4,32,8]{2,1,0:T(8,128)}', space=vmem, size = 0x10000, scoped, tag = 'scratch operand']
  %s0 = inlined_call_operand.vmem [shape: f32[2,32,32], index: 0, kind: input, shape index: {}]
  %s1 = inlined_call_operand.vmem [shape: f32[1,32], index: 1, kind: input, shape index: {}]
  %s2 = inlined_call_operand.vmem [shape: f32[1,32], index: 2, kind: input, shape index: {}]
  %s3 = inlined_call_operand.vmem [shape: f32[32,32], index: 3, kind: input, shape index: {}]
  %s4 = inlined_call_operand.vmem [shape: f32[1,32], index: 4, kind: input, shape index: {}]
  %s5 = inlined_call_operand.hbm [shape: f32[32,64], index: 5, kind: input, shape index: {}]
  %s6 = inlined_call_operand.vmem [shape: f32[1,64], index: 6, kind: input, shape index: {}]
  %s7 = inlined_call_operand.hbm [shape: f32[4,8,32], index: 7, kind: input, shape index: {}]
  %s8 = inlined_call_operand.vmem [shape: f32[1,32], index: 8, kind: input, shape index: {}]
  %s9 = inlined_call_operand.vmem [shape: f32[1,32], index: 9, kind: input, shape index: {}]
  %s10 = inlined_call_operand.vmem [shape: f32[1,32], index: 10, kind: input, shape index: {}]
  %s11 = inlined_call_operand.hbm [shape: f32[32,64], index: 11, kind: input, shape index: {}]
  %s12 = inlined_call_operand.vmem [shape: f32[1,64], index: 12, kind: input, shape index: {}]
  %s13 = inlined_call_operand.vmem [shape: f32[64,32], index: 13, kind: input, shape index: {}]
  %s14 = inlined_call_operand.vmem [shape: f32[1,32], index: 14, kind: input, shape index: {}]
  %s15 = inlined_call_operand.hbm [shape: f32[2,32,32], index: 15, kind: output, shape index: {}]
  %s16 = sld [smem:[#allocation0]]
  $region109: #{tpu_custom_call.1} parent=0
    _
  %s18 = ssub.s32 1, %s16
  %s19 = scalar_select 0, %s18, %s16
  $region1: #{tpu_custom_call.1} parent=0
    #allocation5 [shape = 'u8[16384]{0}', space=vmem, size = 0x4000, scoped, tag = 'input window, operand 5, single buffered']
    #allocation6 [shape = 's32[2]{0}', space=sflag, size = 0x8, scoped, tag = 'scoped memory for tpu_custom_call.1']
    #allocation7 [shape = 's32[2]{0}', space=sflag, size = 0x8, scoped, tag = 'scoped memory for tpu_custom_call.1']
    #allocation8 [shape = 'u8[16384]{0}', space=vmem, size = 0x4000, scoped, tag = 'input window, operand 7, single buffered']
    #allocation9 [shape = 's32[1]{0}', space=sflag, size = 0x4, scoped, tag = 'scoped memory for tpu_custom_call.1']
    #allocation10 [shape = 'u8[16384]{0}', space=vmem, size = 0x4000, scoped, tag = 'input window, operand 11, single buffered']
    #allocation11 [shape = 'u8[16384]{0}', space=vmem, size = 0x4000, scoped, tag = 'output window, operand 0']
    %20 = vsyncpa [#allocation6], 0
    %21 = vsyncpa [#allocation9], 0
    %22 = vsyncpa [#allocation7], 0
    %s23 = scalar_lea.sflag [#allocation7], 1
    %24 = vsyncpa %s23, 0
    loop: start=0, step=1, limit=6
    $region2: #{tpu_custom_call.1} parent=1 // loop_pre_header
      _
    $region3: #{tpu_custom_call.1} parent=1 // loop_header
      %s26 = sphi 0, %s30
      %p27 = scmp.ge.s32.totalorder %s26, 6
      %s33 = sphi 0, %s45
      %s34 = sphi 0, %s41
      %s35 = sphi 0, %s33
      %s36 = sphi 0, %s34
      %s37 = sphi 0, %s35
      %s38 = sphi 0, %s36
      %s48 = sphi 0, %s50
      %s51 = sphi 0, %s48
      %s52 = sphi 0, %s51
      %s68 = sphi 0, %s52
      %s72 = sphi 0, %s72
      %s74 = sphi 0, %s72
      %s75 = sphi 0, %s74
      %s89 = sphi 0, %s75
      %s93 = sphi 0, %s93
      %s95 = sphi 0, %s93
      %s96 = sphi 0, %s95
      %s110 = sphi 0, %s96
      %s114 = sphi 0, %s114
      %s116 = sphi 0, %s114
      %s117 = sphi 0, %s116
      %s131 = sphi 0, %s117
      %s135 = sphi 0, %s135
      %s137 = sphi 0, %s135
      %s138 = sphi 0, %s137
      %s152 = sphi 0, %s138
      %s156 = sphi 0, %s156
      %s158 = sphi 0, %s156
      %s159 = sphi 0, %s158
      %s173 = sphi 0, %s159
      %s177 = sphi 0, %s177
      %s179 = sphi 0, %s177
      %s180 = sphi 0, %s179
      %s194 = sphi 0, %s180
      %s198 = sphi 0, %s198
      %s200 = sphi 0, %s198
      %s201 = sphi 0, %s200
      %s215 = sphi 0, %s201
      %s219 = sphi 0, %s219
      %s221 = sphi 0, %s219
      %s222 = sphi 0, %s221
      %s236 = sphi 0, %s222
      %s240 = sphi 0, %s240
      %s242 = sphi 0, %s240
      %s243 = sphi 0, %s242
      %s257 = sphi 0, %s243
      %s261 = sphi 0, %s261
      %s263 = sphi 0, %s261
      %s264 = sphi 0, %s263
      %s278 = sphi 0, %s264
      %s282 = sphi 0, %s282
      %s284 = sphi 0, %s282
      %s285 = sphi 0, %s284
      %s299 = sphi 0, %s285
      %s303 = sphi 0, %s303
      %s305 = sphi 0, %s303
      %s306 = sphi 0, %s305
      %s320 = sphi 0, %s306
      %s324 = sphi 0, %s324
      %s326 = sphi 0, %s324
      %s327 = sphi 0, %s326
      %s341 = sphi 0, %s327
      %s345 = sphi 0, %s345
      %s347 = sphi 0, %s345
      %s348 = sphi 0, %s347
      %s362 = sphi 0, %s348
      %s370 = sphi 0, %s372
      %s373 = sphi 0, %s370
      %s374 = sphi 0, %s373
      %s390 = sphi 0, %s374
    $region4: #{tpu_custom_call.1} parent=1 // loop_header_branch
      %29 = sbr.rel (%p27) target = $region8
    $region5: #{tpu_custom_call.1} parent=1 // loop_body
      %s31 = ssub.s32 %s26, 1
      %s32 = ssub.s32 %s26, 2
      %s39 = sadd.s32 1, %s34
      %p40 = scmp.ge.s32.totalorder %s39, 2
      %s41 = scalar_select %p40, 0, %s39
      %s42 = sadd.s32 1, %s33
      %s43 = scalar_select %p40, %s42, %s33
      %p44 = scmp.ge.s32.totalorder %s43, 2
      %s45 = scalar_select %p44, 0, %s43
      %s46 = ssub.s32 %s33, %s45
      %p47 = scmp.eq.s32.totalorder %s46, 0
      %s49 = sadd.s32 %s48, 1
      %s50 = scalar_select %p47, %s48, %s49
      %p53 = pneg %p47
      %p54 = scmp.eq.s32.totalorder %s26, 3
      %p55 = por %p53, %p54
      %p56 = scmp.ne.s32.totalorder %s48, %s51
      %p57 = scmp.eq.s32.totalorder %s26, 0
      %p58 = por %p56, %p57
      %p59 = scmp.ne.s32.totalorder %s48, %s51
      %p60 = scmp.eq.s32.totalorder %s31, 3
      %p61 = por %p59, %p60
      %p62 = scmp.ne.s32.totalorder %s51, %s52
      %p63 = scmp.eq.s32.totalorder %s31, 0
      %p64 = por %p62, %p63
      %p65 = scmp.ne.s32.totalorder %s51, %s52
      %p66 = scmp.eq.s32.totalorder %s32, 3
      %p67 = por %p65, %p66
      %p69 = scmp.ne.s32.totalorder %s52, %s68
      %p70 = scmp.eq.s32.totalorder %s32, 0
      %p71 = por %p69, %p70
      %s73 = sadd.s32 %s72, 1
      %p76 = scmp.eq.s32.totalorder %s26, 3
      %p77 = scmp.ne.s32.totalorder %s72, %s74
      %p78 = scmp.eq.s32.totalorder %s26, 0
      %p79 = por %p77, %p78
      %p80 = scmp.ne.s32.totalorder %s72, %s74
      %p81 = scmp.eq.s32.totalorder %s31, 3
      %p82 = por %p80, %p81
      %p83 = scmp.ne.s32.totalorder %s74, %s75
      %p84 = scmp.eq.s32.totalorder %s31, 0
      %p85 = por %p83, %p84
      %p86 = scmp.ne.s32.totalorder %s74, %s75
      %p87 = scmp.eq.s32.totalorder %s32, 3
      %p88 = por %p86, %p87
      %p90 = scmp.ne.s32.totalorder %s75, %s89
      %p91 = scmp.eq.s32.totalorder %s32, 0
      %p92 = por %p90, %p91
      %s94 = sadd.s32 %s93, 1
      %p97 = scmp.eq.s32.totalorder %s26, 3
      %p98 = scmp.ne.s32.totalorder %s93, %s95
      %p99 = scmp.eq.s32.totalorder %s26, 0
      %p100 = por %p98, %p99
      %p101 = scmp.ne.s32.totalorder %s93, %s95
      %p102 = scmp.eq.s32.totalorder %s31, 3
      %p103 = por %p101, %p102
      %p104 = scmp.ne.s32.totalorder %s95, %s96
      %p105 = scmp.eq.s32.totalorder %s31, 0
      %p106 = por %p104, %p105
      %p107 = scmp.ne.s32.totalorder %s95, %s96
      %p108 = scmp.eq.s32.totalorder %s32, 3
      %p109 = por %p107, %p108
      %p111 = scmp.ne.s32.totalorder %s96, %s110
      %p112 = scmp.eq.s32.totalorder %s32, 0
      %p113 = por %p111, %p112
      %s115 = sadd.s32 %s114, 1
      %p118 = scmp.eq.s32.totalorder %s26, 3
      %p119 = scmp.ne.s32.totalorder %s114, %s116
      %p120 = scmp.eq.s32.totalorder %s26, 0
      %p121 = por %p119, %p120
      %p122 = scmp.ne.s32.totalorder %s114, %s116
      %p123 = scmp.eq.s32.totalorder %s31, 3
      %p124 = por %p122, %p123
      %p125 = scmp.ne.s32.totalorder %s116, %s117
      %p126 = scmp.eq.s32.totalorder %s31, 0
      %p127 = por %p125, %p126
      %p128 = scmp.ne.s32.totalorder %s116, %s117
      %p129 = scmp.eq.s32.totalorder %s32, 3
      %p130 = por %p128, %p129
      %p132 = scmp.ne.s32.totalorder %s117, %s131
      %p133 = scmp.eq.s32.totalorder %s32, 0
      %p134 = por %p132, %p133
      %s136 = sadd.s32 %s135, 1
      %p139 = scmp.eq.s32.totalorder %s26, 3
      %p140 = scmp.ne.s32.totalorder %s135, %s137
      %p141 = scmp.eq.s32.totalorder %s26, 0
      %p142 = por %p140, %p141
      %p143 = scmp.ne.s32.totalorder %s135, %s137
      %p144 = scmp.eq.s32.totalorder %s31, 3
      %p145 = por %p143, %p144
      %p146 = scmp.ne.s32.totalorder %s137, %s138
      %p147 = scmp.eq.s32.totalorder %s31, 0
      %p148 = por %p146, %p147
      %p149 = scmp.ne.s32.totalorder %s137, %s138
      %p150 = scmp.eq.s32.totalorder %s32, 3
      %p151 = por %p149, %p150
      %p153 = scmp.ne.s32.totalorder %s138, %s152
      %p154 = scmp.eq.s32.totalorder %s32, 0
      %p155 = por %p153, %p154
      %s157 = sadd.s32 %s156, 1
      %p160 = scmp.eq.s32.totalorder %s26, 3
      %p161 = scmp.ne.s32.totalorder %s156, %s158
      %p162 = scmp.eq.s32.totalorder %s26, 0
      %p163 = por %p161, %p162
      %p164 = scmp.ne.s32.totalorder %s156, %s158
      %p165 = scmp.eq.s32.totalorder %s31, 3
      %p166 = por %p164, %p165
      %p167 = scmp.ne.s32.totalorder %s158, %s159
      %p168 = scmp.eq.s32.totalorder %s31, 0
      %p169 = por %p167, %p168
      %p170 = scmp.ne.s32.totalorder %s158, %s159
      %p171 = scmp.eq.s32.totalorder %s32, 3
      %p172 = por %p170, %p171
      %p174 = scmp.ne.s32.totalorder %s159, %s173
      %p175 = scmp.eq.s32.totalorder %s32, 0
      %p176 = por %p174, %p175
      %s178 = sadd.s32 %s177, 1
      %p181 = scmp.eq.s32.totalorder %s26, 3
      %p182 = scmp.ne.s32.totalorder %s177, %s179
      %p183 = scmp.eq.s32.totalorder %s26, 0
      %p184 = por %p182, %p183
      %p185 = scmp.ne.s32.totalorder %s177, %s179
      %p186 = scmp.eq.s32.totalorder %s31, 3
      %p187 = por %p185, %p186
      %p188 = scmp.ne.s32.totalorder %s179, %s180
      %p189 = scmp.eq.s32.totalorder %s31, 0
      %p190 = por %p188, %p189
      %p191 = scmp.ne.s32.totalorder %s179, %s180
      %p192 = scmp.eq.s32.totalorder %s32, 3
      %p193 = por %p191, %p192
      %p195 = scmp.ne.s32.totalorder %s180, %s194
      %p196 = scmp.eq.s32.totalorder %s32, 0
      %p197 = por %p195, %p196
      %s199 = sadd.s32 %s198, 1
      %p202 = scmp.eq.s32.totalorder %s26, 3
      %p203 = scmp.ne.s32.totalorder %s198, %s200
      %p204 = scmp.eq.s32.totalorder %s26, 0
      %p205 = por %p203, %p204
      %p206 = scmp.ne.s32.totalorder %s198, %s200
      %p207 = scmp.eq.s32.totalorder %s31, 3
      %p208 = por %p206, %p207
      %p209 = scmp.ne.s32.totalorder %s200, %s201
      %p210 = scmp.eq.s32.totalorder %s31, 0
      %p211 = por %p209, %p210
      %p212 = scmp.ne.s32.totalorder %s200, %s201
      %p213 = scmp.eq.s32.totalorder %s32, 3
      %p214 = por %p212, %p213
      %p216 = scmp.ne.s32.totalorder %s201, %s215
      %p217 = scmp.eq.s32.totalorder %s32, 0
      %p218 = por %p216, %p217
      %s220 = sadd.s32 %s219, 1
      %p223 = scmp.eq.s32.totalorder %s26, 3
      %p224 = scmp.ne.s32.totalorder %s219, %s221
      %p225 = scmp.eq.s32.totalorder %s26, 0
      %p226 = por %p224, %p225
      %p227 = scmp.ne.s32.totalorder %s219, %s221
      %p228 = scmp.eq.s32.totalorder %s31, 3
      %p229 = por %p227, %p228
      %p230 = scmp.ne.s32.totalorder %s221, %s222
      %p231 = scmp.eq.s32.totalorder %s31, 0
      %p232 = por %p230, %p231
      %p233 = scmp.ne.s32.totalorder %s221, %s222
      %p234 = scmp.eq.s32.totalorder %s32, 3
      %p235 = por %p233, %p234
      %p237 = scmp.ne.s32.totalorder %s222, %s236
      %p238 = scmp.eq.s32.totalorder %s32, 0
      %p239 = por %p237, %p238
      %s241 = sadd.s32 %s240, 1
      %p244 = scmp.eq.s32.totalorder %s26, 3
      %p245 = scmp.ne.s32.totalorder %s240, %s242
      %p246 = scmp.eq.s32.totalorder %s26, 0
      %p247 = por %p245, %p246
      %p248 = scmp.ne.s32.totalorder %s240, %s242
      %p249 = scmp.eq.s32.totalorder %s31, 3
      %p250 = por %p248, %p249
      %p251 = scmp.ne.s32.totalorder %s242, %s243
      %p252 = scmp.eq.s32.totalorder %s31, 0
      %p253 = por %p251, %p252
      %p254 = scmp.ne.s32.totalorder %s242, %s243
      %p255 = scmp.eq.s32.totalorder %s32, 3
      %p256 = por %p254, %p255
      %p258 = scmp.ne.s32.totalorder %s243, %s257
      %p259 = scmp.eq.s32.totalorder %s32, 0
      %p260 = por %p258, %p259
      %s262 = sadd.s32 %s261, 1
      %p265 = scmp.eq.s32.totalorder %s26, 3
      %p266 = scmp.ne.s32.totalorder %s261, %s263
      %p267 = scmp.eq.s32.totalorder %s26, 0
      %p268 = por %p266, %p267
      %p269 = scmp.ne.s32.totalorder %s261, %s263
      %p270 = scmp.eq.s32.totalorder %s31, 3
      %p271 = por %p269, %p270
      %p272 = scmp.ne.s32.totalorder %s263, %s264
      %p273 = scmp.eq.s32.totalorder %s31, 0
      %p274 = por %p272, %p273
      %p275 = scmp.ne.s32.totalorder %s263, %s264
      %p276 = scmp.eq.s32.totalorder %s32, 3
      %p277 = por %p275, %p276
      %p279 = scmp.ne.s32.totalorder %s264, %s278
      %p280 = scmp.eq.s32.totalorder %s32, 0
      %p281 = por %p279, %p280
      %s283 = sadd.s32 %s282, 1
      %p286 = scmp.eq.s32.totalorder %s26, 3
      %p287 = scmp.ne.s32.totalorder %s282, %s284
      %p288 = scmp.eq.s32.totalorder %s26, 0
      %p289 = por %p287, %p288
      %p290 = scmp.ne.s32.totalorder %s282, %s284
      %p291 = scmp.eq.s32.totalorder %s31, 3
      %p292 = por %p290, %p291
      %p293 = scmp.ne.s32.totalorder %s284, %s285
      %p294 = scmp.eq.s32.totalorder %s31, 0
      %p295 = por %p293, %p294
      %p296 = scmp.ne.s32.totalorder %s284, %s285
      %p297 = scmp.eq.s32.totalorder %s32, 3
      %p298 = por %p296, %p297
      %p300 = scmp.ne.s32.totalorder %s285, %s299
      %p301 = scmp.eq.s32.totalorder %s32, 0
      %p302 = por %p300, %p301
      %s304 = sadd.s32 %s303, 1
      %p307 = scmp.eq.s32.totalorder %s26, 3
      %p308 = scmp.ne.s32.totalorder %s303, %s305
      %p309 = scmp.eq.s32.totalorder %s26, 0
      %p310 = por %p308, %p309
      %p311 = scmp.ne.s32.totalorder %s303, %s305
      %p312 = scmp.eq.s32.totalorder %s31, 3
      %p313 = por %p311, %p312
      %p314 = scmp.ne.s32.totalorder %s305, %s306
      %p315 = scmp.eq.s32.totalorder %s31, 0
      %p316 = por %p314, %p315
      %p317 = scmp.ne.s32.totalorder %s305, %s306
      %p318 = scmp.eq.s32.totalorder %s32, 3
      %p319 = por %p317, %p318
      %p321 = scmp.ne.s32.totalorder %s306, %s320
      %p322 = scmp.eq.s32.totalorder %s32, 0
      %p323 = por %p321, %p322
      %s325 = sadd.s32 %s324, 1
      %p328 = scmp.eq.s32.totalorder %s26, 3
      %p329 = scmp.ne.s32.totalorder %s324, %s326
      %p330 = scmp.eq.s32.totalorder %s26, 0
      %p331 = por %p329, %p330
      %p332 = scmp.ne.s32.totalorder %s324, %s326
      %p333 = scmp.eq.s32.totalorder %s31, 3
      %p334 = por %p332, %p333
      %p335 = scmp.ne.s32.totalorder %s326, %s327
      %p336 = scmp.eq.s32.totalorder %s31, 0
      %p337 = por %p335, %p336
      %p338 = scmp.ne.s32.totalorder %s326, %s327
      %p339 = scmp.eq.s32.totalorder %s32, 3
      %p340 = por %p338, %p339
      %p342 = scmp.ne.s32.totalorder %s327, %s341
      %p343 = scmp.eq.s32.totalorder %s32, 0
      %p344 = por %p342, %p343
      %s346 = sadd.s32 %s345, 1
      %p349 = scmp.eq.s32.totalorder %s26, 3
      %p350 = scmp.ne.s32.totalorder %s345, %s347
      %p351 = scmp.eq.s32.totalorder %s26, 0
      %p352 = por %p350, %p351
      %p353 = scmp.ne.s32.totalorder %s345, %s347
      %p354 = scmp.eq.s32.totalorder %s31, 3
      %p355 = por %p353, %p354
      %p356 = scmp.ne.s32.totalorder %s347, %s348
      %p357 = scmp.eq.s32.totalorder %s31, 0
      %p358 = por %p356, %p357
      %p359 = scmp.ne.s32.totalorder %s347, %s348
      %p360 = scmp.eq.s32.totalorder %s32, 3
      %p361 = por %p359, %p360
      %p363 = scmp.ne.s32.totalorder %s348, %s362
      %p364 = scmp.eq.s32.totalorder %s32, 0
      %p365 = por %p363, %p364
      %s366 = ssub.s32 %s33, %s45
      %s367 = ssub.s32 %s34, %s41
      %s368 = sor.u32 %s366, %s367
      %p369 = scmp.eq.s32.totalorder %s368, 0
      %s371 = sadd.s32 %s370, 1
      %s372 = scalar_select %p369, %s370, %s371
      %p375 = pneg %p369
      %p376 = scmp.eq.s32.totalorder %s26, 3
      %p377 = por %p375, %p376
      %p378 = scmp.ne.s32.totalorder %s370, %s373
      %p379 = scmp.eq.s32.totalorder %s26, 0
      %p380 = por %p378, %p379
      %p381 = scmp.ne.s32.totalorder %s370, %s373
      %p382 = scmp.eq.s32.totalorder %s31, 3
      %p383 = por %p381, %p382
      %p384 = scmp.ne.s32.totalorder %s373, %s374
      %p385 = scmp.eq.s32.totalorder %s31, 0
      %p386 = por %p384, %p385
      %p387 = scmp.ne.s32.totalorder %s373, %s374
      %p388 = scmp.eq.s32.totalorder %s32, 3
      %p389 = por %p387, %p388
      %p391 = scmp.ne.s32.totalorder %s374, %s390
      %p392 = scmp.eq.s32.totalorder %s32, 0
      %p393 = por %p391, %p392
      %p394 = scmp.le.s32.totalorder 1, %s26
      %p395 = scmp.lt.s32.totalorder %s26, 5
      %p396 = pnand %p394, %p395
      %p397 = pneg %p396
      // Predicated region
      $region9: #{tpu_custom_call.1} parent=5 // pred_check
        _
      $region10: #{tpu_custom_call.1} parent=5 // pred_check_branch
        %399 = sbr.rel (%p396) target = $region12
      $region11: #{tpu_custom_call.1} parent=5 // pred_region
        %s400 = ssub.s32 %s26, 1
        // Predicated region
        $region13: #{tpu_custom_call.1} parent=11 // pred_check
          %p401 = pneg %p85
        $region14: #{tpu_custom_call.1} parent=11 // pred_check_branch
          %403 = sbr.rel (%p401) target = $region16
        $region15: #{tpu_custom_call.1} parent=11 // pred_region
          _
        $region16: #{tpu_custom_call.1} parent=11 // pred_fallthru
          _
        // Predicated region
        $region17: #{tpu_custom_call.1} parent=11 // pred_check
          %p404 = pneg %p106
        $region18: #{tpu_custom_call.1} parent=11 // pred_check_branch
          %406 = sbr.rel (%p404) target = $region20
        $region19: #{tpu_custom_call.1} parent=11 // pred_region
          _
        $region20: #{tpu_custom_call.1} parent=11 // pred_fallthru
          _
        // Predicated region
        $region21: #{tpu_custom_call.1} parent=11 // pred_check
          %p407 = pneg %p127
        $region22: #{tpu_custom_call.1} parent=11 // pred_check_branch
          %409 = sbr.rel (%p407) target = $region24
        $region23: #{tpu_custom_call.1} parent=11 // pred_region
          _
        $region24: #{tpu_custom_call.1} parent=11 // pred_fallthru
          _
        // Predicated region
        $region25: #{tpu_custom_call.1} parent=11 // pred_check
          %p410 = pneg %p148
        $region26: #{tpu_custom_call.1} parent=11 // pred_check_branch
          %412 = sbr.rel (%p410) target = $region28
        $region27: #{tpu_custom_call.1} parent=11 // pred_region
          _
        $region28: #{tpu_custom_call.1} parent=11 // pred_fallthru
          _
        // Predicated region
        $region29: #{tpu_custom_call.1} parent=11 // pred_check
          %p413 = pneg %p169
        $region30: #{tpu_custom_call.1} parent=11 // pred_check_branch
          %415 = sbr.rel (%p413) target = $region32
        $region31: #{tpu_custom_call.1} parent=11 // pred_region
          %s417 = ssub.s32 512, 512
          %418 = vsyncadd [#allocation6], %s417
          %s419 = sshll.u32 [#allocation5], 4
          %s420 = int_to_ptr.vmem [resolvable:$true] %s419
          %425 = dma.hbm_to_vmem [thread:$0]  %s5, 512, %s420, [#allocation6], 128, 128, 8
        $region32: #{tpu_custom_call.1} parent=11 // pred_fallthru
          _
        // Predicated region
        $region33: #{tpu_custom_call.1} parent=11 // pred_check
          %p426 = pneg %p190
        $region34: #{tpu_custom_call.1} parent=11 // pred_check_branch
          %428 = sbr.rel (%p426) target = $region36
        $region35: #{tpu_custom_call.1} parent=11 // pred_region
          _
        $region36: #{tpu_custom_call.1} parent=11 // pred_fallthru
          _
        // Predicated region
        $region37: #{tpu_custom_call.1} parent=11 // pred_check
          %p429 = pneg %p211
        $region38: #{tpu_custom_call.1} parent=11 // pred_check_branch
          %431 = sbr.rel (%p429) target = $region40
        $region39: #{tpu_custom_call.1} parent=11 // pred_region
          %s433 = ssub.s32 512, 512
          %434 = vsyncadd [#allocation9], %s433
          %s435 = sshll.u32 [#allocation8], 4
          %s436 = int_to_ptr.vmem [resolvable:$true] %s435
          %441 = dma.hbm_to_vmem [thread:$0]  %s7, 512, %s436, [#allocation9], 128, 128, 8
        $region40: #{tpu_custom_call.1} parent=11 // pred_fallthru
          _
        // Predicated region
        $region41: #{tpu_custom_call.1} parent=11 // pred_check
          %p442 = pneg %p232
        $region42: #{tpu_custom_call.1} parent=11 // pred_check_branch
          %444 = sbr.rel (%p442) target = $region44
        $region43: #{tpu_custom_call.1} parent=11 // pred_region
          _
        $region44: #{tpu_custom_call.1} parent=11 // pred_fallthru
          _
        // Predicated region
        $region45: #{tpu_custom_call.1} parent=11 // pred_check
          %p445 = pneg %p253
        $region46: #{tpu_custom_call.1} parent=11 // pred_check_branch
          %447 = sbr.rel (%p445) target = $region48
        $region47: #{tpu_custom_call.1} parent=11 // pred_region
          _
        $region48: #{tpu_custom_call.1} parent=11 // pred_fallthru
          _
        // Predicated region
        $region49: #{tpu_custom_call.1} parent=11 // pred_check
          %p448 = pneg %p274
        $region50: #{tpu_custom_call.1} parent=11 // pred_check_branch
          %450 = sbr.rel (%p448) target = $region52
        $region51: #{tpu_custom_call.1} parent=11 // pred_region
          _
        $region52: #{tpu_custom_call.1} parent=11 // pred_fallthru
          _
        // Predicated region
        $region53: #{tpu_custom_call.1} parent=11 // pred_check
          %p451 = pneg %p295
        $region54: #{tpu_custom_call.1} parent=11 // pred_check_branch
          %453 = sbr.rel (%p451) target = $region56
        $region55: #{tpu_custom_call.1} parent=11 // pred_region
          %s455 = ssub.s32 512, 512
          %456 = vsyncadd [#allocation9], %s455
          %s457 = sshll.u32 [#allocation10], 4
          %s458 = int_to_ptr.vmem [resolvable:$true] %s457
          %463 = dma.hbm_to_vmem [thread:$0]  %s11, 512, %s458, [#allocation9], 128, 128, 8
        $region56: #{tpu_custom_call.1} parent=11 // pred_fallthru
          _
        // Predicated region
        $region57: #{tpu_custom_call.1} parent=11 // pred_check
          %p464 = pneg %p316
        $region58: #{tpu_custom_call.1} parent=11 // pred_check_branch
          %466 = sbr.rel (%p464) target = $region60
        $region59: #{tpu_custom_call.1} parent=11 // pred_region
          _
        $region60: #{tpu_custom_call.1} parent=11 // pred_fallthru
          _
        // Predicated region
        $region61: #{tpu_custom_call.1} parent=11 // pred_check
          %p467 = pneg %p337
        $region62: #{tpu_custom_call.1} parent=11 // pred_check_branch
          %469 = sbr.rel (%p467) target = $region64
        $region63: #{tpu_custom_call.1} parent=11 // pred_region
          _
        $region64: #{tpu_custom_call.1} parent=11 // pred_fallthru
          _
        // Predicated region
        $region65: #{tpu_custom_call.1} parent=11 // pred_check
          %p470 = pneg %p358
        $region66: #{tpu_custom_call.1} parent=11 // pred_check_branch
          %472 = sbr.rel (%p470) target = $region68
        $region67: #{tpu_custom_call.1} parent=11 // pred_region
          _
        $region68: #{tpu_custom_call.1} parent=11 // pred_fallthru
          _
      $region12: #{tpu_custom_call.1} parent=5 // pred_fallthru
        _
      %p473 = scmp.lt.s32.totalorder %s26, 4
      // Predicated region
      $region69: #{tpu_custom_call.1} parent=5 // pred_check
        %p474 = pneg %p473
      $region70: #{tpu_custom_call.1} parent=5 // pred_check_branch
        %476 = sbr.rel (%p474) target = $region72
      $region71: #{tpu_custom_call.1} parent=5 // pred_region
        // Predicated region
        $region73: #{tpu_custom_call.1} parent=71 // pred_check
          %p477 = pneg %p58
        $region74: #{tpu_custom_call.1} parent=71 // pred_check_branch
          %479 = sbr.rel (%p477) target = $region76
        $region75: #{tpu_custom_call.1} parent=71 // pred_region
          %p480 = scmp.lt.s32.totalorder %s33, 1
          %s481 = scalar_select %p480, %s33, 1
          %s482 = smul.addr %s481, 4
          %s483 = smul.addr %s482, 8
          %s484 = scalar_lea.vmem %s0, %s483
        $region76: #{tpu_custom_call.1} parent=71 // pred_fallthru
          _
      $region72: #{tpu_custom_call.1} parent=5 // pred_fallthru
        _
      %p485 = scmp.le.s32.totalorder 1, %s26
      %p486 = scmp.lt.s32.totalorder %s26, 5
      %p487 = pnand %p485, %p486
      %p488 = pneg %p487
      // Predicated region
      $region77: #{tpu_custom_call.1} parent=5 // pred_check
        _
      $region78: #{tpu_custom_call.1} parent=5 // pred_check_branch
        %490 = sbr.rel (%p487) target = $region80
      $region79: #{tpu_custom_call.1} parent=5 // pred_region
        %s491 = ssub.s32 %s26, 1
        // Predicated region
        $region81: #{tpu_custom_call.1} parent=79 // pred_check
          %p492 = pneg %p169
        $region82: #{tpu_custom_call.1} parent=79 // pred_check_branch
          %494 = sbr.rel (%p492) target = $region84
        $region83: #{tpu_custom_call.1} parent=79 // pred_region
          %495 = dma.done [#allocation6], 512
        $region84: #{tpu_custom_call.1} parent=79 // pred_fallthru
          _
        // Predicated region
        $region85: #{tpu_custom_call.1} parent=79 // pred_check
          %p496 = pneg %p211
        $region86: #{tpu_custom_call.1} parent=79 // pred_check_branch
          %498 = sbr.rel (%p496) target = $region88
        $region87: #{tpu_custom_call.1} parent=79 // pred_region
          %499 = dma.done [#allocation9], 512
        $region88: #{tpu_custom_call.1} parent=79 // pred_fallthru
          _
        // Predicated region
        $region89: #{tpu_custom_call.1} parent=79 // pred_check
          %p500 = pneg %p295
        $region90: #{tpu_custom_call.1} parent=79 // pred_check_branch
          %502 = sbr.rel (%p500) target = $region92
        $region91: #{tpu_custom_call.1} parent=79 // pred_region
          %503 = dma.done [#allocation9], 512
        $region92: #{tpu_custom_call.1} parent=79 // pred_fallthru
          _
        %p504 = scmp.lt.s32.totalorder %s35, 1
        %s505 = scalar_select %p504, %s35, 1
        %s506 = smul.addr %s505, 4
        %s507 = smul.addr %s506, 8
        %s508 = scalar_lea.vmem %s0, %s507
        %p509 = pneg %p64
        %p510 = pneg %p61
        %p511 = pneg %p85
        %p512 = pneg %p82
        %p513 = pneg %p106
        %p514 = pneg %p103
        %p515 = pneg %p127
        %p516 = pneg %p124
        %p517 = pneg %p148
        %p518 = pneg %p145
        %p519 = pneg %p169
        %p520 = pneg %p166
        %p521 = pneg %p190
        %p522 = pneg %p187
        %p523 = pneg %p211
        %p524 = pneg %p208
        %p525 = pneg %p232
        %p526 = pneg %p229
        %p527 = pneg %p253
        %p528 = pneg %p250
        %p529 = pneg %p274
        %p530 = pneg %p271
        %p531 = pneg %p295
        %p532 = pneg %p292
        %p533 = pneg %p316
        %p534 = pneg %p313
        %p535 = pneg %p337
        %p536 = pneg %p334
        %p537 = pneg %p358
        %p538 = pneg %p355
        %p539 = pneg %p386
        %p540 = pneg %p383
        %s541 = sand.u32 %s373, 1
        %s542 = scalar_lea.sflag [#allocation7], %s541
        %s543 = sand.u32 %s373, 1
        %s544 = smul.addr %s543, 16
        %s545 = scalar_lea.vmem [#allocation11], %s544
        %p546 = scmp.lt.s32.totalorder %s35, 1
        %s547 = scalar_select %p546, %s35, 1
        %s548 = smul.addr %s547, 4
        %s549 = smul.addr %s548, 8
        %s550 = scalar_lea.vmem %s0, %s549
        %s551 = smul.u32 2, %s36
        %p552 = scmp.eq.s32.totalorder %s36, 0
        // Predicated region
        $region93: #{tpu_custom_call.1} parent=79 // pred_check
          %p553 = pneg %p552
        $region94: #{tpu_custom_call.1} parent=79 // pred_check_branch
          %555 = sbr.rel (%p553) target = $region96
        $region95: #{tpu_custom_call.1} parent=79 // pred_region
          %v556 = vld [vmem:[%s550] sm:$0xff]
          %v557 = vld [vmem:[%s550 + $0x8] sm:$0xff]
          %v558 = vld [vmem:[%s550 + $0x10] sm:$0xff]
          %v559 = vld [vmem:[%s550 + $0x18] sm:$0xff]
          %vm560 = vcmask 261120
          %v561 = vsel %vm560, %v556, 0.0
          %562 = vadd.xlane.f32.xlu0 %v561
          %v563 = vpop.xlane.xlu0 %562
          %v564 = vsel %vm560, %v557, 0.0
          %565 = vadd.xlane.f32.xlu0 %v564
          %v566 = vpop.xlane.xlu0 %565
          %v567 = vsel %vm560, %v558, 0.0
          %568 = vadd.xlane.f32.xlu0 %v567
          %v569 = vpop.xlane.xlu0 %568
          %v570 = vsel %vm560, %v559, 0.0
          %571 = vadd.xlane.f32.xlu0 %v570
          %v572 = vpop.xlane.xlu0 %571
          %v573 = vrcp.pop 32.0
          %v574 = vmul.f32 %v563, %v573
          %v575 = vmul.f32 %v566, %v573
          %v576 = vmul.f32 %v569, %v573
          %v577 = vmul.f32 %v572, %v573
          %v578 = vsub.f32 %v556, %v574
          %v579 = vsub.f32 %v557, %v575
          %v580 = vsub.f32 %v558, %v576
          %v581 = vsub.f32 %v559, %v577
          %v582 = vmul.f32 %v578, %v578
          %v583 = vmul.f32 %v579, %v579
          %v584 = vmul.f32 %v580, %v580
          %v585 = vmul.f32 %v581, %v581
          %v586 = vsel %vm560, %v582, 0.0
          %587 = vadd.xlane.f32.xlu0 %v586
          %v588 = vpop.xlane.xlu0 %587
          %v589 = vsel %vm560, %v583, 0.0
          %590 = vadd.xlane.f32.xlu0 %v589
          %v591 = vpop.xlane.xlu0 %590
          %v592 = vsel %vm560, %v584, 0.0
          %593 = vadd.xlane.f32.xlu0 %v592
          %v594 = vpop.xlane.xlu0 %593
          %v595 = vsel %vm560, %v585, 0.0
          %596 = vadd.xlane.f32.xlu0 %v595
          %v597 = vpop.xlane.xlu0 %596
          %v598 = vmul.f32 %v588, %v573
          %v599 = vmul.f32 %v591, %v573
          %v600 = vmul.f32 %v594, %v573
          %v601 = vmul.f32 %v597, %v573
          %v602 = vadd.f32 %v598, 1e-06
          %v603 = vadd.f32 %v599, 1e-06
          %v604 = vadd.f32 %v600, 1e-06
          %v605 = vadd.f32 %v601, 1e-06
          %v606 = vrsqrt.pop %v602
          %v607 = vrsqrt.pop %v603
          %v608 = vrsqrt.pop %v604
          %v609 = vrsqrt.pop %v605
          %v610 = vmul.f32 %v578, %v606
          %v611 = vmul.f32 %v579, %v607
          %v612 = vmul.f32 %v580, %v608
          %v613 = vmul.f32 %v581, %v609
          %v614 = vld [vmem:[%s1] sm:$0x1]
          %v616 = vlaneseq
          %v617 = vshrl.u32 %v616, 7
          %v618 = vsub.s32 0, %v617
          %v619 = vrot.slane %v614, %v618
          %v621 = vmul.f32 %v610, %v619
          %v622 = vmul.f32 %v611, %v619
          %v623 = vmul.f32 %v612, %v619
          %v624 = vmul.f32 %v613, %v619
          %v625 = vld [vmem:[%s2] sm:$0x1]
          %v627 = vlaneseq
          %v628 = vshrl.u32 %v627, 7
          %v629 = vsub.s32 0, %v628
          %v630 = vrot.slane %v625, %v629
          %v632 = vadd.f32 %v621, %v630
          %v633 = vadd.f32 %v622, %v630
          %v634 = vadd.f32 %v623, %v630
          %v635 = vadd.f32 %v624, %v630
          %636 = vst.msk [vmem:[#allocation2] sm:$0xff] %vm560, %v632
          %637 = vst.msk [vmem:[#allocation2 + $0x8] sm:$0xff] %vm560, %v633
          %638 = vst.msk [vmem:[#allocation2 + $0x10] sm:$0xff] %vm560, %v634
          %639 = vst.msk [vmem:[#allocation2 + $0x18] sm:$0xff] %vm560, %v635
          %v640 = vld [vmem:[#allocation5] sm:$0xff]
          %v641 = vld [vmem:[#allocation5 + $0x8] sm:$0xff]
          %v642 = vld [vmem:[#allocation5 + $0x10] sm:$0xff]
          %v643 = vld [vmem:[#allocation5 + $0x18] sm:$0xff]
          %v644 = vld [vmem:[%s6] sm:$0x1]
          %v646 = vlaneseq
          %v647 = vshrl.u32 %v646, 7
          %v648 = vsub.s32 0, %v647
          %v649 = vrot.slane %v644, %v648
          %v652 = vsel %vm560, %v632, 0
          %v655 = vsel %vm560, %v633, 0
          %v658 = vsel %vm560, %v634, 0
          %v661 = vsel %vm560, %v635, 0
          %663 = vmatprep.subr.mxu0 0.0
          %664 = vmatpush1.msra.mxu0 %v640
          %665 = vmatprep.subr.mxu0 0.0
          %666 = vmatpush1.msra.mxu0 %v641
          %667 = vmatprep.subr.mxu0 0.0
          %668 = vmatpush1.msra.mxu0 %v642
          %669 = vmatprep.subr.mxu0 0.0
          %670 = vmatpush1.msra.mxu0 %v643
          %671 = vmatprep.subr.mxu0 0.0
          %672 = vmatpush1.msra.mxu0 0.0
          %673 = vmatprep.subr.mxu0 0.0
          %674 = vmatpush1.msra.mxu0 0.0
          %675 = vmatprep.subr.mxu0 0.0
          %676 = vmatpush1.msra.mxu0 0.0
          %677 = vmatprep.subr.mxu0 0.0
          %678 = vmatpush1.msra.mxu0 0.0
          %679 = vmatprep.subr.mxu0 0.0
          %680 = vmatpush1.msra.mxu0 0.0
          %681 = vmatprep.subr.mxu0 0.0
          %682 = vmatpush1.msra.mxu0 0.0
          %683 = vmatprep.subr.mxu0 0.0
          %684 = vmatpush1.msra.mxu0 0.0
          %685 = vmatprep.subr.mxu0 0.0
          %686 = vmatpush1.msra.mxu0 0.0
          %687 = vmatprep.subr.mxu0 0.0
          %688 = vmatpush1.msra.mxu0 0.0
          %689 = vmatprep.subr.mxu0 0.0
          %690 = vmatpush1.msra.mxu0 0.0
          %691 = vmatprep.subr.mxu0 0.0
          %692 = vmatpush1.msra.mxu0 0.0
          %693 = vmatprep.subr.mxu0 0.0
          %694 = vmatpush1.msra.mxu0 0.0
          %695 = vmatprep.subr.mxu0 0.0
          %696 = vmatpush1.msra.mxu0 0.0
          %697 = vmatprep.subr.mxu0 0.0
          %698 = vmatpush1.msra.mxu0 0.0
          %699 = vmatprep.subr.mxu0 0.0
          %700 = vmatpush1.msra.mxu0 0.0
          %701 = vmatprep.subr.mxu0 0.0
          %702 = vmatpush1.msra.mxu0 0.0
          %703 = vmatprep.subr.mxu0 0.0
          %704 = vmatpush1.msra.mxu0 0.0
          %705 = vmatprep.subr.mxu0 0.0
          %706 = vmatpush1.msra.mxu0 0.0
          %707 = vmatprep.subr.mxu0 0.0
          %708 = vmatpush1.msra.mxu0 0.0
          %709 = vmatprep.subr.mxu0 0.0
          %710 = vmatpush1.msra.mxu0 0.0
          %711 = vmatprep.subr.mxu0 0.0
          %712 = vmatpush1.msra.mxu0 0.0
          %713 = vmatprep.subr.mxu0 0.0
          %714 = vmatpush1.msra.mxu0 0.0
          %715 = vmatprep.subr.mxu0 0.0
          %716 = vmatpush1.msra.mxu0 0.0
          %717 = vmatprep.subr.mxu0 0.0
          %718 = vmatpush1.msra.mxu0 0.0
          %719 = vmatprep.subr.mxu0 0.0
          %720 = vmatpush1.msra.mxu0 0.0
          %721 = vmatprep.subr.mxu0 0.0
          %722 = vmatpush1.msra.mxu0 0.0
          %723 = vmatprep.subr.mxu0 0.0
          %724 = vmatpush1.msra.mxu0 0.0
          %725 = vmatprep.subr.mxu0 0.0
          %726 = vmatpush1.msra.mxu0 0.0
          %727 = vmatprep.mubr.f32.mxu0 0.0
          %728 = vmatmul.mubr.f32.gmra.mrb[0].mxu0 %v652
          %v729 = vpop.f32.mrb[0].mxu0
          %v730 = vadd.f32 %v649, %v729
          %v731 = vpop.f32.mrb[0].mxu0
          %732 = vmatprep.mubr.f32.mxu0 0.0
          %733 = vmatmul.mubr.f32.gmra.mrb[0].mxu0 %v655
          %v734 = vpop.f32.mrb[0].mxu0
          %v735 = vadd.f32 %v649, %v734
          %v736 = vpop.f32.mrb[0].mxu0
          %737 = vmatprep.mubr.f32.mxu0 0.0
          %738 = vmatmul.mubr.f32.gmra.mrb[0].mxu0 %v658
          %v739 = vpop.f32.mrb[0].mxu0
          %v740 = vadd.f32 %v649, %v739
          %v741 = vpop.f32.mrb[0].mxu0
          %742 = vmatprep.mubr.f32.mxu0 0.0
          %743 = vmatmul.mubr.f32.gmra.mrb[0].mxu0 %v661
          %v744 = vpop.f32.mrb[0].mxu0
          %v745 = vadd.f32 %v649, %v744
          %v746 = vpop.f32.mrb[0].mxu0
          %747 = vdwg.mxu0
          %748 = vxpose.xlu0.b32.start [1/16] %v730, 128
          %749 = vxpose.xlu0.b32.cont [2/16] %v735, 128
          %750 = vxpose.xlu0.b32.cont [3/16] %v740, 128
          %751 = vxpose.xlu0.b32.cont [4/16] %v745, 128
          %752 = vxpose.xlu0.b32.cont [5/16] 0.0, 128
          %753 = vxpose.xlu0.b32.cont [6/16] 0.0, 128
          %754 = vxpose.xlu0.b32.cont [7/16] 0.0, 128
          %755 = vxpose.xlu0.b32.cont [8/16] 0.0, 128
          %756 = vxpose.xlu0.b32.cont [9/16] 0.0, 128
          %757 = vxpose.xlu0.b32.cont [10/16] 0.0, 128
          %758 = vxpose.xlu0.b32.cont [11/16] 0.0, 128
          %759 = vxpose.xlu0.b32.cont [12/16] 0.0, 128
          %760 = vxpose.xlu0.b32.cont [13/16] 0.0, 128
          %761 = vxpose.xlu0.b32.cont [14/16] 0.0, 128
          %762 = vxpose.xlu0.b32.cont [15/16] 0.0, 128
          %763 = vxpose.xlu0.b32.end [16/16] 0.0, 128
          %v764 = vpop.trf.xlu0
          %v765 = vpop.trf.xlu0
          %v766 = vpop.trf.xlu0
          %v767 = vpop.trf.xlu0
          %v768 = vpop.trf.xlu0
          %v769 = vpop.trf.xlu0
          %v770 = vpop.trf.xlu0
          %v771 = vpop.trf.xlu0
          %v772 = vpop.trf.xlu0
          %v773 = vpop.trf.xlu0
          %v774 = vpop.trf.xlu0
          %v775 = vpop.trf.xlu0
          %v776 = vpop.trf.xlu0
          %v777 = vpop.trf.xlu0
          %v778 = vpop.trf.xlu0
          %v779 = vpop.trf.xlu0
          %780 = vst.msk [vmem:[#allocation3] sm:$0xff] %vm560, %v764
          %785 = vrot.lane.b32.xlu0 %v730, 96
          %v786 = vpop.permute.xlu0 %785
          %787 = vrot.lane.b32.xlu0 %v735, 96
          %v788 = vpop.permute.xlu0 %787
          %789 = vrot.lane.b32.xlu0 %v740, 96
          %v790 = vpop.permute.xlu0 %789
          %791 = vrot.lane.b32.xlu0 %v745, 96
          %v792 = vpop.permute.xlu0 %791
          %vm797 = vcmask 64512
          %798 = vst.msk [vmem:[#allocation4] sm:$0xff] %vm797, %v786
          %799 = vst.msk [vmem:[#allocation4 + $0x8] sm:$0xff] %vm797, %v788
          %800 = vst.msk [vmem:[#allocation4 + $0x10] sm:$0xff] %vm797, %v790
          %801 = vst.msk [vmem:[#allocation4 + $0x18] sm:$0xff] %vm797, %v792
          %802 = vrot.lane.b32.xlu0 %v730, 120
          %v803 = vpop.permute.xlu0 %802
          %804 = vrot.lane.b32.xlu0 %v735, 120
          %v805 = vpop.permute.xlu0 %804
          %806 = vrot.lane.b32.xlu0 %v740, 120
          %v807 = vpop.permute.xlu0 %806
          %808 = vrot.lane.b32.xlu0 %v745, 120
          %v809 = vpop.permute.xlu0 %808
          %814 = vxpose.xlu0.b32.start [1/16] %v803, 128
          %815 = vxpose.xlu0.b32.cont [2/16] %v805, 128
          %816 = vxpose.xlu0.b32.cont [3/16] %v807, 128
          %817 = vxpose.xlu0.b32.cont [4/16] %v809, 128
          %818 = vxpose.xlu0.b32.cont [5/16] 0.0, 128
          %819 = vxpose.xlu0.b32.cont [6/16] 0.0, 128
          %820 = vxpose.xlu0.b32.cont [7/16] 0.0, 128
          %821 = vxpose.xlu0.b32.cont [8/16] 0.0, 128
          %822 = vxpose.xlu0.b32.cont [9/16] 0.0, 128
          %823 = vxpose.xlu0.b32.cont [10/16] 0.0, 128
          %824 = vxpose.xlu0.b32.cont [11/16] 0.0, 128
          %825 = vxpose.xlu0.b32.cont [12/16] 0.0, 128
          %826 = vxpose.xlu0.b32.cont [13/16] 0.0, 128
          %827 = vxpose.xlu0.b32.cont [14/16] 0.0, 128
          %828 = vxpose.xlu0.b32.cont [15/16] 0.0, 128
          %829 = vxpose.xlu0.b32.end [16/16] 0.0, 128
          %v830 = vpop.trf.xlu0
          %v831 = vpop.trf.xlu0
          %v832 = vpop.trf.xlu0
          %v833 = vpop.trf.xlu0
          %v834 = vpop.trf.xlu0
          %v835 = vpop.trf.xlu0
          %v836 = vpop.trf.xlu0
          %v837 = vpop.trf.xlu0
          %v838 = vpop.trf.xlu0
          %v839 = vpop.trf.xlu0
          %v840 = vpop.trf.xlu0
          %v841 = vpop.trf.xlu0
          %v842 = vpop.trf.xlu0
          %v843 = vpop.trf.xlu0
          %v844 = vpop.trf.xlu0
          %v845 = vpop.trf.xlu0
          %s846 = scalar_lea.vmem [#allocation3], 8
          %847 = vst.msk [vmem:[%s846] sm:$0xff] %vm560, %v830
          %848 = vrot.lane.b32.xlu0 %v730, 88
          %v849 = vpop.permute.xlu0 %848
          %850 = vrot.lane.b32.xlu0 %v735, 88
          %v851 = vpop.permute.xlu0 %850
          %852 = vrot.lane.b32.xlu0 %v740, 88
          %v853 = vpop.permute.xlu0 %852
          %854 = vrot.lane.b32.xlu0 %v745, 88
          %v855 = vpop.permute.xlu0 %854
          %s860 = scalar_lea.vmem [#allocation4], 32
          %861 = vst.msk [vmem:[%s860] sm:$0xff] %vm797, %v849
          %862 = vst.msk [vmem:[%s860 + $0x8] sm:$0xff] %vm797, %v851
          %863 = vst.msk [vmem:[%s860 + $0x10] sm:$0xff] %vm797, %v853
          %864 = vst.msk [vmem:[%s860 + $0x18] sm:$0xff] %vm797, %v855
          %865 = vrot.lane.b32.xlu0 %v730, 112
          %v866 = vpop.permute.xlu0 %865
          %867 = vrot.lane.b32.xlu0 %v735, 112
          %v868 = vpop.permute.xlu0 %867
          %869 = vrot.lane.b32.xlu0 %v740, 112
          %v870 = vpop.permute.xlu0 %869
          %871 = vrot.lane.b32.xlu0 %v745, 112
          %v872 = vpop.permute.xlu0 %871
          %877 = vxpose.xlu0.b32.start [1/16] %v866, 128
          %878 = vxpose.xlu0.b32.cont [2/16] %v868, 128
          %879 = vxpose.xlu0.b32.cont [3/16] %v870, 128
          %880 = vxpose.xlu0.b32.cont [4/16] %v872, 128
          %881 = vxpose.xlu0.b32.cont [5/16] 0.0, 128
          %882 = vxpose.xlu0.b32.cont [6/16] 0.0, 128
          %883 = vxpose.xlu0.b32.cont [7/16] 0.0, 128
          %884 = vxpose.xlu0.b32.cont [8/16] 0.0, 128
          %885 = vxpose.xlu0.b32.cont [9/16] 0.0, 128
          %886 = vxpose.xlu0.b32.cont [10/16] 0.0, 128
          %887 = vxpose.xlu0.b32.cont [11/16] 0.0, 128
          %888 = vxpose.xlu0.b32.cont [12/16] 0.0, 128
          %889 = vxpose.xlu0.b32.cont [13/16] 0.0, 128
          %890 = vxpose.xlu0.b32.cont [14/16] 0.0, 128
          %891 = vxpose.xlu0.b32.cont [15/16] 0.0, 128
          %892 = vxpose.xlu0.b32.end [16/16] 0.0, 128
          %v893 = vpop.trf.xlu0
          %v894 = vpop.trf.xlu0
          %v895 = vpop.trf.xlu0
          %v896 = vpop.trf.xlu0
          %v897 = vpop.trf.xlu0
          %v898 = vpop.trf.xlu0
          %v899 = vpop.trf.xlu0
          %v900 = vpop.trf.xlu0
          %v901 = vpop.trf.xlu0
          %v902 = vpop.trf.xlu0
          %v903 = vpop.trf.xlu0
          %v904 = vpop.trf.xlu0
          %v905 = vpop.trf.xlu0
          %v906 = vpop.trf.xlu0
          %v907 = vpop.trf.xlu0
          %v908 = vpop.trf.xlu0
          %s909 = scalar_lea.vmem [#allocation3], 16
          %910 = vst.msk [vmem:[%s909] sm:$0xff] %vm560, %v893
          %911 = vrot.lane.b32.xlu0 %v730, 80
          %v912 = vpop.permute.xlu0 %911
          %913 = vrot.lane.b32.xlu0 %v735, 80
          %v914 = vpop.permute.xlu0 %913
          %915 = vrot.lane.b32.xlu0 %v740, 80
          %v916 = vpop.permute.xlu0 %915
          %917 = vrot.lane.b32.xlu0 %v745, 80
          %v918 = vpop.permute.xlu0 %917
          %s923 = scalar_lea.vmem [#allocation4], 64
          %924 = vst.msk [vmem:[%s923] sm:$0xff] %vm797, %v912
          %925 = vst.msk [vmem:[%s923 + $0x8] sm:$0xff] %vm797, %v914
          %926 = vst.msk [vmem:[%s923 + $0x10] sm:$0xff] %vm797, %v916
          %927 = vst.msk [vmem:[%s923 + $0x18] sm:$0xff] %vm797, %v918
          %928 = vrot.lane.b32.xlu0 %v730, 104
          %v929 = vpop.permute.xlu0 %928
          %930 = vrot.lane.b32.xlu0 %v735, 104
          %v931 = vpop.permute.xlu0 %930
          %932 = vrot.lane.b32.xlu0 %v740, 104
          %v933 = vpop.permute.xlu0 %932
          %934 = vrot.lane.b32.xlu0 %v745, 104
          %v935 = vpop.permute.xlu0 %934
          %940 = vxpose.xlu0.b32.start [1/16] %v929, 128
          %941 = vxpose.xlu0.b32.cont [2/16] %v931, 128
          %942 = vxpose.xlu0.b32.cont [3/16] %v933, 128
          %943 = vxpose.xlu0.b32.cont [4/16] %v935, 128
          %944 = vxpose.xlu0.b32.cont [5/16] 0.0, 128
          %945 = vxpose.xlu0.b32.cont [6/16] 0.0, 128
          %946 = vxpose.xlu0.b32.cont [7/16] 0.0, 128
          %947 = vxpose.xlu0.b32.cont [8/16] 0.0, 128
          %948 = vxpose.xlu0.b32.cont [9/16] 0.0, 128
          %949 = vxpose.xlu0.b32.cont [10/16] 0.0, 128
          %950 = vxpose.xlu0.b32.cont [11/16] 0.0, 128
          %951 = vxpose.xlu0.b32.cont [12/16] 0.0, 128
          %952 = vxpose.xlu0.b32.cont [13/16] 0.0, 128
          %953 = vxpose.xlu0.b32.cont [14/16] 0.0, 128
          %954 = vxpose.xlu0.b32.cont [15/16] 0.0, 128
          %955 = vxpose.xlu0.b32.end [16/16] 0.0, 128
          %v956 = vpop.trf.xlu0
          %v957 = vpop.trf.xlu0
          %v958 = vpop.trf.xlu0
          %v959 = vpop.trf.xlu0
          %v960 = vpop.trf.xlu0
          %v961 = vpop.trf.xlu0
          %v962 = vpop.trf.xlu0
          %v963 = vpop.trf.xlu0
          %v964 = vpop.trf.xlu0
          %v965 = vpop.trf.xlu0
          %v966 = vpop.trf.xlu0
          %v967 = vpop.trf.xlu0
          %v968 = vpop.trf.xlu0
          %v969 = vpop.trf.xlu0
          %v970 = vpop.trf.xlu0
          %v971 = vpop.trf.xlu0
          %s972 = scalar_lea.vmem [#allocation3], 24
          %973 = vst.msk [vmem:[%s972] sm:$0xff] %vm560, %v956
          %974 = vrot.lane.b32.xlu0 %v730, 72
          %v975 = vpop.permute.xlu0 %974
          %976 = vrot.lane.b32.xlu0 %v735, 72
          %v977 = vpop.permute.xlu0 %976
          %978 = vrot.lane.b32.xlu0 %v740, 72
          %v979 = vpop.permute.xlu0 %978
          %980 = vrot.lane.b32.xlu0 %v745, 72
          %v981 = vpop.permute.xlu0 %980
          %s986 = scalar_lea.vmem [#allocation4], 96
          %987 = vst.msk [vmem:[%s986] sm:$0xff] %vm797, %v975
          %988 = vst.msk [vmem:[%s986 + $0x8] sm:$0xff] %vm797, %v977
          %989 = vst.msk [vmem:[%s986 + $0x10] sm:$0xff] %vm797, %v979
          %990 = vst.msk [vmem:[%s986 + $0x18] sm:$0xff] %vm797, %v981
        $region96: #{tpu_custom_call.1} parent=79 // pred_fallthru
          _
        %s991 = smul.u32 %s36, 16
        %s992 = scalar_lea.vmem %s550, %s991
        %v993 = vld [vmem:[%s992] sm:$0xff]
        %v994 = vld [vmem:[%s992 + $0x8] sm:$0xff]
        %s995 = scalar_lea.vmem [#allocation2], %s991
        %v996 = vld [vmem:[%s995] sm:$0xff]
        %v997 = vld [vmem:[%s995 + $0x8] sm:$0xff]
        %v998 = vld [vmem:[%s3] sm:$0xff]
        %v999 = vld [vmem:[%s3 + $0x8] sm:$0xff]
        %v1000 = vld [vmem:[%s3 + $0x10] sm:$0xff]
        %v1001 = vld [vmem:[%s3 + $0x18] sm:$0xff]
        %v1002 = vld [vmem:[%s4] sm:$0x1]
        %v1004 = vlaneseq
        %v1005 = vshrl.u32 %v1004, 7
        %v1006 = vsub.s32 0, %v1005
        %v1007 = vrot.slane %v1002, %v1006
        %vm1009 = vcmask 261120
        %v1011 = vsel %vm1009, %v996, 0
        %v1014 = vsel %vm1009, %v997, 0
        %1016 = vmatprep.subr.mxu0 0.0
        %1017 = vmatpush1.msra.mxu0 %v998
        %1018 = vmatprep.subr.mxu0 0.0
        %1019 = vmatpush1.msra.mxu0 %v999
        %1020 = vmatprep.subr.mxu0 0.0
        %1021 = vmatpush1.msra.mxu0 %v1000
        %1022 = vmatprep.subr.mxu0 0.0
        %1023 = vmatpush1.msra.mxu0 %v1001
        %1024 = vmatprep.subr.mxu0 0.0
        %1025 = vmatpush1.msra.mxu0 0.0
        %1026 = vmatprep.subr.mxu0 0.0
        %1027 = vmatpush1.msra.mxu0 0.0
        %1028 = vmatprep.subr.mxu0 0.0
        %1029 = vmatpush1.msra.mxu0 0.0
        %1030 = vmatprep.subr.mxu0 0.0
        %1031 = vmatpush1.msra.mxu0 0.0
        %1032 = vmatprep.subr.mxu0 0.0
        %1033 = vmatpush1.msra.mxu0 0.0
        %1034 = vmatprep.subr.mxu0 0.0
        %1035 = vmatpush1.msra.mxu0 0.0
        %1036 = vmatprep.subr.mxu0 0.0
        %1037 = vmatpush1.msra.mxu0 0.0
        %1038 = vmatprep.subr.mxu0 0.0
        %1039 = vmatpush1.msra.mxu0 0.0
        %1040 = vmatprep.subr.mxu0 0.0
        %1041 = vmatpush1.msra.mxu0 0.0
        %1042 = vmatprep.subr.mxu0 0.0
        %1043 = vmatpush1.msra.mxu0 0.0
        %1044 = vmatprep.subr.mxu0 0.0
        %1045 = vmatpush1.msra.mxu0 0.0
        %1046 = vmatprep.subr.mxu0 0.0
        %1047 = vmatpush1.msra.mxu0 0.0
        %1048 = vmatprep.subr.mxu0 0.0
        %1049 = vmatpush1.msra.mxu0 0.0
        %1050 = vmatprep.subr.mxu0 0.0
        %1051 = vmatpush1.msra.mxu0 0.0
        %1052 = vmatprep.subr.mxu0 0.0
        %1053 = vmatpush1.msra.mxu0 0.0
        %1054 = vmatprep.subr.mxu0 0.0
        %1055 = vmatpush1.msra.mxu0 0.0
        %1056 = vmatprep.subr.mxu0 0.0
        %1057 = vmatpush1.msra.mxu0 0.0
        %1058 = vmatprep.subr.mxu0 0.0
        %1059 = vmatpush1.msra.mxu0 0.0
        %1060 = vmatprep.subr.mxu0 0.0
        %1061 = vmatpush1.msra.mxu0 0.0
        %1062 = vmatprep.subr.mxu0 0.0
        %1063 = vmatpush1.msra.mxu0 0.0
        %1064 = vmatprep.subr.mxu0 0.0
        %1065 = vmatpush1.msra.mxu0 0.0
        %1066 = vmatprep.subr.mxu0 0.0
        %1067 = vmatpush1.msra.mxu0 0.0
        %1068 = vmatprep.subr.mxu0 0.0
        %1069 = vmatpush1.msra.mxu0 0.0
        %1070 = vmatprep.subr.mxu0 0.0
        %1071 = vmatpush1.msra.mxu0 0.0
        %1072 = vmatprep.subr.mxu0 0.0
        %1073 = vmatpush1.msra.mxu0 0.0
        %1074 = vmatprep.subr.mxu0 0.0
        %1075 = vmatpush1.msra.mxu0 0.0
        %1076 = vmatprep.subr.mxu0 0.0
        %1077 = vmatpush1.msra.mxu0 0.0
        %1078 = vmatprep.subr.mxu0 0.0
        %1079 = vmatpush1.msra.mxu0 0.0
        %1080 = vmatprep.mubr.f32.mxu0 0.0
        %1081 = vmatmul.mubr.f32.gmra.mrb[0].mxu0 %v1011
        %v1082 = vpop.f32.mrb[0].mxu0
        %v1083 = vadd.f32 %v1007, %v1082
        %v1084 = vpop.f32.mrb[0].mxu0
        %1085 = vmatprep.mubr.f32.mxu0 0.0
        %1086 = vmatmul.mubr.f32.gmra.mrb[0].mxu0 %v1014
        %v1087 = vpop.f32.mrb[0].mxu0
        %v1088 = vadd.f32 %v1007, %v1087
        %v1089 = vpop.f32.mrb[0].mxu0
        %1090 = vdwg.mxu0
        %v1091 = vld [vmem:[#allocation3] sm:$0xff]
        %vm1092 = vcmask 64512
        %v1094 = vsel %vm1092, %v1083, 0
        %v1097 = vsel %vm1092, %v1088, 0
        %1099 = vmatprep.subr.mxu0 0.0
        %1100 = vmatpush1.msra.mxu0 %v1091
        %1101 = vmatprep.subr.mxu0 0.0
        %1102 = vmatpush1.msra.mxu0 0.0
        %1103 = vmatprep.subr.mxu0 0.0
        %1104 = vmatpush1.msra.mxu0 0.0
        %1105 = vmatprep.subr.mxu0 0.0
        %1106 = vmatpush1.msra.mxu0 0.0
        %1107 = vmatprep.subr.mxu0 0.0
        %1108 = vmatpush1.msra.mxu0 0.0
        %1109 = vmatprep.subr.mxu0 0.0
        %1110 = vmatpush1.msra.mxu0 0.0
        %1111 = vmatprep.subr.mxu0 0.0
        %1112 = vmatpush1.msra.mxu0 0.0
        %1113 = vmatprep.subr.mxu0 0.0
        %1114 = vmatpush1.msra.mxu0 0.0
        %1115 = vmatprep.subr.mxu0 0.0
        %1116 = vmatpush1.msra.mxu0 0.0
        %1117 = vmatprep.subr.mxu0 0.0
        %1118 = vmatpush1.msra.mxu0 0.0
        %1119 = vmatprep.subr.mxu0 0.0
        %1120 = vmatpush1.msra.mxu0 0.0
        %1121 = vmatprep.subr.mxu0 0.0
        %1122 = vmatpush1.msra.mxu0 0.0
        %1123 = vmatprep.subr.mxu0 0.0
        %1124 = vmatpush1.msra.mxu0 0.0
        %1125 = vmatprep.subr.mxu0 0.0
        %1126 = vmatpush1.msra.mxu0 0.0
        %1127 = vmatprep.subr.mxu0 0.0
        %1128 = vmatpush1.msra.mxu0 0.0
        %1129 = vmatprep.subr.mxu0 0.0
        %1130 = vmatpush1.msra.mxu0 0.0
        %1131 = vmatprep.subr.mxu0 0.0
        %1132 = vmatpush1.msra.mxu0 0.0
        %1133 = vmatprep.subr.mxu0 0.0
        %1134 = vmatpush1.msra.mxu0 0.0
        %1135 = vmatprep.subr.mxu0 0.0
        %1136 = vmatpush1.msra.mxu0 0.0
        %1137 = vmatprep.subr.mxu0 0.0
        %1138 = vmatpush1.msra.mxu0 0.0
        %1139 = vmatprep.subr.mxu0 0.0
        %1140 = vmatpush1.msra.mxu0 0.0
        %1141 = vmatprep.subr.mxu0 0.0
        %1142 = vmatpush1.msra.mxu0 0.0
        %1143 = vmatprep.subr.mxu0 0.0
        %1144 = vmatpush1.msra.mxu0 0.0
        %1145 = vmatprep.subr.mxu0 0.0
        %1146 = vmatpush1.msra.mxu0 0.0
        %1147 = vmatprep.subr.mxu0 0.0
        %1148 = vmatpush1.msra.mxu0 0.0
        %1149 = vmatprep.subr.mxu0 0.0
        %1150 = vmatpush1.msra.mxu0 0.0
        %1151 = vmatprep.subr.mxu0 0.0
        %1152 = vmatpush1.msra.mxu0 0.0
        %1153 = vmatprep.subr.mxu0 0.0
        %1154 = vmatpush1.msra.mxu0 0.0
        %1155 = vmatprep.subr.mxu0 0.0
        %1156 = vmatpush1.msra.mxu0 0.0
        %1157 = vmatprep.subr.mxu0 0.0
        %1158 = vmatpush1.msra.mxu0 0.0
        %1159 = vmatprep.subr.mxu0 0.0
        %1160 = vmatpush1.msra.mxu0 0.0
        %1161 = vmatprep.subr.mxu0 0.0
        %1162 = vmatpush1.msra.mxu0 0.0
        %1163 = vmatprep.mubr.f32.mxu0 0.0
        %1164 = vmatmul.mubr.f32.gmra.mrb[0].mxu0 %v1094
        %v1165 = vpop.f32.mrb[0].mxu0
        %v1166 = vadd.f32 0.0, %v1165
        %v1167 = vpop.f32.mrb[0].mxu0
        %1168 = vmatprep.mubr.f32.mxu0 0.0
        %1169 = vmatmul.mubr.f32.gmra.mrb[0].mxu0 %v1097
        %v1170 = vpop.f32.mrb[0].mxu0
        %v1171 = vadd.f32 0.0, %v1170
        %v1172 = vpop.f32.mrb[0].mxu0
        %1173 = vdwg.mxu0
        %v1174 = vsel %vm1009, %v1166, -inf
        %1175 = vmax.xlane.f32.xlu0 %v1174
        %v1176 = vpop.xlane.xlu0 %1175
        %v1177 = vsel %vm1009, %v1171, -inf
        %1178 = vmax.xlane.f32.xlu0 %v1177
        %v1179 = vpop.xlane.xlu0 %1178
        %v1180 = vsub.f32 %v1166, %v1176
        %v1181 = vsub.f32 %v1171, %v1179
        %v1182 = vmul.f32 %v1180, 1.442695
        %v1183 = vpow.pop %v1182
        %v1184 = vmul.f32 %v1181, 1.442695
        %v1185 = vpow.pop %v1184
        %v1186 = vsel %vm1009, %v1183, 0.0
        %1187 = vadd.xlane.f32.xlu0 %v1186
        %v1188 = vpop.xlane.xlu0 %1187
        %v1189 = vsel %vm1009, %v1185, 0.0
        %1190 = vadd.xlane.f32.xlu0 %v1189
        %v1191 = vpop.xlane.xlu0 %1190
        %v1192 = vrcp.pop %v1188
        %v1193 = vrcp.pop %v1191
        %v1194 = vmul.f32 %v1183, %v1192
        %v1195 = vmul.f32 %v1185, %v1193
        %v1196 = vld [vmem:[#allocation4] sm:$0xff]
        %v1197 = vld [vmem:[#allocation4 + $0x8] sm:$0xff]
        %v1198 = vld [vmem:[#allocation4 + $0x10] sm:$0xff]
        %v1199 = vld [vmem:[#allocation4 + $0x18] sm:$0xff]
        %v1201 = vsel %vm1009, %v1194, 0
        %v1204 = vsel %vm1009, %v1195, 0
        %1206 = vmatprep.subr.mxu0 0.0
        %1207 = vmatpush1.msra.mxu0 %v1196
        %1208 = vmatprep.subr.mxu0 0.0
        %1209 = vmatpush1.msra.mxu0 %v1197
        %1210 = vmatprep.subr.mxu0 0.0
        %1211 = vmatpush1.msra.mxu0 %v1198
        %1212 = vmatprep.subr.mxu0 0.0
        %1213 = vmatpush1.msra.mxu0 %v1199
        %1214 = vmatprep.subr.mxu0 0.0
        %1215 = vmatpush1.msra.mxu0 0.0
        %1216 = vmatprep.subr.mxu0 0.0
        %1217 = vmatpush1.msra.mxu0 0.0
        %1218 = vmatprep.subr.mxu0 0.0
        %1219 = vmatpush1.msra.mxu0 0.0
        %1220 = vmatprep.subr.mxu0 0.0
        %1221 = vmatpush1.msra.mxu0 0.0
        %1222 = vmatprep.subr.mxu0 0.0
        %1223 = vmatpush1.msra.mxu0 0.0
        %1224 = vmatprep.subr.mxu0 0.0
        %1225 = vmatpush1.msra.mxu0 0.0
        %1226 = vmatprep.subr.mxu0 0.0
        %1227 = vmatpush1.msra.mxu0 0.0
        %1228 = vmatprep.subr.mxu0 0.0
        %1229 = vmatpush1.msra.mxu0 0.0
        %1230 = vmatprep.subr.mxu0 0.0
        %1231 = vmatpush1.msra.mxu0 0.0
        %1232 = vmatprep.subr.mxu0 0.0
        %1233 = vmatpush1.msra.mxu0 0.0
        %1234 = vmatprep.subr.mxu0 0.0
        %1235 = vmatpush1.msra.mxu0 0.0
        %1236 = vmatprep.subr.mxu0 0.0
        %1237 = vmatpush1.msra.mxu0 0.0
        %1238 = vmatprep.subr.mxu0 0.0
        %1239 = vmatpush1.msra.mxu0 0.0
        %1240 = vmatprep.subr.mxu0 0.0
        %1241 = vmatpush1.msra.mxu0 0.0
        %1242 = vmatprep.subr.mxu0 0.0
        %1243 = vmatpush1.msra.mxu0 0.0
        %1244 = vmatprep.subr.mxu0 0.0
        %1245 = vmatpush1.msra.mxu0 0.0
        %1246 = vmatprep.subr.mxu0 0.0
        %1247 = vmatpush1.msra.mxu0 0.0
        %1248 = vmatprep.subr.mxu0 0.0
        %1249 = vmatpush1.msra.mxu0 0.0
        %1250 = vmatprep.subr.mxu0 0.0
        %1251 = vmatpush1.msra.mxu0 0.0
        %1252 = vmatprep.subr.mxu0 0.0
        %1253 = vmatpush1.msra.mxu0 0.0
        %1254 = vmatprep.subr.mxu0 0.0
        %1255 = vmatpush1.msra.mxu0 0.0
        %1256 = vmatprep.subr.mxu0 0.0
        %1257 = vmatpush1.msra.mxu0 0.0
        %1258 = vmatprep.subr.mxu0 0.0
        %1259 = vmatpush1.msra.mxu0 0.0
        %1260 = vmatprep.subr.mxu0 0.0
        %1261 = vmatpush1.msra.mxu0 0.0
        %1262 = vmatprep.subr.mxu0 0.0
        %1263 = vmatpush1.msra.mxu0 0.0
        %1264 = vmatprep.subr.mxu0 0.0
        %1265 = vmatpush1.msra.mxu0 0.0
        %1266 = vmatprep.subr.mxu0 0.0
        %1267 = vmatpush1.msra.mxu0 0.0
        %1268 = vmatprep.subr.mxu0 0.0
        %1269 = vmatpush1.msra.mxu0 0.0
        %1270 = vmatprep.mubr.f32.mxu0 0.0
        %1271 = vmatmul.mubr.f32.gmra.mrb[0].mxu0 %v1201
        %v1272 = vpop.f32.mrb[0].mxu0
        %v1273 = vadd.f32 0.0, %v1272
        %v1274 = vpop.f32.mrb[0].mxu0
        %1275 = vmatprep.mubr.f32.mxu0 0.0
        %1276 = vmatmul.mubr.f32.gmra.mrb[0].mxu0 %v1204
        %v1277 = vpop.f32.mrb[0].mxu0
        %v1278 = vadd.f32 0.0, %v1277
        %v1279 = vpop.f32.mrb[0].mxu0
        %1280 = vdwg.mxu0
        %v1281 = vld [vmem:[#allocation8] sm:$0xff]
        %s1282 = scalar_lea.vmem [#allocation3], 8
        %v1283 = vld [vmem:[%s1282] sm:$0xff]
        %1284 = vrot.lane.b32.xlu0 %v1083, 120
        %v1285 = vpop.permute.xlu0 %1284
        %1286 = vrot.lane.b32.xlu0 %v1088, 120
        %v1287 = vpop.permute.xlu0 %1286
        %v1288 = vsel %vm1092, %v1285, 0
        %v1290 = vsel %vm1092, %v1287, 0
        %1292 = vmatprep.subr.mxu0 0.0
        %1293 = vmatpush1.msra.mxu0 %v1283
        %1294 = vmatprep.subr.mxu0 0.0
        %1295 = vmatpush1.msra.mxu0 0.0
        %1296 = vmatprep.subr.mxu0 0.0
        %1297 = vmatpush1.msra.mxu0 0.0
        %1298 = vmatprep.subr.mxu0 0.0
        %1299 = vmatpush1.msra.mxu0 0.0
        %1300 = vmatprep.subr.mxu0 0.0
        %1301 = vmatpush1.msra.mxu0 0.0
        %1302 = vmatprep.subr.mxu0 0.0
        %1303 = vmatpush1.msra.mxu0 0.0
        %1304 = vmatprep.subr.mxu0 0.0
        %1305 = vmatpush1.msra.mxu0 0.0
        %1306 = vmatprep.subr.mxu0 0.0
        %1307 = vmatpush1.msra.mxu0 0.0
        %1308 = vmatprep.subr.mxu0 0.0
        %1309 = vmatpush1.msra.mxu0 0.0
        %1310 = vmatprep.subr.mxu0 0.0
        %1311 = vmatpush1.msra.mxu0 0.0
        %1312 = vmatprep.subr.mxu0 0.0
        %1313 = vmatpush1.msra.mxu0 0.0
        %1314 = vmatprep.subr.mxu0 0.0
        %1315 = vmatpush1.msra.mxu0 0.0
        %1316 = vmatprep.subr.mxu0 0.0
        %1317 = vmatpush1.msra.mxu0 0.0
        %1318 = vmatprep.subr.mxu0 0.0
        %1319 = vmatpush1.msra.mxu0 0.0
        %1320 = vmatprep.subr.mxu0 0.0
        %1321 = vmatpush1.msra.mxu0 0.0
        %1322 = vmatprep.subr.mxu0 0.0
        %1323 = vmatpush1.msra.mxu0 0.0
        %1324 = vmatprep.subr.mxu0 0.0
        %1325 = vmatpush1.msra.mxu0 0.0
        %1326 = vmatprep.subr.mxu0 0.0
        %1327 = vmatpush1.msra.mxu0 0.0
        %1328 = vmatprep.subr.mxu0 0.0
        %1329 = vmatpush1.msra.mxu0 0.0
        %1330 = vmatprep.subr.mxu0 0.0
        %1331 = vmatpush1.msra.mxu0 0.0
        %1332 = vmatprep.subr.mxu0 0.0
        %1333 = vmatpush1.msra.mxu0 0.0
        %1334 = vmatprep.subr.mxu0 0.0
        %1335 = vmatpush1.msra.mxu0 0.0
        %1336 = vmatprep.subr.mxu0 0.0
        %1337 = vmatpush1.msra.mxu0 0.0
        %1338 = vmatprep.subr.mxu0 0.0
        %1339 = vmatpush1.msra.mxu0 0.0
        %1340 = vmatprep.subr.mxu0 0.0
        %1341 = vmatpush1.msra.mxu0 0.0
        %1342 = vmatprep.subr.mxu0 0.0
        %1343 = vmatpush1.msra.mxu0 0.0
        %1344 = vmatprep.subr.mxu0 0.0
        %1345 = vmatpush1.msra.mxu0 0.0
        %1346 = vmatprep.subr.mxu0 0.0
        %1347 = vmatpush1.msra.mxu0 0.0
        %1348 = vmatprep.subr.mxu0 0.0
        %1349 = vmatpush1.msra.mxu0 0.0
        %1350 = vmatprep.subr.mxu0 0.0
        %1351 = vmatpush1.msra.mxu0 0.0
        %1352 = vmatprep.subr.mxu0 0.0
        %1353 = vmatpush1.msra.mxu0 0.0
        %1354 = vmatprep.subr.mxu0 0.0
        %1355 = vmatpush1.msra.mxu0 0.0
        %1356 = vmatprep.mubr.f32.mxu0 0.0
        %1357 = vmatmul.mubr.f32.gmra.mrb[0].mxu0 %v1288
        %v1358 = vpop.f32.mrb[0].mxu0
        %v1359 = vadd.f32 0.0, %v1358
        %v1360 = vpop.f32.mrb[0].mxu0
        %1361 = vmatprep.mubr.f32.mxu0 0.0
        %1362 = vmatmul.mubr.f32.gmra.mrb[0].mxu0 %v1290
        %v1363 = vpop.f32.mrb[0].mxu0
        %v1364 = vadd.f32 0.0, %v1363
        %v1365 = vpop.f32.mrb[0].mxu0
        %1366 = vdwg.mxu0
        %v1367 = vsel %vm1009, %v1359, -inf
        %1368 = vmax.xlane.f32.xlu0 %v1367
        %v1369 = vpop.xlane.xlu0 %1368
        %v1370 = vsel %vm1009, %v1364, -inf
        %1371 = vmax.xlane.f32.xlu0 %v1370
        %v1372 = vpop.xlane.xlu0 %1371
        %v1373 = vsub.f32 %v1359, %v1369
        %v1374 = vsub.f32 %v1364, %v1372
        %v1375 = vmul.f32 %v1373, 1.442695
        %v1376 = vpow.pop %v1375
        %v1377 = vmul.f32 %v1374, 1.442695
        %v1378 = vpow.pop %v1377
        %v1379 = vsel %vm1009, %v1376, 0.0
        %1380 = vadd.xlane.f32.xlu0 %v1379
        %v1381 = vpop.xlane.xlu0 %1380
        %v1382 = vsel %vm1009, %v1378, 0.0
        %1383 = vadd.xlane.f32.xlu0 %v1382
        %v1384 = vpop.xlane.xlu0 %1383
        %v1385 = vrcp.pop %v1381
        %v1386 = vrcp.pop %v1384
        %v1387 = vmul.f32 %v1376, %v1385
        %v1388 = vmul.f32 %v1378, %v1386
        %s1389 = scalar_lea.vmem [#allocation4], 32
        %v1390 = vld [vmem:[%s1389] sm:$0xff]
        %v1391 = vld [vmem:[%s1389 + $0x8] sm:$0xff]
        %v1392 = vld [vmem:[%s1389 + $0x10] sm:$0xff]
        %v1393 = vld [vmem:[%s1389 + $0x18] sm:$0xff]
        %v1395 = vsel %vm1009, %v1387, 0
        %v1398 = vsel %vm1009, %v1388, 0
        %1400 = vmatprep.subr.mxu0 0.0
        %1401 = vmatpush1.msra.mxu0 %v1390
        %1402 = vmatprep.subr.mxu0 0.0
        %1403 = vmatpush1.msra.mxu0 %v1391
        %1404 = vmatprep.subr.mxu0 0.0
        %1405 = vmatpush1.msra.mxu0 %v1392
        %1406 = vmatprep.subr.mxu0 0.0
        %1407 = vmatpush1.msra.mxu0 %v1393
        %1408 = vmatprep.subr.mxu0 0.0
        %1409 = vmatpush1.msra.mxu0 0.0
        %1410 = vmatprep.subr.mxu0 0.0
        %1411 = vmatpush1.msra.mxu0 0.0
        %1412 = vmatprep.subr.mxu0 0.0
        %1413 = vmatpush1.msra.mxu0 0.0
        %1414 = vmatprep.subr.mxu0 0.0
        %1415 = vmatpush1.msra.mxu0 0.0
        %1416 = vmatprep.subr.mxu0 0.0
        %1417 = vmatpush1.msra.mxu0 0.0
        %1418 = vmatprep.subr.mxu0 0.0
        %1419 = vmatpush1.msra.mxu0 0.0
        %1420 = vmatprep.subr.mxu0 0.0
        %1421 = vmatpush1.msra.mxu0 0.0
        %1422 = vmatprep.subr.mxu0 0.0
        %1423 = vmatpush1.msra.mxu0 0.0
        %1424 = vmatprep.subr.mxu0 0.0
        %1425 = vmatpush1.msra.mxu0 0.0
        %1426 = vmatprep.subr.mxu0 0.0
        %1427 = vmatpush1.msra.mxu0 0.0
        %1428 = vmatprep.subr.mxu0 0.0
        %1429 = vmatpush1.msra.mxu0 0.0
        %1430 = vmatprep.subr.mxu0 0.0
        %1431 = vmatpush1.msra.mxu0 0.0
        %1432 = vmatprep.subr.mxu0 0.0
        %1433 = vmatpush1.msra.mxu0 0.0
        %1434 = vmatprep.subr.mxu0 0.0
        %1435 = vmatpush1.msra.mxu0 0.0
        %1436 = vmatprep.subr.mxu0 0.0
        %1437 = vmatpush1.msra.mxu0 0.0
        %1438 = vmatprep.subr.mxu0 0.0
        %1439 = vmatpush1.msra.mxu0 0.0
        %1440 = vmatprep.subr.mxu0 0.0
        %1441 = vmatpush1.msra.mxu0 0.0
        %1442 = vmatprep.subr.mxu0 0.0
        %1443 = vmatpush1.msra.mxu0 0.0
        %1444 = vmatprep.subr.mxu0 0.0
        %1445 = vmatpush1.msra.mxu0 0.0
        %1446 = vmatprep.subr.mxu0 0.0
        %1447 = vmatpush1.msra.mxu0 0.0
        %1448 = vmatprep.subr.mxu0 0.0
        %1449 = vmatpush1.msra.mxu0 0.0
        %1450 = vmatprep.subr.mxu0 0.0
        %1451 = vmatpush1.msra.mxu0 0.0
        %1452 = vmatprep.subr.mxu0 0.0
        %1453 = vmatpush1.msra.mxu0 0.0
        %1454 = vmatprep.subr.mxu0 0.0
        %1455 = vmatpush1.msra.mxu0 0.0
        %1456 = vmatprep.subr.mxu0 0.0
        %1457 = vmatpush1.msra.mxu0 0.0
        %1458 = vmatprep.subr.mxu0 0.0
        %1459 = vmatpush1.msra.mxu0 0.0
        %1460 = vmatprep.subr.mxu0 0.0
        %1461 = vmatpush1.msra.mxu0 0.0
        %1462 = vmatprep.subr.mxu0 0.0
        %1463 = vmatpush1.msra.mxu0 0.0
        %1464 = vmatprep.mubr.f32.mxu0 0.0
        %1465 = vmatmul.mubr.f32.gmra.mrb[0].mxu0 %v1395
        %v1466 = vpop.f32.mrb[0].mxu0
        %v1467 = vadd.f32 0.0, %v1466
        %v1468 = vpop.f32.mrb[0].mxu0
        %1469 = vmatprep.mubr.f32.mxu0 0.0
        %1470 = vmatmul.mubr.f32.gmra.mrb[0].mxu0 %v1398
        %v1471 = vpop.f32.mrb[0].mxu0
        %v1472 = vadd.f32 0.0, %v1471
        %v1473 = vpop.f32.mrb[0].mxu0
        %1474 = vdwg.mxu0
        %s1475 = scalar_lea.vmem [#allocation8], 8
        %v1476 = vld [vmem:[%s1475] sm:$0xff]
        %v1478 = vsel %vm1092, %v1467, 0
        %v1481 = vsel %vm1092, %v1472, 0
        %1483 = vmatprep.subr.mxu0 0.0
        %1484 = vmatpush1.msra.mxu0 %v1476
        %1485 = vmatprep.subr.mxu0 0.0
        %1486 = vmatpush1.msra.mxu0 0.0
        %1487 = vmatprep.subr.mxu0 0.0
        %1488 = vmatpush1.msra.mxu0 0.0
        %1489 = vmatprep.subr.mxu0 0.0
        %1490 = vmatpush1.msra.mxu0 0.0
        %1491 = vmatprep.subr.mxu0 0.0
        %1492 = vmatpush1.msra.mxu0 0.0
        %1493 = vmatprep.subr.mxu0 0.0
        %1494 = vmatpush1.msra.mxu0 0.0
        %1495 = vmatprep.subr.mxu0 0.0
        %1496 = vmatpush1.msra.mxu0 0.0
        %1497 = vmatprep.subr.mxu0 0.0
        %1498 = vmatpush1.msra.mxu0 0.0
        %1499 = vmatprep.subr.mxu0 0.0
        %1500 = vmatpush1.msra.mxu0 0.0
        %1501 = vmatprep.subr.mxu0 0.0
        %1502 = vmatpush1.msra.mxu0 0.0
        %1503 = vmatprep.subr.mxu0 0.0
        %1504 = vmatpush1.msra.mxu0 0.0
        %1505 = vmatprep.subr.mxu0 0.0
        %1506 = vmatpush1.msra.mxu0 0.0
        %1507 = vmatprep.subr.mxu0 0.0
        %1508 = vmatpush1.msra.mxu0 0.0
        %1509 = vmatprep.subr.mxu0 0.0
        %1510 = vmatpush1.msra.mxu0 0.0
        %1511 = vmatprep.subr.mxu0 0.0
        %1512 = vmatpush1.msra.mxu0 0.0
        %1513 = vmatprep.subr.mxu0 0.0
        %1514 = vmatpush1.msra.mxu0 0.0
        %1515 = vmatprep.subr.mxu0 0.0
        %1516 = vmatpush1.msra.mxu0 0.0
        %1517 = vmatprep.subr.mxu0 0.0
        %1518 = vmatpush1.msra.mxu0 0.0
        %1519 = vmatprep.subr.mxu0 0.0
        %1520 = vmatpush1.msra.mxu0 0.0
        %1521 = vmatprep.subr.mxu0 0.0
        %1522 = vmatpush1.msra.mxu0 0.0
        %1523 = vmatprep.subr.mxu0 0.0
        %1524 = vmatpush1.msra.mxu0 0.0
        %1525 = vmatprep.subr.mxu0 0.0
        %1526 = vmatpush1.msra.mxu0 0.0
        %1527 = vmatprep.subr.mxu0 0.0
        %1528 = vmatpush1.msra.mxu0 0.0
        %1529 = vmatprep.subr.mxu0 0.0
        %1530 = vmatpush1.msra.mxu0 0.0
        %1531 = vmatprep.subr.mxu0 0.0
        %1532 = vmatpush1.msra.mxu0 0.0
        %1533 = vmatprep.subr.mxu0 0.0
        %1534 = vmatpush1.msra.mxu0 0.0
        %1535 = vmatprep.subr.mxu0 0.0
        %1536 = vmatpush1.msra.mxu0 0.0
        %1537 = vmatprep.subr.mxu0 0.0
        %1538 = vmatpush1.msra.mxu0 0.0
        %1539 = vmatprep.subr.mxu0 0.0
        %1540 = vmatpush1.msra.mxu0 0.0
        %1541 = vmatprep.subr.mxu0 0.0
        %1542 = vmatpush1.msra.mxu0 0.0
        %1543 = vmatprep.subr.mxu0 0.0
        %1544 = vmatpush1.msra.mxu0 0.0
        %1545 = vmatprep.subr.mxu0 0.0
        %1546 = vmatpush1.msra.mxu0 0.0
        %1547 = vmatprep.mubr.f32.mxu0 0.0
        %1548 = vmatmul.mubr.f32.gmra.mrb[0].mxu0 %v1478
        %v1549 = vpop.f32.mrb[0].mxu0
        %v1550 = vadd.f32 0.0, %v1549
        %v1551 = vpop.f32.mrb[0].mxu0
        %1552 = vmatprep.mubr.f32.mxu0 0.0
        %1553 = vmatmul.mubr.f32.gmra.mrb[0].mxu0 %v1481
        %v1554 = vpop.f32.mrb[0].mxu0
        %v1555 = vadd.f32 0.0, %v1554
        %v1556 = vpop.f32.mrb[0].mxu0
        %1557 = vdwg.mxu0
        %v1559 = vsel %vm1092, %v1273, 0
        %v1562 = vsel %vm1092, %v1278, 0
        %1564 = vmatprep.subr.mxu0 0.0
        %1565 = vmatpush1.msra.mxu0 %v1281
        %1566 = vmatprep.subr.mxu0 0.0
        %1567 = vmatpush1.msra.mxu0 0.0
        %1568 = vmatprep.subr.mxu0 0.0
        %1569 = vmatpush1.msra.mxu0 0.0
        %1570 = vmatprep.subr.mxu0 0.0
        %1571 = vmatpush1.msra.mxu0 0.0
        %1572 = vmatprep.subr.mxu0 0.0
        %1573 = vmatpush1.msra.mxu0 0.0
        %1574 = vmatprep.subr.mxu0 0.0
        %1575 = vmatpush1.msra.mxu0 0.0
        %1576 = vmatprep.subr.mxu0 0.0
        %1577 = vmatpush1.msra.mxu0 0.0
        %1578 = vmatprep.subr.mxu0 0.0
        %1579 = vmatpush1.msra.mxu0 0.0
        %1580 = vmatprep.subr.mxu0 0.0
        %1581 = vmatpush1.msra.mxu0 0.0
        %1582 = vmatprep.subr.mxu0 0.0
        %1583 = vmatpush1.msra.mxu0 0.0
        %1584 = vmatprep.subr.mxu0 0.0
        %1585 = vmatpush1.msra.mxu0 0.0
        %1586 = vmatprep.subr.mxu0 0.0
        %1587 = vmatpush1.msra.mxu0 0.0
        %1588 = vmatprep.subr.mxu0 0.0
        %1589 = vmatpush1.msra.mxu0 0.0
        %1590 = vmatprep.subr.mxu0 0.0
        %1591 = vmatpush1.msra.mxu0 0.0
        %1592 = vmatprep.subr.mxu0 0.0
        %1593 = vmatpush1.msra.mxu0 0.0
        %1594 = vmatprep.subr.mxu0 0.0
        %1595 = vmatpush1.msra.mxu0 0.0
        %1596 = vmatprep.subr.mxu0 0.0
        %1597 = vmatpush1.msra.mxu0 0.0
        %1598 = vmatprep.subr.mxu0 0.0
        %1599 = vmatpush1.msra.mxu0 0.0
        %1600 = vmatprep.subr.mxu0 0.0
        %1601 = vmatpush1.msra.mxu0 0.0
        %1602 = vmatprep.subr.mxu0 0.0
        %1603 = vmatpush1.msra.mxu0 0.0
        %1604 = vmatprep.subr.mxu0 0.0
        %1605 = vmatpush1.msra.mxu0 0.0
        %1606 = vmatprep.subr.mxu0 0.0
        %1607 = vmatpush1.msra.mxu0 0.0
        %1608 = vmatprep.subr.mxu0 0.0
        %1609 = vmatpush1.msra.mxu0 0.0
        %1610 = vmatprep.subr.mxu0 0.0
        %1611 = vmatpush1.msra.mxu0 0.0
        %1612 = vmatprep.subr.mxu0 0.0
        %1613 = vmatpush1.msra.mxu0 0.0
        %1614 = vmatprep.subr.mxu0 0.0
        %1615 = vmatpush1.msra.mxu0 0.0
        %1616 = vmatprep.subr.mxu0 0.0
        %1617 = vmatpush1.msra.mxu0 0.0
        %1618 = vmatprep.subr.mxu0 0.0
        %1619 = vmatpush1.msra.mxu0 0.0
        %1620 = vmatprep.subr.mxu0 0.0
        %1621 = vmatpush1.msra.mxu0 0.0
        %1622 = vmatprep.subr.mxu0 0.0
        %1623 = vmatpush1.msra.mxu0 0.0
        %1624 = vmatprep.subr.mxu0 0.0
        %1625 = vmatpush1.msra.mxu0 0.0
        %1626 = vmatprep.subr.mxu0 0.0
        %1627 = vmatpush1.msra.mxu0 0.0
        %1628 = vmatprep.mubr.f32.mxu0 0.0
        %1629 = vmatmul.mubr.f32.gmra.mrb[0].mxu0 %v1559
        %v1630 = vpop.f32.mrb[0].mxu0
        %v1631 = vadd.f32 %v1550, %v1630
        %v1632 = vpop.f32.mrb[0].mxu0
        %1633 = vmatprep.mubr.f32.mxu0 0.0
        %1634 = vmatmul.mubr.f32.gmra.mrb[0].mxu0 %v1562
        %v1635 = vpop.f32.mrb[0].mxu0
        %v1636 = vadd.f32 %v1555, %v1635
        %v1637 = vpop.f32.mrb[0].mxu0
        %1638 = vdwg.mxu0
        %s1639 = scalar_lea.vmem [#allocation3], 16
        %v1640 = vld [vmem:[%s1639] sm:$0xff]
        %1641 = vrot.lane.b32.xlu0 %v1083, 112
        %v1642 = vpop.permute.xlu0 %1641
        %1643 = vrot.lane.b32.xlu0 %v1088, 112
        %v1644 = vpop.permute.xlu0 %1643
        %v1645 = vsel %vm1092, %v1642, 0
        %v1647 = vsel %vm1092, %v1644, 0
        %1649 = vmatprep.subr.mxu0 0.0
        %1650 = vmatpush1.msra.mxu0 %v1640
        %1651 = vmatprep.subr.mxu0 0.0
        %1652 = vmatpush1.msra.mxu0 0.0
        %1653 = vmatprep.subr.mxu0 0.0
        %1654 = vmatpush1.msra.mxu0 0.0
        %1655 = vmatprep.subr.mxu0 0.0
        %1656 = vmatpush1.msra.mxu0 0.0
        %1657 = vmatprep.subr.mxu0 0.0
        %1658 = vmatpush1.msra.mxu0 0.0
        %1659 = vmatprep.subr.mxu0 0.0
        %1660 = vmatpush1.msra.mxu0 0.0
        %1661 = vmatprep.subr.mxu0 0.0
        %1662 = vmatpush1.msra.mxu0 0.0
        %1663 = vmatprep.subr.mxu0 0.0
        %1664 = vmatpush1.msra.mxu0 0.0
        %1665 = vmatprep.subr.mxu0 0.0
        %1666 = vmatpush1.msra.mxu0 0.0
        %1667 = vmatprep.subr.mxu0 0.0
        %1668 = vmatpush1.msra.mxu0 0.0
        %1669 = vmatprep.subr.mxu0 0.0
        %1670 = vmatpush1.msra.mxu0 0.0
        %1671 = vmatprep.subr.mxu0 0.0
        %1672 = vmatpush1.msra.mxu0 0.0
        %1673 = vmatprep.subr.mxu0 0.0
        %1674 = vmatpush1.msra.mxu0 0.0
        %1675 = vmatprep.subr.mxu0 0.0
        %1676 = vmatpush1.msra.mxu0 0.0
        %1677 = vmatprep.subr.mxu0 0.0
        %1678 = vmatpush1.msra.mxu0 0.0
        %1679 = vmatprep.subr.mxu0 0.0
        %1680 = vmatpush1.msra.mxu0 0.0
        %1681 = vmatprep.subr.mxu0 0.0
        %1682 = vmatpush1.msra.mxu0 0.0
        %1683 = vmatprep.subr.mxu0 0.0
        %1684 = vmatpush1.msra.mxu0 0.0
        %1685 = vmatprep.subr.mxu0 0.0
        %1686 = vmatpush1.msra.mxu0 0.0
        %1687 = vmatprep.subr.mxu0 0.0
        %1688 = vmatpush1.msra.mxu0 0.0
        %1689 = vmatprep.subr.mxu0 0.0
        %1690 = vmatpush1.msra.mxu0 0.0
        %1691 = vmatprep.subr.mxu0 0.0
        %1692 = vmatpush1.msra.mxu0 0.0
        %1693 = vmatprep.subr.mxu0 0.0
        %1694 = vmatpush1.msra.mxu0 0.0
        %1695 = vmatprep.subr.mxu0 0.0
        %1696 = vmatpush1.msra.mxu0 0.0
        %1697 = vmatprep.subr.mxu0 0.0
        %1698 = vmatpush1.msra.mxu0 0.0
        %1699 = vmatprep.subr.mxu0 0.0
        %1700 = vmatpush1.msra.mxu0 0.0
        %1701 = vmatprep.subr.mxu0 0.0
        %1702 = vmatpush1.msra.mxu0 0.0
        %1703 = vmatprep.subr.mxu0 0.0
        %1704 = vmatpush1.msra.mxu0 0.0
        %1705 = vmatprep.subr.mxu0 0.0
        %1706 = vmatpush1.msra.mxu0 0.0
        %1707 = vmatprep.subr.mxu0 0.0
        %1708 = vmatpush1.msra.mxu0 0.0
        %1709 = vmatprep.subr.mxu0 0.0
        %1710 = vmatpush1.msra.mxu0 0.0
        %1711 = vmatprep.subr.mxu0 0.0
        %1712 = vmatpush1.msra.mxu0 0.0
        %1713 = vmatprep.mubr.f32.mxu0 0.0
        %1714 = vmatmul.mubr.f32.gmra.mrb[0].mxu0 %v1645
        %v1715 = vpop.f32.mrb[0].mxu0
        %v1716 = vadd.f32 0.0, %v1715
        %v1717 = vpop.f32.mrb[0].mxu0
        %1718 = vmatprep.mubr.f32.mxu0 0.0
        %1719 = vmatmul.mubr.f32.gmra.mrb[0].mxu0 %v1647
        %v1720 = vpop.f32.mrb[0].mxu0
        %v1721 = vadd.f32 0.0, %v1720
        %v1722 = vpop.f32.mrb[0].mxu0
        %1723 = vdwg.mxu0
        %v1724 = vsel %vm1009, %v1716, -inf
        %1725 = vmax.xlane.f32.xlu0 %v1724
        %v1726 = vpop.xlane.xlu0 %1725
        %v1727 = vsel %vm1009, %v1721, -inf
        %1728 = vmax.xlane.f32.xlu0 %v1727
        %v1729 = vpop.xlane.xlu0 %1728
        %v1730 = vsub.f32 %v1716, %v1726
        %v1731 = vsub.f32 %v1721, %v1729
        %v1732 = vmul.f32 %v1730, 1.442695
        %v1733 = vpow.pop %v1732
        %v1734 = vmul.f32 %v1731, 1.442695
        %v1735 = vpow.pop %v1734
        %v1736 = vsel %vm1009, %v1733, 0.0
        %1737 = vadd.xlane.f32.xlu0 %v1736
        %v1738 = vpop.xlane.xlu0 %1737
        %v1739 = vsel %vm1009, %v1735, 0.0
        %1740 = vadd.xlane.f32.xlu0 %v1739
        %v1741 = vpop.xlane.xlu0 %1740
        %v1742 = vrcp.pop %v1738
        %v1743 = vrcp.pop %v1741
        %v1744 = vmul.f32 %v1733, %v1742
        %v1745 = vmul.f32 %v1735, %v1743
        %s1746 = scalar_lea.vmem [#allocation4], 64
        %v1747 = vld [vmem:[%s1746] sm:$0xff]
        %v1748 = vld [vmem:[%s1746 + $0x8] sm:$0xff]
        %v1749 = vld [vmem:[%s1746 + $0x10] sm:$0xff]
        %v1750 = vld [vmem:[%s1746 + $0x18] sm:$0xff]
        %v1752 = vsel %vm1009, %v1744, 0
        %v1755 = vsel %vm1009, %v1745, 0
        %1757 = vmatprep.subr.mxu0 0.0
        %1758 = vmatpush1.msra.mxu0 %v1747
        %1759 = vmatprep.subr.mxu0 0.0
        %1760 = vmatpush1.msra.mxu0 %v1748
        %1761 = vmatprep.subr.mxu0 0.0
        %1762 = vmatpush1.msra.mxu0 %v1749
        %1763 = vmatprep.subr.mxu0 0.0
        %1764 = vmatpush1.msra.mxu0 %v1750
        %1765 = vmatprep.subr.mxu0 0.0
        %1766 = vmatpush1.msra.mxu0 0.0
        %1767 = vmatprep.subr.mxu0 0.0
        %1768 = vmatpush1.msra.mxu0 0.0
        %1769 = vmatprep.subr.mxu0 0.0
        %1770 = vmatpush1.msra.mxu0 0.0
        %1771 = vmatprep.subr.mxu0 0.0
        %1772 = vmatpush1.msra.mxu0 0.0
        %1773 = vmatprep.subr.mxu0 0.0
        %1774 = vmatpush1.msra.mxu0 0.0
        %1775 = vmatprep.subr.mxu0 0.0
        %1776 = vmatpush1.msra.mxu0 0.0
        %1777 = vmatprep.subr.mxu0 0.0
        %1778 = vmatpush1.msra.mxu0 0.0
        %1779 = vmatprep.subr.mxu0 0.0
        %1780 = vmatpush1.msra.mxu0 0.0
        %1781 = vmatprep.subr.mxu0 0.0
        %1782 = vmatpush1.msra.mxu0 0.0
        %1783 = vmatprep.subr.mxu0 0.0
        %1784 = vmatpush1.msra.mxu0 0.0
        %1785 = vmatprep.subr.mxu0 0.0
        %1786 = vmatpush1.msra.mxu0 0.0
        %1787 = vmatprep.subr.mxu0 0.0
        %1788 = vmatpush1.msra.mxu0 0.0
        %1789 = vmatprep.subr.mxu0 0.0
        %1790 = vmatpush1.msra.mxu0 0.0
        %1791 = vmatprep.subr.mxu0 0.0
        %1792 = vmatpush1.msra.mxu0 0.0
        %1793 = vmatprep.subr.mxu0 0.0
        %1794 = vmatpush1.msra.mxu0 0.0
        %1795 = vmatprep.subr.mxu0 0.0
        %1796 = vmatpush1.msra.mxu0 0.0
        %1797 = vmatprep.subr.mxu0 0.0
        %1798 = vmatpush1.msra.mxu0 0.0
        %1799 = vmatprep.subr.mxu0 0.0
        %1800 = vmatpush1.msra.mxu0 0.0
        %1801 = vmatprep.subr.mxu0 0.0
        %1802 = vmatpush1.msra.mxu0 0.0
        %1803 = vmatprep.subr.mxu0 0.0
        %1804 = vmatpush1.msra.mxu0 0.0
        %1805 = vmatprep.subr.mxu0 0.0
        %1806 = vmatpush1.msra.mxu0 0.0
        %1807 = vmatprep.subr.mxu0 0.0
        %1808 = vmatpush1.msra.mxu0 0.0
        %1809 = vmatprep.subr.mxu0 0.0
        %1810 = vmatpush1.msra.mxu0 0.0
        %1811 = vmatprep.subr.mxu0 0.0
        %1812 = vmatpush1.msra.mxu0 0.0
        %1813 = vmatprep.subr.mxu0 0.0
        %1814 = vmatpush1.msra.mxu0 0.0
        %1815 = vmatprep.subr.mxu0 0.0
        %1816 = vmatpush1.msra.mxu0 0.0
        %1817 = vmatprep.subr.mxu0 0.0
        %1818 = vmatpush1.msra.mxu0 0.0
        %1819 = vmatprep.subr.mxu0 0.0
        %1820 = vmatpush1.msra.mxu0 0.0
        %1821 = vmatprep.mubr.f32.mxu0 0.0
        %1822 = vmatmul.mubr.f32.gmra.mrb[0].mxu0 %v1752
        %v1823 = vpop.f32.mrb[0].mxu0
        %v1824 = vadd.f32 0.0, %v1823
        %v1825 = vpop.f32.mrb[0].mxu0
        %1826 = vmatprep.mubr.f32.mxu0 0.0
        %1827 = vmatmul.mubr.f32.gmra.mrb[0].mxu0 %v1755
        %v1828 = vpop.f32.mrb[0].mxu0
        %v1829 = vadd.f32 0.0, %v1828
        %v1830 = vpop.f32.mrb[0].mxu0
        %1831 = vdwg.mxu0
        %s1832 = scalar_lea.vmem [#allocation8], 16
        %v1833 = vld [vmem:[%s1832] sm:$0xff]
        %v1835 = vsel %vm1092, %v1824, 0
        %v1838 = vsel %vm1092, %v1829, 0
        %1840 = vmatprep.subr.mxu0 0.0
        %1841 = vmatpush1.msra.mxu0 %v1833
        %1842 = vmatprep.subr.mxu0 0.0
        %1843 = vmatpush1.msra.mxu0 0.0
        %1844 = vmatprep.subr.mxu0 0.0
        %1845 = vmatpush1.msra.mxu0 0.0
        %1846 = vmatprep.subr.mxu0 0.0
        %1847 = vmatpush1.msra.mxu0 0.0
        %1848 = vmatprep.subr.mxu0 0.0
        %1849 = vmatpush1.msra.mxu0 0.0
        %1850 = vmatprep.subr.mxu0 0.0
        %1851 = vmatpush1.msra.mxu0 0.0
        %1852 = vmatprep.subr.mxu0 0.0
        %1853 = vmatpush1.msra.mxu0 0.0
        %1854 = vmatprep.subr.mxu0 0.0
        %1855 = vmatpush1.msra.mxu0 0.0
        %1856 = vmatprep.subr.mxu0 0.0
        %1857 = vmatpush1.msra.mxu0 0.0
        %1858 = vmatprep.subr.mxu0 0.0
        %1859 = vmatpush1.msra.mxu0 0.0
        %1860 = vmatprep.subr.mxu0 0.0
        %1861 = vmatpush1.msra.mxu0 0.0
        %1862 = vmatprep.subr.mxu0 0.0
        %1863 = vmatpush1.msra.mxu0 0.0
        %1864 = vmatprep.subr.mxu0 0.0
        %1865 = vmatpush1.msra.mxu0 0.0
        %1866 = vmatprep.subr.mxu0 0.0
        %1867 = vmatpush1.msra.mxu0 0.0
        %1868 = vmatprep.subr.mxu0 0.0
        %1869 = vmatpush1.msra.mxu0 0.0
        %1870 = vmatprep.subr.mxu0 0.0
        %1871 = vmatpush1.msra.mxu0 0.0
        %1872 = vmatprep.subr.mxu0 0.0
        %1873 = vmatpush1.msra.mxu0 0.0
        %1874 = vmatprep.subr.mxu0 0.0
        %1875 = vmatpush1.msra.mxu0 0.0
        %1876 = vmatprep.subr.mxu0 0.0
        %1877 = vmatpush1.msra.mxu0 0.0
        %1878 = vmatprep.subr.mxu0 0.0
        %1879 = vmatpush1.msra.mxu0 0.0
        %1880 = vmatprep.subr.mxu0 0.0
        %1881 = vmatpush1.msra.mxu0 0.0
        %1882 = vmatprep.subr.mxu0 0.0
        %1883 = vmatpush1.msra.mxu0 0.0
        %1884 = vmatprep.subr.mxu0 0.0
        %1885 = vmatpush1.msra.mxu0 0.0
        %1886 = vmatprep.subr.mxu0 0.0
        %1887 = vmatpush1.msra.mxu0 0.0
        %1888 = vmatprep.subr.mxu0 0.0
        %1889 = vmatpush1.msra.mxu0 0.0
        %1890 = vmatprep.subr.mxu0 0.0
        %1891 = vmatpush1.msra.mxu0 0.0
        %1892 = vmatprep.subr.mxu0 0.0
        %1893 = vmatpush1.msra.mxu0 0.0
        %1894 = vmatprep.subr.mxu0 0.0
        %1895 = vmatpush1.msra.mxu0 0.0
        %1896 = vmatprep.subr.mxu0 0.0
        %1897 = vmatpush1.msra.mxu0 0.0
        %1898 = vmatprep.subr.mxu0 0.0
        %1899 = vmatpush1.msra.mxu0 0.0
        %1900 = vmatprep.subr.mxu0 0.0
        %1901 = vmatpush1.msra.mxu0 0.0
        %1902 = vmatprep.subr.mxu0 0.0
        %1903 = vmatpush1.msra.mxu0 0.0
        %1904 = vmatprep.mubr.f32.mxu0 0.0
        %1905 = vmatmul.mubr.f32.gmra.mrb[0].mxu0 %v1835
        %v1906 = vpop.f32.mrb[0].mxu0
        %v1907 = vadd.f32 0.0, %v1906
        %v1908 = vpop.f32.mrb[0].mxu0
        %1909 = vmatprep.mubr.f32.mxu0 0.0
        %1910 = vmatmul.mubr.f32.gmra.mrb[0].mxu0 %v1838
        %v1911 = vpop.f32.mrb[0].mxu0
        %v1912 = vadd.f32 0.0, %v1911
        %v1913 = vpop.f32.mrb[0].mxu0
        %1914 = vdwg.mxu0
        %v1915 = vadd.f32 %v1631, %v1907
        %v1916 = vadd.f32 %v1636, %v1912
        %s1917 = scalar_lea.vmem [#allocation3], 24
        %v1918 = vld [vmem:[%s1917] sm:$0xff]
        %1919 = vrot.lane.b32.xlu0 %v1083, 104
        %v1920 = vpop.permute.xlu0 %1919
        %1921 = vrot.lane.b32.xlu0 %v1088, 104
        %v1922 = vpop.permute.xlu0 %1921
        %v1923 = vsel %vm1092, %v1920, 0
        %v1925 = vsel %vm1092, %v1922, 0
        %1927 = vmatprep.subr.mxu0 0.0
        %1928 = vmatpush1.msra.mxu0 %v1918
        %1929 = vmatprep.subr.mxu0 0.0
        %1930 = vmatpush1.msra.mxu0 0.0
        %1931 = vmatprep.subr.mxu0 0.0
        %1932 = vmatpush1.msra.mxu0 0.0
        %1933 = vmatprep.subr.mxu0 0.0
        %1934 = vmatpush1.msra.mxu0 0.0
        %1935 = vmatprep.subr.mxu0 0.0
        %1936 = vmatpush1.msra.mxu0 0.0
        %1937 = vmatprep.subr.mxu0 0.0
        %1938 = vmatpush1.msra.mxu0 0.0
        %1939 = vmatprep.subr.mxu0 0.0
        %1940 = vmatpush1.msra.mxu0 0.0
        %1941 = vmatprep.subr.mxu0 0.0
        %1942 = vmatpush1.msra.mxu0 0.0
        %1943 = vmatprep.subr.mxu0 0.0
        %1944 = vmatpush1.msra.mxu0 0.0
        %1945 = vmatprep.subr.mxu0 0.0
        %1946 = vmatpush1.msra.mxu0 0.0
        %1947 = vmatprep.subr.mxu0 0.0
        %1948 = vmatpush1.msra.mxu0 0.0
        %1949 = vmatprep.subr.mxu0 0.0
        %1950 = vmatpush1.msra.mxu0 0.0
        %1951 = vmatprep.subr.mxu0 0.0
        %1952 = vmatpush1.msra.mxu0 0.0
        %1953 = vmatprep.subr.mxu0 0.0
        %1954 = vmatpush1.msra.mxu0 0.0
        %1955 = vmatprep.subr.mxu0 0.0
        %1956 = vmatpush1.msra.mxu0 0.0
        %1957 = vmatprep.subr.mxu0 0.0
        %1958 = vmatpush1.msra.mxu0 0.0
        %1959 = vmatprep.subr.mxu0 0.0
        %1960 = vmatpush1.msra.mxu0 0.0
        %1961 = vmatprep.subr.mxu0 0.0
        %1962 = vmatpush1.msra.mxu0 0.0
        %1963 = vmatprep.subr.mxu0 0.0
        %1964 = vmatpush1.msra.mxu0 0.0
        %1965 = vmatprep.subr.mxu0 0.0
        %1966 = vmatpush1.msra.mxu0 0.0
        %1967 = vmatprep.subr.mxu0 0.0
        %1968 = vmatpush1.msra.mxu0 0.0
        %1969 = vmatprep.subr.mxu0 0.0
        %1970 = vmatpush1.msra.mxu0 0.0
        %1971 = vmatprep.subr.mxu0 0.0
        %1972 = vmatpush1.msra.mxu0 0.0
        %1973 = vmatprep.subr.mxu0 0.0
        %1974 = vmatpush1.msra.mxu0 0.0
        %1975 = vmatprep.subr.mxu0 0.0
        %1976 = vmatpush1.msra.mxu0 0.0
        %1977 = vmatprep.subr.mxu0 0.0
        %1978 = vmatpush1.msra.mxu0 0.0
        %1979 = vmatprep.subr.mxu0 0.0
        %1980 = vmatpush1.msra.mxu0 0.0
        %1981 = vmatprep.subr.mxu0 0.0
        %1982 = vmatpush1.msra.mxu0 0.0
        %1983 = vmatprep.subr.mxu0 0.0
        %1984 = vmatpush1.msra.mxu0 0.0
        %1985 = vmatprep.subr.mxu0 0.0
        %1986 = vmatpush1.msra.mxu0 0.0
        %1987 = vmatprep.subr.mxu0 0.0
        %1988 = vmatpush1.msra.mxu0 0.0
        %1989 = vmatprep.subr.mxu0 0.0
        %1990 = vmatpush1.msra.mxu0 0.0
        %1991 = vmatprep.mubr.f32.mxu0 0.0
        %1992 = vmatmul.mubr.f32.gmra.mrb[0].mxu0 %v1923
        %v1993 = vpop.f32.mrb[0].mxu0
        %v1994 = vadd.f32 0.0, %v1993
        %v1995 = vpop.f32.mrb[0].mxu0
        %1996 = vmatprep.mubr.f32.mxu0 0.0
        %1997 = vmatmul.mubr.f32.gmra.mrb[0].mxu0 %v1925
        %v1998 = vpop.f32.mrb[0].mxu0
        %v1999 = vadd.f32 0.0, %v1998
        %v2000 = vpop.f32.mrb[0].mxu0
        %2001 = vdwg.mxu0
        %v2002 = vsel %vm1009, %v1994, -inf
        %2003 = vmax.xlane.f32.xlu0 %v2002
        %v2004 = vpop.xlane.xlu0 %2003
        %v2005 = vsel %vm1009, %v1999, -inf
        %2006 = vmax.xlane.f32.xlu0 %v2005
        %v2007 = vpop.xlane.xlu0 %2006
        %v2008 = vsub.f32 %v1994, %v2004
        %v2009 = vsub.f32 %v1999, %v2007
        %v2010 = vmul.f32 %v2008, 1.442695
        %v2011 = vpow.pop %v2010
        %v2012 = vmul.f32 %v2009, 1.442695
        %v2013 = vpow.pop %v2012
        %v2014 = vsel %vm1009, %v2011, 0.0
        %2015 = vadd.xlane.f32.xlu0 %v2014
        %v2016 = vpop.xlane.xlu0 %2015
        %v2017 = vsel %vm1009, %v2013, 0.0
        %2018 = vadd.xlane.f32.xlu0 %v2017
        %v2019 = vpop.xlane.xlu0 %2018
        %v2020 = vrcp.pop %v2016
        %v2021 = vrcp.pop %v2019
        %v2022 = vmul.f32 %v2011, %v2020
        %v2023 = vmul.f32 %v2013, %v2021
        %s2024 = scalar_lea.vmem [#allocation4], 96
        %v2025 = vld [vmem:[%s2024] sm:$0xff]
        %v2026 = vld [vmem:[%s2024 + $0x8] sm:$0xff]
        %v2027 = vld [vmem:[%s2024 + $0x10] sm:$0xff]
        %v2028 = vld [vmem:[%s2024 + $0x18] sm:$0xff]
        %v2030 = vsel %vm1009, %v2022, 0
        %v2033 = vsel %vm1009, %v2023, 0
        %2035 = vmatprep.subr.mxu0 0.0
        %2036 = vmatpush1.msra.mxu0 %v2025
        %2037 = vmatprep.subr.mxu0 0.0
        %2038 = vmatpush1.msra.mxu0 %v2026
        %2039 = vmatprep.subr.mxu0 0.0
        %2040 = vmatpush1.msra.mxu0 %v2027
        %2041 = vmatprep.subr.mxu0 0.0
        %2042 = vmatpush1.msra.mxu0 %v2028
        %2043 = vmatprep.subr.mxu0 0.0
        %2044 = vmatpush1.msra.mxu0 0.0
        %2045 = vmatprep.subr.mxu0 0.0
        %2046 = vmatpush1.msra.mxu0 0.0
        %2047 = vmatprep.subr.mxu0 0.0
        %2048 = vmatpush1.msra.mxu0 0.0
        %2049 = vmatprep.subr.mxu0 0.0
        %2050 = vmatpush1.msra.mxu0 0.0
        %2051 = vmatprep.subr.mxu0 0.0
        %2052 = vmatpush1.msra.mxu0 0.0
        %2053 = vmatprep.subr.mxu0 0.0
        %2054 = vmatpush1.msra.mxu0 0.0
        %2055 = vmatprep.subr.mxu0 0.0
        %2056 = vmatpush1.msra.mxu0 0.0
        %2057 = vmatprep.subr.mxu0 0.0
        %2058 = vmatpush1.msra.mxu0 0.0
        %2059 = vmatprep.subr.mxu0 0.0
        %2060 = vmatpush1.msra.mxu0 0.0
        %2061 = vmatprep.subr.mxu0 0.0
        %2062 = vmatpush1.msra.mxu0 0.0
        %2063 = vmatprep.subr.mxu0 0.0
        %2064 = vmatpush1.msra.mxu0 0.0
        %2065 = vmatprep.subr.mxu0 0.0
        %2066 = vmatpush1.msra.mxu0 0.0
        %2067 = vmatprep.subr.mxu0 0.0
        %2068 = vmatpush1.msra.mxu0 0.0
        %2069 = vmatprep.subr.mxu0 0.0
        %2070 = vmatpush1.msra.mxu0 0.0
        %2071 = vmatprep.subr.mxu0 0.0
        %2072 = vmatpush1.msra.mxu0 0.0
        %2073 = vmatprep.subr.mxu0 0.0
        %2074 = vmatpush1.msra.mxu0 0.0
        %2075 = vmatprep.subr.mxu0 0.0
        %2076 = vmatpush1.msra.mxu0 0.0
        %2077 = vmatprep.subr.mxu0 0.0
        %2078 = vmatpush1.msra.mxu0 0.0
        %2079 = vmatprep.subr.mxu0 0.0
        %2080 = vmatpush1.msra.mxu0 0.0
        %2081 = vmatprep.subr.mxu0 0.0
        %2082 = vmatpush1.msra.mxu0 0.0
        %2083 = vmatprep.subr.mxu0 0.0
        %2084 = vmatpush1.msra.mxu0 0.0
        %2085 = vmatprep.subr.mxu0 0.0
        %2086 = vmatpush1.msra.mxu0 0.0
        %2087 = vmatprep.subr.mxu0 0.0
        %2088 = vmatpush1.msra.mxu0 0.0
        %2089 = vmatprep.subr.mxu0 0.0
        %2090 = vmatpush1.msra.mxu0 0.0
        %2091 = vmatprep.subr.mxu0 0.0
        %2092 = vmatpush1.msra.mxu0 0.0
        %2093 = vmatprep.subr.mxu0 0.0
        %2094 = vmatpush1.msra.mxu0 0.0
        %2095 = vmatprep.subr.mxu0 0.0
        %2096 = vmatpush1.msra.mxu0 0.0
        %2097 = vmatprep.subr.mxu0 0.0
        %2098 = vmatpush1.msra.mxu0 0.0
        %2099 = vmatprep.mubr.f32.mxu0 0.0
        %2100 = vmatmul.mubr.f32.gmra.mrb[0].mxu0 %v2030
        %v2101 = vpop.f32.mrb[0].mxu0
        %v2102 = vadd.f32 0.0, %v2101
        %v2103 = vpop.f32.mrb[0].mxu0
        %2104 = vmatprep.mubr.f32.mxu0 0.0
        %2105 = vmatmul.mubr.f32.gmra.mrb[0].mxu0 %v2033
        %v2106 = vpop.f32.mrb[0].mxu0
        %v2107 = vadd.f32 0.0, %v2106
        %v2108 = vpop.f32.mrb[0].mxu0
        %2109 = vdwg.mxu0
        %s2110 = scalar_lea.vmem [#allocation8], 24
        %v2111 = vld [vmem:[%s2110] sm:$0xff]
        %v2113 = vsel %vm1092, %v2102, 0
        %v2116 = vsel %vm1092, %v2107, 0
        %2118 = vmatprep.subr.mxu0 0.0
        %2119 = vmatpush1.msra.mxu0 %v2111
        %2120 = vmatprep.subr.mxu0 0.0
        %2121 = vmatpush1.msra.mxu0 0.0
        %2122 = vmatprep.subr.mxu0 0.0
        %2123 = vmatpush1.msra.mxu0 0.0
        %2124 = vmatprep.subr.mxu0 0.0
        %2125 = vmatpush1.msra.mxu0 0.0
        %2126 = vmatprep.subr.mxu0 0.0
        %2127 = vmatpush1.msra.mxu0 0.0
        %2128 = vmatprep.subr.mxu0 0.0
        %2129 = vmatpush1.msra.mxu0 0.0
        %2130 = vmatprep.subr.mxu0 0.0
        %2131 = vmatpush1.msra.mxu0 0.0
        %2132 = vmatprep.subr.mxu0 0.0
        %2133 = vmatpush1.msra.mxu0 0.0
        %2134 = vmatprep.subr.mxu0 0.0
        %2135 = vmatpush1.msra.mxu0 0.0
        %2136 = vmatprep.subr.mxu0 0.0
        %2137 = vmatpush1.msra.mxu0 0.0
        %2138 = vmatprep.subr.mxu0 0.0
        %2139 = vmatpush1.msra.mxu0 0.0
        %2140 = vmatprep.subr.mxu0 0.0
        %2141 = vmatpush1.msra.mxu0 0.0
        %2142 = vmatprep.subr.mxu0 0.0
        %2143 = vmatpush1.msra.mxu0 0.0
        %2144 = vmatprep.subr.mxu0 0.0
        %2145 = vmatpush1.msra.mxu0 0.0
        %2146 = vmatprep.subr.mxu0 0.0
        %2147 = vmatpush1.msra.mxu0 0.0
        %2148 = vmatprep.subr.mxu0 0.0
        %2149 = vmatpush1.msra.mxu0 0.0
        %2150 = vmatprep.subr.mxu0 0.0
        %2151 = vmatpush1.msra.mxu0 0.0
        %2152 = vmatprep.subr.mxu0 0.0
        %2153 = vmatpush1.msra.mxu0 0.0
        %2154 = vmatprep.subr.mxu0 0.0
        %2155 = vmatpush1.msra.mxu0 0.0
        %2156 = vmatprep.subr.mxu0 0.0
        %2157 = vmatpush1.msra.mxu0 0.0
        %2158 = vmatprep.subr.mxu0 0.0
        %2159 = vmatpush1.msra.mxu0 0.0
        %2160 = vmatprep.subr.mxu0 0.0
        %2161 = vmatpush1.msra.mxu0 0.0
        %2162 = vmatprep.subr.mxu0 0.0
        %2163 = vmatpush1.msra.mxu0 0.0
        %2164 = vmatprep.subr.mxu0 0.0
        %2165 = vmatpush1.msra.mxu0 0.0
        %2166 = vmatprep.subr.mxu0 0.0
        %2167 = vmatpush1.msra.mxu0 0.0
        %2168 = vmatprep.subr.mxu0 0.0
        %2169 = vmatpush1.msra.mxu0 0.0
        %2170 = vmatprep.subr.mxu0 0.0
        %2171 = vmatpush1.msra.mxu0 0.0
        %2172 = vmatprep.subr.mxu0 0.0
        %2173 = vmatpush1.msra.mxu0 0.0
        %2174 = vmatprep.subr.mxu0 0.0
        %2175 = vmatpush1.msra.mxu0 0.0
        %2176 = vmatprep.subr.mxu0 0.0
        %2177 = vmatpush1.msra.mxu0 0.0
        %2178 = vmatprep.subr.mxu0 0.0
        %2179 = vmatpush1.msra.mxu0 0.0
        %2180 = vmatprep.subr.mxu0 0.0
        %2181 = vmatpush1.msra.mxu0 0.0
        %2182 = vmatprep.mubr.f32.mxu0 0.0
        %2183 = vmatmul.mubr.f32.gmra.mrb[0].mxu0 %v2113
        %v2184 = vpop.f32.mrb[0].mxu0
        %v2185 = vadd.f32 0.0, %v2184
        %v2186 = vpop.f32.mrb[0].mxu0
        %2187 = vmatprep.mubr.f32.mxu0 0.0
        %2188 = vmatmul.mubr.f32.gmra.mrb[0].mxu0 %v2116
        %v2189 = vpop.f32.mrb[0].mxu0
        %v2190 = vadd.f32 0.0, %v2189
        %v2191 = vpop.f32.mrb[0].mxu0
        %2192 = vdwg.mxu0
        %v2193 = vadd.f32 %v1915, %v2185
        %v2194 = vadd.f32 %v1916, %v2190
        %v2195 = vld [vmem:[%s8] sm:$0x1]
        %v2197 = vlaneseq
        %v2198 = vshrl.u32 %v2197, 7
        %v2199 = vsub.s32 0, %v2198
        %v2200 = vrot.slane %v2195, %v2199
        %v2202 = vadd.f32 %v2193, %v2200
        %v2203 = vadd.f32 %v2194, %v2200
        %v2204 = vadd.f32 %v993, %v2202
        %v2205 = vadd.f32 %v994, %v2203
        %v2206 = vsel %vm1009, %v2204, 0.0
        %2207 = vadd.xlane.f32.xlu0 %v2206
        %v2208 = vpop.xlane.xlu0 %2207
        %v2209 = vsel %vm1009, %v2205, 0.0
        %2210 = vadd.xlane.f32.xlu0 %v2209
        %v2211 = vpop.xlane.xlu0 %2210
        %v2212 = vrcp.pop 32.0
        %v2213 = vmul.f32 %v2208, %v2212
        %v2214 = vmul.f32 %v2211, %v2212
        %v2215 = vsub.f32 %v2204, %v2213
        %v2216 = vsub.f32 %v2205, %v2214
        %v2217 = vmul.f32 %v2215, %v2215
        %v2218 = vmul.f32 %v2216, %v2216
        %v2219 = vsel %vm1009, %v2217, 0.0
        %2220 = vadd.xlane.f32.xlu0 %v2219
        %v2221 = vpop.xlane.xlu0 %2220
        %v2222 = vsel %vm1009, %v2218, 0.0
        %2223 = vadd.xlane.f32.xlu0 %v2222
        %v2224 = vpop.xlane.xlu0 %2223
        %v2225 = vmul.f32 %v2221, %v2212
        %v2226 = vmul.f32 %v2224, %v2212
        %v2227 = vadd.f32 %v2225, 1e-06
        %v2228 = vadd.f32 %v2226, 1e-06
        %v2229 = vrsqrt.pop %v2227
        %v2230 = vrsqrt.pop %v2228
        %v2231 = vmul.f32 %v2215, %v2229
        %v2232 = vmul.f32 %v2216, %v2230
        %v2233 = vld [vmem:[%s9] sm:$0x1]
        %v2235 = vlaneseq
        %v2236 = vshrl.u32 %v2235, 7
        %v2237 = vsub.s32 0, %v2236
        %v2238 = vrot.slane %v2233, %v2237
        %v2240 = vmul.f32 %v2231, %v2238
        %v2241 = vmul.f32 %v2232, %v2238
        %v2242 = vld [vmem:[%s10] sm:$0x1]
        %v2244 = vlaneseq
        %v2245 = vshrl.u32 %v2244, 7
        %v2246 = vsub.s32 0, %v2245
        %v2247 = vrot.slane %v2242, %v2246
        %v2249 = vadd.f32 %v2240, %v2247
        %v2250 = vadd.f32 %v2241, %v2247
        %v2251 = vld [vmem:[#allocation10] sm:$0xff]
        %v2252 = vld [vmem:[#allocation10 + $0x8] sm:$0xff]
        %v2253 = vld [vmem:[#allocation10 + $0x10] sm:$0xff]
        %v2254 = vld [vmem:[#allocation10 + $0x18] sm:$0xff]
        %v2255 = vld [vmem:[%s12] sm:$0x1]
        %v2257 = vlaneseq
        %v2258 = vshrl.u32 %v2257, 7
        %v2259 = vsub.s32 0, %v2258
        %v2260 = vrot.slane %v2255, %v2259
        %v2263 = vsel %vm1009, %v2249, 0
        %v2266 = vsel %vm1009, %v2250, 0
        %2268 = vmatprep.subr.mxu0 0.0
        %2269 = vmatpush1.msra.mxu0 %v2251
        %2270 = vmatprep.subr.mxu0 0.0
        %2271 = vmatpush1.msra.mxu0 %v2252
        %2272 = vmatprep.subr.mxu0 0.0
        %2273 = vmatpush1.msra.mxu0 %v2253
        %2274 = vmatprep.subr.mxu0 0.0
        %2275 = vmatpush1.msra.mxu0 %v2254
        %2276 = vmatprep.subr.mxu0 0.0
        %2277 = vmatpush1.msra.mxu0 0.0
        %2278 = vmatprep.subr.mxu0 0.0
        %2279 = vmatpush1.msra.mxu0 0.0
        %2280 = vmatprep.subr.mxu0 0.0
        %2281 = vmatpush1.msra.mxu0 0.0
        %2282 = vmatprep.subr.mxu0 0.0
        %2283 = vmatpush1.msra.mxu0 0.0
        %2284 = vmatprep.subr.mxu0 0.0
        %2285 = vmatpush1.msra.mxu0 0.0
        %2286 = vmatprep.subr.mxu0 0.0
        %2287 = vmatpush1.msra.mxu0 0.0
        %2288 = vmatprep.subr.mxu0 0.0
        %2289 = vmatpush1.msra.mxu0 0.0
        %2290 = vmatprep.subr.mxu0 0.0
        %2291 = vmatpush1.msra.mxu0 0.0
        %2292 = vmatprep.subr.mxu0 0.0
        %2293 = vmatpush1.msra.mxu0 0.0
        %2294 = vmatprep.subr.mxu0 0.0
        %2295 = vmatpush1.msra.mxu0 0.0
        %2296 = vmatprep.subr.mxu0 0.0
        %2297 = vmatpush1.msra.mxu0 0.0
        %2298 = vmatprep.subr.mxu0 0.0
        %2299 = vmatpush1.msra.mxu0 0.0
        %2300 = vmatprep.subr.mxu0 0.0
        %2301 = vmatpush1.msra.mxu0 0.0
        %2302 = vmatprep.subr.mxu0 0.0
        %2303 = vmatpush1.msra.mxu0 0.0
        %2304 = vmatprep.subr.mxu0 0.0
        %2305 = vmatpush1.msra.mxu0 0.0
        %2306 = vmatprep.subr.mxu0 0.0
        %2307 = vmatpush1.msra.mxu0 0.0
        %2308 = vmatprep.subr.mxu0 0.0
        %2309 = vmatpush1.msra.mxu0 0.0
        %2310 = vmatprep.subr.mxu0 0.0
        %2311 = vmatpush1.msra.mxu0 0.0
        %2312 = vmatprep.subr.mxu0 0.0
        %2313 = vmatpush1.msra.mxu0 0.0
        %2314 = vmatprep.subr.mxu0 0.0
        %2315 = vmatpush1.msra.mxu0 0.0
        %2316 = vmatprep.subr.mxu0 0.0
        %2317 = vmatpush1.msra.mxu0 0.0
        %2318 = vmatprep.subr.mxu0 0.0
        %2319 = vmatpush1.msra.mxu0 0.0
        %2320 = vmatprep.subr.mxu0 0.0
        %2321 = vmatpush1.msra.mxu0 0.0
        %2322 = vmatprep.subr.mxu0 0.0
        %2323 = vmatpush1.msra.mxu0 0.0
        %2324 = vmatprep.subr.mxu0 0.0
        %2325 = vmatpush1.msra.mxu0 0.0
        %2326 = vmatprep.subr.mxu0 0.0
        %2327 = vmatpush1.msra.mxu0 0.0
        %2328 = vmatprep.subr.mxu0 0.0
        %2329 = vmatpush1.msra.mxu0 0.0
        %2330 = vmatprep.subr.mxu0 0.0
        %2331 = vmatpush1.msra.mxu0 0.0
        %2332 = vmatprep.mubr.f32.mxu0 0.0
        %2333 = vmatmul.mubr.f32.gmra.mrb[0].mxu0 %v2263
        %v2334 = vpop.f32.mrb[0].mxu0
        %v2335 = vadd.f32 %v2260, %v2334
        %v2336 = vpop.f32.mrb[0].mxu0
        %2337 = vmatprep.mubr.f32.mxu0 0.0
        %2338 = vmatmul.mubr.f32.gmra.mrb[0].mxu0 %v2266
        %v2339 = vpop.f32.mrb[0].mxu0
        %v2340 = vadd.f32 %v2260, %v2339
        %v2341 = vpop.f32.mrb[0].mxu0
        %2342 = vdwg.mxu0
        %v2343 = vmul.f32 %v2335, 0.5
        %v2344 = vmul.f32 %v2340, 0.5
        %v2345 = vmul.f32 %v2335, %v2335
        %v2346 = vmul.f32 %v2340, %v2340
        %v2347 = vmul.f32 %v2345, %v2335
        %v2348 = vmul.f32 %v2346, %v2340
        %v2349 = vmul.f32 %v2347, 0.044715
        %v2350 = vmul.f32 %v2348, 0.044715
        %v2351 = vadd.f32 %v2335, %v2349
        %v2352 = vadd.f32 %v2340, %v2350
        %v2353 = vmul.f32 %v2351, 0.7978846
        %v2354 = vmul.f32 %v2352, 0.7978846
        %v2355 = vtanh.pop %v2353
        %v2356 = vtanh.pop %v2354
        %v2357 = vadd.f32 %v2355, 1.0
        %v2358 = vadd.f32 %v2356, 1.0
        %v2359 = vmul.f32 %v2343, %v2357
        %v2360 = vmul.f32 %v2344, %v2358
        %v2361 = vld [vmem:[%s13] sm:$0xff]
        %v2362 = vld [vmem:[%s13 + $0x8] sm:$0xff]
        %v2363 = vld [vmem:[%s13 + $0x10] sm:$0xff]
        %v2364 = vld [vmem:[%s13 + $0x18] sm:$0xff]
        %v2365 = vld [vmem:[%s13 + $0x20] sm:$0xff]
        %v2366 = vld [vmem:[%s13 + $0x28] sm:$0xff]
        %v2367 = vld [vmem:[%s13 + $0x30] sm:$0xff]
        %v2368 = vld [vmem:[%s13 + $0x38] sm:$0xff]
        %v2369 = vld [vmem:[%s14] sm:$0x1]
        %v2371 = vlaneseq
        %v2372 = vshrl.u32 %v2371, 7
        %v2373 = vsub.s32 0, %v2372
        %v2374 = vrot.slane %v2369, %v2373
        %vm2376 = vcmask 523264
        %v2378 = vsel %vm2376, %v2359, 0
        %v2381 = vsel %vm2376, %v2360, 0
        %2383 = vmatprep.subr.mxu0 0.0
        %2384 = vmatpush1.msra.mxu0 %v2361
        %2385 = vmatprep.subr.mxu0 0.0
        %2386 = vmatpush1.msra.mxu0 %v2362
        %2387 = vmatprep.subr.mxu0 0.0
        %2388 = vmatpush1.msra.mxu0 %v2363
        %2389 = vmatprep.subr.mxu0 0.0
        %2390 = vmatpush1.msra.mxu0 %v2364
        %2391 = vmatprep.subr.mxu0 0.0
        %2392 = vmatpush1.msra.mxu0 %v2365
        %2393 = vmatprep.subr.mxu0 0.0
        %2394 = vmatpush1.msra.mxu0 %v2366
        %2395 = vmatprep.subr.mxu0 0.0
        %2396 = vmatpush1.msra.mxu0 %v2367
        %2397 = vmatprep.subr.mxu0 0.0
        %2398 = vmatpush1.msra.mxu0 %v2368
        %2399 = vmatprep.subr.mxu0 0.0
        %2400 = vmatpush1.msra.mxu0 0.0
        %2401 = vmatprep.subr.mxu0 0.0
        %2402 = vmatpush1.msra.mxu0 0.0
        %2403 = vmatprep.subr.mxu0 0.0
        %2404 = vmatpush1.msra.mxu0 0.0
        %2405 = vmatprep.subr.mxu0 0.0
        %2406 = vmatpush1.msra.mxu0 0.0
        %2407 = vmatprep.subr.mxu0 0.0
        %2408 = vmatpush1.msra.mxu0 0.0
        %2409 = vmatprep.subr.mxu0 0.0
        %2410 = vmatpush1.msra.mxu0 0.0
        %2411 = vmatprep.subr.mxu0 0.0
        %2412 = vmatpush1.msra.mxu0 0.0
        %2413 = vmatprep.subr.mxu0 0.0
        %2414 = vmatpush1.msra.mxu0 0.0
        %2415 = vmatprep.subr.mxu0 0.0
        %2416 = vmatpush1.msra.mxu0 0.0
        %2417 = vmatprep.subr.mxu0 0.0
        %2418 = vmatpush1.msra.mxu0 0.0
        %2419 = vmatprep.subr.mxu0 0.0
        %2420 = vmatpush1.msra.mxu0 0.0
        %2421 = vmatprep.subr.mxu0 0.0
        %2422 = vmatpush1.msra.mxu0 0.0
        %2423 = vmatprep.subr.mxu0 0.0
        %2424 = vmatpush1.msra.mxu0 0.0
        %2425 = vmatprep.subr.mxu0 0.0
        %2426 = vmatpush1.msra.mxu0 0.0
        %2427 = vmatprep.subr.mxu0 0.0
        %2428 = vmatpush1.msra.mxu0 0.0
        %2429 = vmatprep.subr.mxu0 0.0
        %2430 = vmatpush1.msra.mxu0 0.0
        %2431 = vmatprep.subr.mxu0 0.0
        %2432 = vmatpush1.msra.mxu0 0.0
        %2433 = vmatprep.subr.mxu0 0.0
        %2434 = vmatpush1.msra.mxu0 0.0
        %2435 = vmatprep.subr.mxu0 0.0
        %2436 = vmatpush1.msra.mxu0 0.0
        %2437 = vmatprep.subr.mxu0 0.0
        %2438 = vmatpush1.msra.mxu0 0.0
        %2439 = vmatprep.subr.mxu0 0.0
        %2440 = vmatpush1.msra.mxu0 0.0
        %2441 = vmatprep.subr.mxu0 0.0
        %2442 = vmatpush1.msra.mxu0 0.0
        %2443 = vmatprep.subr.mxu0 0.0
        %2444 = vmatpush1.msra.mxu0 0.0
        %2445 = vmatprep.subr.mxu0 0.0
        %2446 = vmatpush1.msra.mxu0 0.0
        %2447 = vmatprep.mubr.f32.mxu0 0.0
        %2448 = vmatmul.mubr.f32.gmra.mrb[0].mxu0 %v2378
        %v2449 = vpop.f32.mrb[0].mxu0
        %v2450 = vadd.f32 %v2374, %v2449
        %v2451 = vpop.f32.mrb[0].mxu0
        %2452 = vmatprep.mubr.f32.mxu0 0.0
        %2453 = vmatmul.mubr.f32.gmra.mrb[0].mxu0 %v2381
        %v2454 = vpop.f32.mrb[0].mxu0
        %v2455 = vadd.f32 %v2374, %v2454
        %v2456 = vpop.f32.mrb[0].mxu0
        %2457 = vdwg.mxu0
        %v2458 = vadd.f32 %v2204, %v2450
        %v2459 = vadd.f32 %v2205, %v2455
        %2460 = vst.msk [vmem:[%s545] sm:$0xff] %vm1009, %v2458
        %2461 = vst.msk [vmem:[%s545 + $0x8] sm:$0xff] %vm1009, %v2459
        %s2462 = sand.u32 %s373, 1
        %s2463 = scalar_lea.sflag [#allocation7], %s2462
        %s2464 = sand.u32 %s373, 1
        %s2465 = smul.addr %s2464, 16
        %s2466 = scalar_lea.vmem [#allocation11], %s2465
        // Predicated region
        $region97: #{tpu_custom_call.1} parent=79 // pred_check
          %p2467 = pneg %p383
        $region98: #{tpu_custom_call.1} parent=79 // pred_check_branch
          %2469 = sbr.rel (%p2467) target = $region100
        $region99: #{tpu_custom_call.1} parent=79 // pred_region
          %s2470 = smul.u32 2, %s36
          %s2472 = ssub.s32 256, 256
          %2473 = vsyncadd %s2463, %s2472
          %s2474 = smul.addr %s35, 4
          %s2475 = sadd.s32 %s2470, %s2474
          %s2476 = smul.addr %s2475, 128
          %s2477 = scalar_lea.hbm %s15, %s2476
          %s2478 = sshll.u32 %s2466, 4
          %s2479 = int_to_ptr.vmem [resolvable:$true] %s2478
          %2484 = dma.vmem_to_hbm [thread:$0]  %s2479, 256, %s2477, %s2463, 128, 128, 8
        $region100: #{tpu_custom_call.1} parent=79 // pred_fallthru
          _
      $region80: #{tpu_custom_call.1} parent=5 // pred_fallthru
        _
      %p2485 = scmp.le.s32.totalorder 2, %s26
      // Predicated region
      $region101: #{tpu_custom_call.1} parent=5 // pred_check
        %p2486 = pneg %p2485
      $region102: #{tpu_custom_call.1} parent=5 // pred_check_branch
        %2488 = sbr.rel (%p2486) target = $region104
      $region103: #{tpu_custom_call.1} parent=5 // pred_region
        %s2489 = ssub.s32 %s26, 2
        // Predicated region
        $region105: #{tpu_custom_call.1} parent=103 // pred_check
          %p2490 = pneg %p389
        $region106: #{tpu_custom_call.1} parent=103 // pred_check_branch
          %2492 = sbr.rel (%p2490) target = $region108
        $region107: #{tpu_custom_call.1} parent=103 // pred_region
          %s2493 = sand.u32 %s374, 1
          %s2494 = scalar_lea.sflag [#allocation7], %s2493
          %s2495 = sand.u32 %s374, 1
          %s2496 = smul.addr %s2495, 16
          %s2497 = scalar_lea.vmem [#allocation11], %s2496
          %2498 = dma.done %s2494, 256
        $region108: #{tpu_custom_call.1} parent=103 // pred_fallthru
          _
      $region104: #{tpu_custom_call.1} parent=5 // pred_fallthru
        _
    $region6: #{tpu_custom_call.1} parent=1 // loop_footer
      %s30 = sadd.s32 1, %s26
    $region7: #{tpu_custom_call.1} parent=1 // loop_footer_branch
      %25 = sbr.rel target = $region3
    $region8: #{tpu_custom_call.1} parent=1 // loop_exit
      _
    %2499 = vsyncpa [#allocation6], 1
    %s2500 = scalar_lea.sflag [#allocation6], 1
    %2501 = vsyncpa %s2500, 1
    %2502 = vsyncpa [#allocation9], 1
    %2503 = vsyncpa [#allocation7], 1
    %s2504 = scalar_lea.sflag [#allocation7], 1
    %2505 = vsyncpa %s2504, 1

// kernel: tpu_custom_call.1
$region0: #{tpu_custom_call.1}
  #allocation0 [shape = 'u32[]', space=smem, size = 0x4, offset = 0x4, fixed_abs, tag = 'smem constant byte address 0x4 - core index']
  #allocation1 [shape = 'u32[144,128]{1,0:T(1,128)}', space=vmem, size = 0x12000, scoped, tag = 'internal scratch']
  #allocation2 [shape = 'f32[32,32]{1,0:T(8,128)}', space=vmem, size = 0x4000, scoped, tag = 'scratch operand']
  #allocation3 [shape = 'f32[4,8,32]{2,1,0:T(8,128)}', space=vmem, size = 0x4000, scoped, tag = 'scratch operand']
  #allocation4 [shape = 'f32[4,32,8]{2,1,0:T(8,128)}', space=vmem, size = 0x10000, scoped, tag = 'scratch operand']
  %s0 = inlined_call_operand.vmem [shape: f32[2,32,32], index: 0, kind: input, shape index: {}]
  %s1 = inlined_call_operand.vmem [shape: f32[1,32], index: 1, kind: input, shape index: {}]
  %s2 = inlined_call_operand.vmem [shape: f32[1,32], index: 2, kind: input, shape index: {}]
  %s3 = inlined_call_operand.vmem [shape: f32[32,32], index: 3, kind: input, shape index: {}]
  %s4 = inlined_call_operand.vmem [shape: f32[1,32], index: 4, kind: input, shape index: {}]
  %s5 = inlined_call_operand.hbm [shape: f32[32,64], index: 5, kind: input, shape index: {}]
  %s6 = inlined_call_operand.vmem [shape: f32[1,64], index: 6, kind: input, shape index: {}]
  %s7 = inlined_call_operand.hbm [shape: f32[4,8,32], index: 7, kind: input, shape index: {}]
  %s8 = inlined_call_operand.vmem [shape: f32[1,32], index: 8, kind: input, shape index: {}]
  %s9 = inlined_call_operand.vmem [shape: f32[1,32], index: 9, kind: input, shape index: {}]
  %s10 = inlined_call_operand.vmem [shape: f32[1,32], index: 10, kind: input, shape index: {}]
  %s11 = inlined_call_operand.hbm [shape: f32[32,64], index: 11, kind: input, shape index: {}]
  %s12 = inlined_call_operand.vmem [shape: f32[1,64], index: 12, kind: input, shape index: {}]
  %s13 = inlined_call_operand.vmem [shape: f32[64,32], index: 13, kind: input, shape index: {}]
  %s14 = inlined_call_operand.vmem [shape: f32[1,32], index: 14, kind: input, shape index: {}]
  %s15 = inlined_call_operand.hbm [shape: f32[2,32,32], index: 15, kind: output, shape index: {}]
  %s16 = sld [smem:[#allocation0]]
  $region109: #{tpu_custom_call.1} parent=0
    _
  %s18 = ssub.s32 1, %s16
  %s19 = scalar_select 0, %s18, %s16
  $region1: #{tpu_custom_call.1} parent=0
    #allocation5 [shape = 'u8[16384]{0}', space=vmem, size = 0x4000, scoped, tag = 'input window, operand 5, single buffered']
    #allocation6 [shape = 's32[2]{0}', space=sflag, size = 0x8, scoped, tag = 'scoped memory for tpu_custom_call.1']
    #allocation7 [shape = 's32[2]{0}', space=sflag, size = 0x8, scoped, tag = 'scoped memory for tpu_custom_call.1']
    #allocation8 [shape = 'u8[16384]{0}', space=vmem, size = 0x4000, scoped, tag = 'input window, operand 7, single buffered']
    #allocation9 [shape = 's32[1]{0}', space=sflag, size = 0x4, scoped, tag = 'scoped memory for tpu_custom_call.1']
    #allocation10 [shape = 'u8[16384]{0}', space=vmem, size = 0x4000, scoped, tag = 'input window, operand 11, single buffered']
    #allocation11 [shape = 'u8[16384]{0}', space=vmem, size = 0x4000, scoped, tag = 'output window, operand 0']
    %20 = vsyncpa [#allocation6], 0
    %21 = vsyncpa [#allocation9], 0
    %22 = vsyncpa [#allocation7], 0
    %s23 = scalar_lea.sflag [#allocation7], 1
    %24 = vsyncpa %s23, 0
    loop: start=0, step=1, limit=6
    $region2: #{tpu_custom_call.1} parent=1 // loop_pre_header
      _
    $region3: #{tpu_custom_call.1} parent=1 // loop_header
      %s26 = sphi 0, %s30
      %p27 = scmp.ge.s32.totalorder %s26, 6
      %s33 = sphi 0, %s45
      %s34 = sphi 0, %s41
      %s35 = sphi 0, %s33
      %s36 = sphi 0, %s34
      %s37 = sphi 0, %s35
      %s38 = sphi 0, %s36
      %s48 = sphi 0, %s50
      %s51 = sphi 0, %s48
      %s52 = sphi 0, %s51
      %s68 = sphi 0, %s52
      %s72 = sphi 0, %s72
      %s74 = sphi 0, %s72
      %s75 = sphi 0, %s74
      %s89 = sphi 0, %s75
      %s93 = sphi 0, %s93
      %s95 = sphi 0, %s93
      %s96 = sphi 0, %s95
      %s110 = sphi 0, %s96
      %s114 = sphi 0, %s114
      %s116 = sphi 0, %s114
      %s117 = sphi 0, %s116
      %s131 = sphi 0, %s117
      %s135 = sphi 0, %s135
      %s137 = sphi 0, %s135
      %s138 = sphi 0, %s137
      %s152 = sphi 0, %s138
      %s156 = sphi 0, %s156
      %s158 = sphi 0, %s156
      %s159 = sphi 0, %s158
      %s173 = sphi 0, %s159
      %s177 = sphi 0, %s177
      %s179 = sphi 0, %s177
      %s180 = sphi 0, %s179
      %s194 = sphi 0, %s180
      %s198 = sphi 0, %s198
      %s200 = sphi 0, %s198
      %s201 = sphi 0, %s200
      %s215 = sphi 0, %s201
      %s219 = sphi 0, %s219
      %s221 = sphi 0, %s219
      %s222 = sphi 0, %s221
      %s236 = sphi 0, %s222
      %s240 = sphi 0, %s240
      %s242 = sphi 0, %s240
      %s243 = sphi 0, %s242
      %s257 = sphi 0, %s243
      %s261 = sphi 0, %s261
      %s263 = sphi 0, %s261
      %s264 = sphi 0, %s263
      %s278 = sphi 0, %s264
      %s282 = sphi 0, %s282
      %s284 = sphi 0, %s282
      %s285 = sphi 0, %s284
      %s299 = sphi 0, %s285
      %s303 = sphi 0, %s303
      %s305 = sphi 0, %s303
      %s306 = sphi 0, %s305
      %s320 = sphi 0, %s306
      %s324 = sphi 0, %s324
      %s326 = sphi 0, %s324
      %s327 = sphi 0, %s326
      %s341 = sphi 0, %s327
      %s345 = sphi 0, %s345
      %s347 = sphi 0, %s345
      %s348 = sphi 0, %s347
      %s362 = sphi 0, %s348
      %s370 = sphi 0, %s372
      %s373 = sphi 0, %s370
      %s374 = sphi 0, %s373
      %s390 = sphi 0, %s374
    $region4: #{tpu_custom_call.1} parent=1 // loop_header_branch
      %29 = sbr.rel (%p27) target = $region8
    $region5: #{tpu_custom_call.1} parent=1 // loop_body
      %s31 = ssub.s32 %s26, 1
      %s32 = ssub.s32 %s26, 2
      %s39 = sadd.s32 1, %s34
      %p40 = scmp.ge.s32.totalorder %s39, 2
      %s41 = scalar_select %p40, 0, %s39
      %s42 = sadd.s32 1, %s33
      %s43 = scalar_select %p40, %s42, %s33
      %p44 = scmp.ge.s32.totalorder %s43, 2
      %s45 = scalar_select %p44, 0, %s43
      %s46 = ssub.s32 %s33, %s45
      %p47 = scmp.eq.s32.totalorder %s46, 0
      %s49 = sadd.s32 %s48, 1
      %s50 = scalar_select %p47, %s48, %s49
      %p53 = pneg %p47
      %p54 = scmp.eq.s32.totalorder %s26, 3
      %p55 = por %p53, %p54
      %p56 = scmp.ne.s32.totalorder %s48, %s51
      %p57 = scmp.eq.s32.totalorder %s26, 0
      %p58 = por %p56, %p57
      %p59 = scmp.ne.s32.totalorder %s48, %s51
      %p60 = scmp.eq.s32.totalorder %s31, 3
      %p61 = por %p59, %p60
      %p62 = scmp.ne.s32.totalorder %s51, %s52
      %p63 = scmp.eq.s32.totalorder %s31, 0
      %p64 = por %p62, %p63
      %p65 = scmp.ne.s32.totalorder %s51, %s52
      %p66 = scmp.eq.s32.totalorder %s32, 3
      %p67 = por %p65, %p66
      %p69 = scmp.ne.s32.totalorder %s52, %s68
      %p70 = scmp.eq.s32.totalorder %s32, 0
      %p71 = por %p69, %p70
      %s73 = sadd.s32 %s72, 1
      %p76 = scmp.eq.s32.totalorder %s26, 3
      %p77 = scmp.ne.s32.totalorder %s72, %s74
      %p78 = scmp.eq.s32.totalorder %s26, 0
      %p79 = por %p77, %p78
      %p80 = scmp.ne.s32.totalorder %s72, %s74
      %p81 = scmp.eq.s32.totalorder %s31, 3
      %p82 = por %p80, %p81
      %p83 = scmp.ne.s32.totalorder %s74, %s75
      %p84 = scmp.eq.s32.totalorder %s31, 0
      %p85 = por %p83, %p84
      %p86 = scmp.ne.s32.totalorder %s74, %s75
      %p87 = scmp.eq.s32.totalorder %s32, 3
      %p88 = por %p86, %p87
      %p90 = scmp.ne.s32.totalorder %s75, %s89
      %p91 = scmp.eq.s32.totalorder %s32, 0
      %p92 = por %p90, %p91
      %s94 = sadd.s32 %s93, 1
      %p97 = scmp.eq.s32.totalorder %s26, 3
      %p98 = scmp.ne.s32.totalorder %s93, %s95
      %p99 = scmp.eq.s32.totalorder %s26, 0
      %p100 = por %p98, %p99
      %p101 = scmp.ne.s32.totalorder %s93, %s95
      %p102 = scmp.eq.s32.totalorder %s31, 3
      %p103 = por %p101, %p102
      %p104 = scmp.ne.s32.totalorder %s95, %s96
      %p105 = scmp.eq.s32.totalorder %s31, 0
      %p106 = por %p104, %p105
      %p107 = scmp.ne.s32.totalorder %s95, %s96
      %p108 = scmp.eq.s32.totalorder %s32, 3
      %p109 = por %p107, %p108
      %p111 = scmp.ne.s32.totalorder %s96, %s110
      %p112 = scmp.eq.s32.totalorder %s32, 0
      %p113 = por %p111, %p112
      %s115 = sadd.s32 %s114, 1
      %p118 = scmp.eq.s32.totalorder %s26, 3
      %p119 = scmp.ne.s32.totalorder %s114, %s116
      %p120 = scmp.eq.s32.totalorder %s26, 0
      %p121 = por %p119, %p120
      %p122 = scmp.ne.s32.totalorder %s114, %s116
      %p123 = scmp.eq.s32.totalorder %s31, 3
      %p124 = por %p122, %p123
      %p125 = scmp.ne.s32.totalorder %s116, %s117
      %p126 = scmp.eq.s32.totalorder %s31, 0
      %p127 = por %p125, %p126
      %p128 = scmp.ne.s32.totalorder %s116, %s117
      %p129 = scmp.eq.s32.totalorder %s32, 3
      %p130 = por %p128, %p129
      %p132 = scmp.ne.s32.totalorder %s117, %s131
      %p133 = scmp.eq.s32.totalorder %s32, 0
      %p134 = por %p132, %p133
      %s136 = sadd.s32 %s135, 1
      %p139 = scmp.eq.s32.totalorder %s26, 3
      %p140 = scmp.ne.s32.totalorder %s135, %s137
      %p141 = scmp.eq.s32.totalorder %s26, 0
      %p142 = por %p140, %p141
      %p143 = scmp.ne.s32.totalorder %s135, %s137
      %p144 = scmp.eq.s32.totalorder %s31, 3
      %p145 = por %p143, %p144
      %p146 = scmp.ne.s32.totalorder %s137, %s138
      %p147 = scmp.eq.s32.totalorder %s31, 0
      %p148 = por %p146, %p147
      %p149 = scmp.ne.s32.totalorder %s137, %s138
      %p150 = scmp.eq.s32.totalorder %s32, 3
      %p151 = por %p149, %p150
      %p153 = scmp.ne.s32.totalorder %s138, %s152
      %p154 = scmp.eq.s32.totalorder %s32, 0
      %p155 = por %p153, %p154
      %s157 = sadd.s32 %s156, 1
      %p160 = scmp.eq.s32.totalorder %s26, 3
      %p161 = scmp.ne.s32.totalorder %s156, %s158
      %p162 = scmp.eq.s32.totalorder %s26, 0
      %p163 = por %p161, %p162
      %p164 = scmp.ne.s32.totalorder %s156, %s158
      %p165 = scmp.eq.s32.totalorder %s31, 3
      %p166 = por %p164, %p165
      %p167 = scmp.ne.s32.totalorder %s158, %s159
      %p168 = scmp.eq.s32.totalorder %s31, 0
      %p169 = por %p167, %p168
      %p170 = scmp.ne.s32.totalorder %s158, %s159
      %p171 = scmp.eq.s32.totalorder %s32, 3
      %p172 = por %p170, %p171
      %p174 = scmp.ne.s32.totalorder %s159, %s173
      %p175 = scmp.eq.s32.totalorder %s32, 0
      %p176 = por %p174, %p175
      %s178 = sadd.s32 %s177, 1
      %p181 = scmp.eq.s32.totalorder %s26, 3
      %p182 = scmp.ne.s32.totalorder %s177, %s179
      %p183 = scmp.eq.s32.totalorder %s26, 0
      %p184 = por %p182, %p183
      %p185 = scmp.ne.s32.totalorder %s177, %s179
      %p186 = scmp.eq.s32.totalorder %s31, 3
      %p187 = por %p185, %p186
      %p188 = scmp.ne.s32.totalorder %s179, %s180
      %p189 = scmp.eq.s32.totalorder %s31, 0
      %p190 = por %p188, %p189
      %p191 = scmp.ne.s32.totalorder %s179, %s180
      %p192 = scmp.eq.s32.totalorder %s32, 3
      %p193 = por %p191, %p192
      %p195 = scmp.ne.s32.totalorder %s180, %s194
      %p196 = scmp.eq.s32.totalorder %s32, 0
      %p197 = por %p195, %p196
      %s199 = sadd.s32 %s198, 1
      %p202 = scmp.eq.s32.totalorder %s26, 3
      %p203 = scmp.ne.s32.totalorder %s198, %s200
      %p204 = scmp.eq.s32.totalorder %s26, 0
      %p205 = por %p203, %p204
      %p206 = scmp.ne.s32.totalorder %s198, %s200
      %p207 = scmp.eq.s32.totalorder %s31, 3
      %p208 = por %p206, %p207
      %p209 = scmp.ne.s32.totalorder %s200, %s201
      %p210 = scmp.eq.s32.totalorder %s31, 0
      %p211 = por %p209, %p210
      %p212 = scmp.ne.s32.totalorder %s200, %s201
      %p213 = scmp.eq.s32.totalorder %s32, 3
      %p214 = por %p212, %p213
      %p216 = scmp.ne.s32.totalorder %s201, %s215
      %p217 = scmp.eq.s32.totalorder %s32, 0
      %p218 = por %p216, %p217
      %s220 = sadd.s32 %s219, 1
      %p223 = scmp.eq.s32.totalorder %s26, 3
      %p224 = scmp.ne.s32.totalorder %s219, %s221
      %p225 = scmp.eq.s32.totalorder %s26, 0
      %p226 = por %p224, %p225
      %p227 = scmp.ne.s32.totalorder %s219, %s221
      %p228 = scmp.eq.s32.totalorder %s31, 3
      %p229 = por %p227, %p228
      %p230 = scmp.ne.s32.totalorder %s221, %s222
      %p231 = scmp.eq.s32.totalorder %s31, 0
      %p232 = por %p230, %p231
      %p233 = scmp.ne.s32.totalorder %s221, %s222
      %p234 = scmp.eq.s32.totalorder %s32, 3
      %p235 = por %p233, %p234
      %p237 = scmp.ne.s32.totalorder %s222, %s236
      %p238 = scmp.eq.s32.totalorder %s32, 0
      %p239 = por %p237, %p238
      %s241 = sadd.s32 %s240, 1
      %p244 = scmp.eq.s32.totalorder %s26, 3
      %p245 = scmp.ne.s32.totalorder %s240, %s242
      %p246 = scmp.eq.s32.totalorder %s26, 0
      %p247 = por %p245, %p246
      %p248 = scmp.ne.s32.totalorder %s240, %s242
      %p249 = scmp.eq.s32.totalorder %s31, 3
      %p250 = por %p248, %p249
      %p251 = scmp.ne.s32.totalorder %s242, %s243
      %p252 = scmp.eq.s32.totalorder %s31, 0
      %p253 = por %p251, %p252
      %p254 = scmp.ne.s32.totalorder %s242, %s243
      %p255 = scmp.eq.s32.totalorder %s32, 3
      %p256 = por %p254, %p255
      %p258 = scmp.ne.s32.totalorder %s243, %s257
      %p259 = scmp.eq.s32.totalorder %s32, 0
      %p260 = por %p258, %p259
      %s262 = sadd.s32 %s261, 1
      %p265 = scmp.eq.s32.totalorder %s26, 3
      %p266 = scmp.ne.s32.totalorder %s261, %s263
      %p267 = scmp.eq.s32.totalorder %s26, 0
      %p268 = por %p266, %p267
      %p269 = scmp.ne.s32.totalorder %s261, %s263
      %p270 = scmp.eq.s32.totalorder %s31, 3
      %p271 = por %p269, %p270
      %p272 = scmp.ne.s32.totalorder %s263, %s264
      %p273 = scmp.eq.s32.totalorder %s31, 0
      %p274 = por %p272, %p273
      %p275 = scmp.ne.s32.totalorder %s263, %s264
      %p276 = scmp.eq.s32.totalorder %s32, 3
      %p277 = por %p275, %p276
      %p279 = scmp.ne.s32.totalorder %s264, %s278
      %p280 = scmp.eq.s32.totalorder %s32, 0
      %p281 = por %p279, %p280
      %s283 = sadd.s32 %s282, 1
      %p286 = scmp.eq.s32.totalorder %s26, 3
      %p287 = scmp.ne.s32.totalorder %s282, %s284
      %p288 = scmp.eq.s32.totalorder %s26, 0
      %p289 = por %p287, %p288
      %p290 = scmp.ne.s32.totalorder %s282, %s284
      %p291 = scmp.eq.s32.totalorder %s31, 3
      %p292 = por %p290, %p291
      %p293 = scmp.ne.s32.totalorder %s284, %s285
      %p294 = scmp.eq.s32.totalorder %s31, 0
      %p295 = por %p293, %p294
      %p296 = scmp.ne.s32.totalorder %s284, %s285
      %p297 = scmp.eq.s32.totalorder %s32, 3
      %p298 = por %p296, %p297
      %p300 = scmp.ne.s32.totalorder %s285, %s299
      %p301 = scmp.eq.s32.totalorder %s32, 0
      %p302 = por %p300, %p301
      %s304 = sadd.s32 %s303, 1
      %p307 = scmp.eq.s32.totalorder %s26, 3
      %p308 = scmp.ne.s32.totalorder %s303, %s305
      %p309 = scmp.eq.s32.totalorder %s26, 0
      %p310 = por %p308, %p309
      %p311 = scmp.ne.s32.totalorder %s303, %s305
      %p312 = scmp.eq.s32.totalorder %s31, 3
      %p313 = por %p311, %p312
      %p314 = scmp.ne.s32.totalorder %s305, %s306
      %p315 = scmp.eq.s32.totalorder %s31, 0
      %p316 = por %p314, %p315
      %p317 = scmp.ne.s32.totalorder %s305, %s306
      %p318 = scmp.eq.s32.totalorder %s32, 3
      %p319 = por %p317, %p318
      %p321 = scmp.ne.s32.totalorder %s306, %s320
      %p322 = scmp.eq.s32.totalorder %s32, 0
      %p323 = por %p321, %p322
      %s325 = sadd.s32 %s324, 1
      %p328 = scmp.eq.s32.totalorder %s26, 3
      %p329 = scmp.ne.s32.totalorder %s324, %s326
      %p330 = scmp.eq.s32.totalorder %s26, 0
      %p331 = por %p329, %p330
      %p332 = scmp.ne.s32.totalorder %s324, %s326
      %p333 = scmp.eq.s32.totalorder %s31, 3
      %p334 = por %p332, %p333
      %p335 = scmp.ne.s32.totalorder %s326, %s327
      %p336 = scmp.eq.s32.totalorder %s31, 0
      %p337 = por %p335, %p336
      %p338 = scmp.ne.s32.totalorder %s326, %s327
      %p339 = scmp.eq.s32.totalorder %s32, 3
      %p340 = por %p338, %p339
      %p342 = scmp.ne.s32.totalorder %s327, %s341
      %p343 = scmp.eq.s32.totalorder %s32, 0
      %p344 = por %p342, %p343
      %s346 = sadd.s32 %s345, 1
      %p349 = scmp.eq.s32.totalorder %s26, 3
      %p350 = scmp.ne.s32.totalorder %s345, %s347
      %p351 = scmp.eq.s32.totalorder %s26, 0
      %p352 = por %p350, %p351
      %p353 = scmp.ne.s32.totalorder %s345, %s347
      %p354 = scmp.eq.s32.totalorder %s31, 3
      %p355 = por %p353, %p354
      %p356 = scmp.ne.s32.totalorder %s347, %s348
      %p357 = scmp.eq.s32.totalorder %s31, 0
      %p358 = por %p356, %p357
      %p359 = scmp.ne.s32.totalorder %s347, %s348
      %p360 = scmp.eq.s32.totalorder %s32, 3
      %p361 = por %p359, %p360
      %p363 = scmp.ne.s32.totalorder %s348, %s362
      %p364 = scmp.eq.s32.totalorder %s32, 0
      %p365 = por %p363, %p364
      %s366 = ssub.s32 %s33, %s45
      %s367 = ssub.s32 %s34, %s41
      %s368 = sor.u32 %s366, %s367
      %p369 = scmp.eq.s32.totalorder %s368, 0
      %s371 = sadd.s32 %s370, 1
      %s372 = scalar_select %p369, %s370, %s371
      %p375 = pneg %p369
      %p376 = scmp.eq.s32.totalorder %s26, 3
      %p377 = por %p375, %p376
      %p378 = scmp.ne.s32.totalorder %s370, %s373
      %p379 = scmp.eq.s32.totalorder %s26, 0
      %p380 = por %p378, %p379
      %p381 = scmp.ne.s32.totalorder %s370, %s373
      %p382 = scmp.eq.s32.totalorder %s31, 3
      %p383 = por %p381, %p382
      %p384 = scmp.ne.s32.totalorder %s373, %s374
      %p385 = scmp.eq.s32.totalorder %s31, 0
      %p386 = por %p384, %p385
      %p387 = scmp.ne.s32.totalorder %s373, %s374
      %p388 = scmp.eq.s32.totalorder %s32, 3
      %p389 = por %p387, %p388
      %p391 = scmp.ne.s32.totalorder %s374, %s390
      %p392 = scmp.eq.s32.totalorder %s32, 0
      %p393 = por %p391, %p392
      %p394 = scmp.le.s32.totalorder 1, %s26
      %p395 = scmp.lt.s32.totalorder %s26, 5
      %p396 = pnand %p394, %p395
      %p397 = pneg %p396
      // Predicated region
      $region9: #{tpu_custom_call.1} parent=5 // pred_check
        _
      $region10: #{tpu_custom_call.1} parent=5 // pred_check_branch
        %399 = sbr.rel (%p396) target = $region12
      $region11: #{tpu_custom_call.1} parent=5 // pred_region
        %s400 = ssub.s32 %s26, 1
        // Predicated region
        $region13: #{tpu_custom_call.1} parent=11 // pred_check
          %p401 = pneg %p85
        $region14: #{tpu_custom_call.1} parent=11 // pred_check_branch
          %403 = sbr.rel (%p401) target = $region16
        $region15: #{tpu_custom_call.1} parent=11 // pred_region
          _
        $region16: #{tpu_custom_call.1} parent=11 // pred_fallthru
          _
        // Predicated region
        $region17: #{tpu_custom_call.1} parent=11 // pred_check
          %p404 = pneg %p106
        $region18: #{tpu_custom_call.1} parent=11 // pred_check_branch
          %406 = sbr.rel (%p404) target = $region20
        $region19: #{tpu_custom_call.1} parent=11 // pred_region
          _
        $region20: #{tpu_custom_call.1} parent=11 // pred_fallthru
          _
        // Predicated region
        $region21: #{tpu_custom_call.1} parent=11 // pred_check
          %p407 = pneg %p127
        $region22: #{tpu_custom_call.1} parent=11 // pred_check_branch
          %409 = sbr.rel (%p407) target = $region24
        $region23: #{tpu_custom_call.1} parent=11 // pred_region
          _
        $region24: #{tpu_custom_call.1} parent=11 // pred_fallthru
          _
        // Predicated region
        $region25: #{tpu_custom_call.1} parent=11 // pred_check
          %p410 = pneg %p148
        $region26: #{tpu_custom_call.1} parent=11 // pred_check_branch
          %412 = sbr.rel (%p410) target = $region28
        $region27: #{tpu_custom_call.1} parent=11 // pred_region
          _
        $region28: #{tpu_custom_call.1} parent=11 // pred_fallthru
          _
        // Predicated region
        $region29: #{tpu_custom_call.1} parent=11 // pred_check
          %p413 = pneg %p169
        $region30: #{tpu_custom_call.1} parent=11 // pred_check_branch
          %415 = sbr.rel (%p413) target = $region32
        $region31: #{tpu_custom_call.1} parent=11 // pred_region
          %s417 = ssub.s32 512, 512
          %418 = vsyncadd [#allocation6], %s417
          %s419 = sshll.u32 [#allocation5], 4
          %s420 = int_to_ptr.vmem [resolvable:$true] %s419
          %425 = dma.hbm_to_vmem [thread:$0]  %s5, 512, %s420, [#allocation6], 128, 128, 8
        $region32: #{tpu_custom_call.1} parent=11 // pred_fallthru
          _
        // Predicated region
        $region33: #{tpu_custom_call.1} parent=11 // pred_check
          %p426 = pneg %p190
        $region34: #{tpu_custom_call.1} parent=11 // pred_check_branch
          %428 = sbr.rel (%p426) target = $region36
        $region35: #{tpu_custom_call.1} parent=11 // pred_region
          _
        $region36: #{tpu_custom_call.1} parent=11 // pred_fallthru
          _
        // Predicated region
        $region37: #{tpu_custom_call.1} parent=11 // pred_check
          %p429 = pneg %p211
        $region38: #{tpu_custom_call.1} parent=11 // pred_check_branch
          %431 = sbr.rel (%p429) target = $region40
        $region39: #{tpu_custom_call.1} parent=11 // pred_region
          %s433 = ssub.s32 512, 512
          %434 = vsyncadd [#allocation9], %s433
          %s435 = sshll.u32 [#allocation8], 4
          %s436 = int_to_ptr.vmem [resolvable:$true] %s435
          %441 = dma.hbm_to_vmem [thread:$0]  %s7, 512, %s436, [#allocation9], 128, 128, 8
        $region40: #{tpu_custom_call.1} parent=11 // pred_fallthru
          _
        // Predicated region
        $region41: #{tpu_custom_call.1} parent=11 // pred_check
          %p442 = pneg %p232
        $region42: #{tpu_custom_call.1} parent=11 // pred_check_branch
          %444 = sbr.rel (%p442) target = $region44
        $region43: #{tpu_custom_call.1} parent=11 // pred_region
          _
        $region44: #{tpu_custom_call.1} parent=11 // pred_fallthru
          _
        // Predicated region
        $region45: #{tpu_custom_call.1} parent=11 // pred_check
          %p445 = pneg %p253
        $region46: #{tpu_custom_call.1} parent=11 // pred_check_branch
          %447 = sbr.rel (%p445) target = $region48
        $region47: #{tpu_custom_call.1} parent=11 // pred_region
          _
        $region48: #{tpu_custom_call.1} parent=11 // pred_fallthru
          _
        // Predicated region
        $region49: #{tpu_custom_call.1} parent=11 // pred_check
          %p448 = pneg %p274
        $region50: #{tpu_custom_call.1} parent=11 // pred_check_branch
          %450 = sbr.rel (%p448) target = $region52
        $region51: #{tpu_custom_call.1} parent=11 // pred_region
          _
        $region52: #{tpu_custom_call.1} parent=11 // pred_fallthru
          _
        // Predicated region
        $region53: #{tpu_custom_call.1} parent=11 // pred_check
          %p451 = pneg %p295
        $region54: #{tpu_custom_call.1} parent=11 // pred_check_branch
          %453 = sbr.rel (%p451) target = $region56
        $region55: #{tpu_custom_call.1} parent=11 // pred_region
          %s455 = ssub.s32 512, 512
          %456 = vsyncadd [#allocation9], %s455
          %s457 = sshll.u32 [#allocation10], 4
          %s458 = int_to_ptr.vmem [resolvable:$true] %s457
          %463 = dma.hbm_to_vmem [thread:$0]  %s11, 512, %s458, [#allocation9], 128, 128, 8
        $region56: #{tpu_custom_call.1} parent=11 // pred_fallthru
          _
        // Predicated region
        $region57: #{tpu_custom_call.1} parent=11 // pred_check
          %p464 = pneg %p316
        $region58: #{tpu_custom_call.1} parent=11 // pred_check_branch
          %466 = sbr.rel (%p464) target = $region60
        $region59: #{tpu_custom_call.1} parent=11 // pred_region
          _
        $region60: #{tpu_custom_call.1} parent=11 // pred_fallthru
          _
        // Predicated region
        $region61: #{tpu_custom_call.1} parent=11 // pred_check
          %p467 = pneg %p337
        $region62: #{tpu_custom_call.1} parent=11 // pred_check_branch
          %469 = sbr.rel (%p467) target = $region64
        $region63: #{tpu_custom_call.1} parent=11 // pred_region
          _
        $region64: #{tpu_custom_call.1} parent=11 // pred_fallthru
          _
        // Predicated region
        $region65: #{tpu_custom_call.1} parent=11 // pred_check
          %p470 = pneg %p358
        $region66: #{tpu_custom_call.1} parent=11 // pred_check_branch
          %472 = sbr.rel (%p470) target = $region68
        $region67: #{tpu_custom_call.1} parent=11 // pred_region
          _
        $region68: #{tpu_custom_call.1} parent=11 // pred_fallthru
          _
      $region12: #{tpu_custom_call.1} parent=5 // pred_fallthru
        _
      %p473 = scmp.lt.s32.totalorder %s26, 4
      // Predicated region
      $region69: #{tpu_custom_call.1} parent=5 // pred_check
        %p474 = pneg %p473
      $region70: #{tpu_custom_call.1} parent=5 // pred_check_branch
        %476 = sbr.rel (%p474) target = $region72
      $region71: #{tpu_custom_call.1} parent=5 // pred_region
        // Predicated region
        $region73: #{tpu_custom_call.1} parent=71 // pred_check
          %p477 = pneg %p58
        $region74: #{tpu_custom_call.1} parent=71 // pred_check_branch
          %479 = sbr.rel (%p477) target = $region76
        $region75: #{tpu_custom_call.1} parent=71 // pred_region
          %p480 = scmp.lt.s32.totalorder %s33, 1
          %s481 = scalar_select %p480, %s33, 1
          %s482 = smul.addr %s481, 4
          %s483 = smul.addr %s482, 8
          %s484 = scalar_lea.vmem %s0, %s483
        $region76: #{tpu_custom_call.1} parent=71 // pred_fallthru
          _
      $region72: #{tpu_custom_call.1} parent=5 // pred_fallthru
        _
      %p485 = scmp.le.s32.totalorder 1, %s26
      %p486 = scmp.lt.s32.totalorder %s26, 5
      %p487 = pnand %p485, %p486
      %p488 = pneg %p487
      // Predicated region
      $region77: #{tpu_custom_call.1} parent=5 // pred_check
        _
      $region78: #{tpu_custom_call.1} parent=5 // pred_check_branch
        %490 = sbr.rel (%p487) target = $region80
      $region79: #{tpu_custom_call.1} parent=5 // pred_region
        %s491 = ssub.s32 %s26, 1
        // Predicated region
        $region81: #{tpu_custom_call.1} parent=79 // pred_check
          %p492 = pneg %p169
        $region82: #{tpu_custom_call.1} parent=79 // pred_check_branch
          %494 = sbr.rel (%p492) target = $region84
        $region83: #{tpu_custom_call.1} parent=79 // pred_region
          %495 = dma.done [#allocation6], 512
        $region84: #{tpu_custom_call.1} parent=79 // pred_fallthru
          _
        // Predicated region
        $region85: #{tpu_custom_call.1} parent=79 // pred_check
          %p496 = pneg %p211
        $region86: #{tpu_custom_call.1} parent=79 // pred_check_branch
          %498 = sbr.rel (%p496) target = $region88
        $region87: #{tpu_custom_call.1} parent=79 // pred_region
          %499 = dma.done [#allocation9], 512
        $region88: #{tpu_custom_call.1} parent=79 // pred_fallthru
          _
        // Predicated region
        $region89: #{tpu_custom_call.1} parent=79 // pred_check
          %p500 = pneg %p295
        $region90: #{tpu_custom_call.1} parent=79 // pred_check_branch
          %502 = sbr.rel (%p500) target = $region92
        $region91: #{tpu_custom_call.1} parent=79 // pred_region
          %503 = dma.done [#allocation9], 512
        $region92: #{tpu_custom_call.1} parent=79 // pred_fallthru
          _
        %p504 = scmp.lt.s32.totalorder %s35, 1
        %s505 = scalar_select %p504, %s35, 1
        %s506 = smul.addr %s505, 4
        %s507 = smul.addr %s506, 8
        %s508 = scalar_lea.vmem %s0, %s507
        %p509 = pneg %p64
        %p510 = pneg %p61
        %p511 = pneg %p85
        %p512 = pneg %p82
        %p513 = pneg %p106
        %p514 = pneg %p103
        %p515 = pneg %p127
        %p516 = pneg %p124
        %p517 = pneg %p148
        %p518 = pneg %p145
        %p519 = pneg %p169
        %p520 = pneg %p166
        %p521 = pneg %p190
        %p522 = pneg %p187
        %p523 = pneg %p211
        %p524 = pneg %p208
        %p525 = pneg %p232
        %p526 = pneg %p229
        %p527 = pneg %p253
        %p528 = pneg %p250
        %p529 = pneg %p274
        %p530 = pneg %p271
        %p531 = pneg %p295
        %p532 = pneg %p292
        %p533 = pneg %p316
        %p534 = pneg %p313
        %p535 = pneg %p337
        %p536 = pneg %p334
        %p537 = pneg %p358
        %p538 = pneg %p355
        %p539 = pneg %p386
        %p540 = pneg %p383
        %s541 = sand.u32 %s373, 1
        %s542 = scalar_lea.sflag [#allocation7], %s541
        %s543 = sand.u32 %s373, 1
        %s544 = smul.addr %s543, 16
        %s545 = scalar_lea.vmem [#allocation11], %s544
        %p546 = scmp.lt.s32.totalorder %s35, 1
        %s547 = scalar_select %p546, %s35, 1
        %s548 = smul.addr %s547, 4
        %s549 = smul.addr %s548, 8
        %s550 = scalar_lea.vmem %s0, %s549
        %s551 = smul.u32 2, %s36
        %p552 = scmp.eq.s32.totalorder %s36, 0
        // Predicated region
        $region93: #{tpu_custom_call.1} parent=79 // pred_check
          %p553 = pneg %p552
        $region94: #{tpu_custom_call.1} parent=79 // pred_check_branch
          %555 = sbr.rel (%p553) target = $region96
        $region95: #{tpu_custom_call.1} parent=79 // pred_region
          %v556 = vld [vmem:[%s550] sm:$0xff]
          %v557 = vld [vmem:[%s550 + $0x8] sm:$0xff]
          %v558 = vld [vmem:[%s550 + $0x10] sm:$0xff]
          %v559 = vld [vmem:[%s550 + $0x18] sm:$0xff]
          %vm560 = vcmask 261120
          %v561 = vsel %vm560, %v556, 0.0
          %562 = vadd.xlane.f32.xlu0 %v561
          %v563 = vpop.xlane.xlu0 %562
          %v564 = vsel %vm560, %v557, 0.0
          %565 = vadd.xlane.f32.xlu0 %v564
          %v566 = vpop.xlane.xlu0 %565
          %v567 = vsel %vm560, %v558, 0.0
          %568 = vadd.xlane.f32.xlu0 %v567
          %v569 = vpop.xlane.xlu0 %568
          %v570 = vsel %vm560, %v559, 0.0
          %571 = vadd.xlane.f32.xlu0 %v570
          %v572 = vpop.xlane.xlu0 %571
          %v573 = vrcp.pop 32.0
          %v574 = vmul.f32 %v563, %v573
          %v575 = vmul.f32 %v566, %v573
          %v576 = vmul.f32 %v569, %v573
          %v577 = vmul.f32 %v572, %v573
          %v578 = vsub.f32 %v556, %v574
          %v579 = vsub.f32 %v557, %v575
          %v580 = vsub.f32 %v558, %v576
          %v581 = vsub.f32 %v559, %v577
          %v582 = vmul.f32 %v578, %v578
          %v583 = vmul.f32 %v579, %v579
          %v584 = vmul.f32 %v580, %v580
          %v585 = vmul.f32 %v581, %v581
          %v586 = vsel %vm560, %v582, 0.0
          %587 = vadd.xlane.f32.xlu0 %v586
          %v588 = vpop.xlane.xlu0 %587
          %v589 = vsel %vm560, %v583, 0.0
          %590 = vadd.xlane.f32.xlu0 %v589
          %v591 = vpop.xlane.xlu0 %590
          %v592 = vsel %vm560, %v584, 0.0
          %593 = vadd.xlane.f32.xlu0 %v592
          %v594 = vpop.xlane.xlu0 %593
          %v595 = vsel %vm560, %v585, 0.0
          %596 = vadd.xlane.f32.xlu0 %v595
          %v597 = vpop.xlane.xlu0 %596
          %v598 = vmul.f32 %v588, %v573
          %v599 = vmul.f32 %v591, %v573
          %v600 = vmul.f32 %v594, %v573
          %v601 = vmul.f32 %v597, %v573
          %v602 = vadd.f32 %v598, 1e-06
          %v603 = vadd.f32 %v599, 1e-06
          %v604 = vadd.f32 %v600, 1e-06
          %v605 = vadd.f32 %v601, 1e-06
          %v606 = vrsqrt.pop %v602
          %v607 = vrsqrt.pop %v603
          %v608 = vrsqrt.pop %v604
          %v609 = vrsqrt.pop %v605
          %v610 = vmul.f32 %v578, %v606
          %v611 = vmul.f32 %v579, %v607
          %v612 = vmul.f32 %v580, %v608
          %v613 = vmul.f32 %v581, %v609
          %v614 = vld [vmem:[%s1] sm:$0x1]
          %v616 = vlaneseq
          %v617 = vshrl.u32 %v616, 7
          %v618 = vsub.s32 0, %v617
          %v619 = vrot.slane %v614, %v618
          %v621 = vmul.f32 %v610, %v619
          %v622 = vmul.f32 %v611, %v619
          %v623 = vmul.f32 %v612, %v619
          %v624 = vmul.f32 %v613, %v619
          %v625 = vld [vmem:[%s2] sm:$0x1]
          %v627 = vlaneseq
          %v628 = vshrl.u32 %v627, 7
          %v629 = vsub.s32 0, %v628
          %v630 = vrot.slane %v625, %v629
          %v632 = vadd.f32 %v621, %v630
          %v633 = vadd.f32 %v622, %v630
          %v634 = vadd.f32 %v623, %v630
          %v635 = vadd.f32 %v624, %v630
          %636 = vst.msk [vmem:[#allocation2] sm:$0xff] %vm560, %v632
          %637 = vst.msk [vmem:[#allocation2 + $0x8] sm:$0xff] %vm560, %v633
          %638 = vst.msk [vmem:[#allocation2 + $0x10] sm:$0xff] %vm560, %v634
          %639 = vst.msk [vmem:[#allocation2 + $0x18] sm:$0xff] %vm560, %v635
          %v640 = vld [vmem:[#allocation5] sm:$0xff]
          %v641 = vld [vmem:[#allocation5 + $0x8] sm:$0xff]
          %v642 = vld [vmem:[#allocation5 + $0x10] sm:$0xff]
          %v643 = vld [vmem:[#allocation5 + $0x18] sm:$0xff]
          %v644 = vld [vmem:[%s6] sm:$0x1]
          %v646 = vlaneseq
          %v647 = vshrl.u32 %v646, 7
          %v648 = vsub.s32 0, %v647
          %v649 = vrot.slane %v644, %v648
          %v652 = vsel %vm560, %v632, 0
          %v655 = vsel %vm560, %v633, 0
          %v658 = vsel %vm560, %v634, 0
          %v661 = vsel %vm560, %v635, 0
          %663 = vmatprep.subr.mxu0 0.0
          %664 = vmatpush1.msra.mxu0 %v640
          %665 = vmatprep.subr.mxu0 0.0
          %666 = vmatpush1.msra.mxu0 %v641
          %667 = vmatprep.subr.mxu0 0.0
          %668 = vmatpush1.msra.mxu0 %v642
          %669 = vmatprep.subr.mxu0 0.0
          %670 = vmatpush1.msra.mxu0 %v643
          %671 = vmatprep.subr.mxu0 0.0
          %672 = vmatpush1.msra.mxu0 0.0
          %673 = vmatprep.subr.mxu0 0.0
          %674 = vmatpush1.msra.mxu0 0.0
          %675 = vmatprep.subr.mxu0 0.0
          %676 = vmatpush1.msra.mxu0 0.0
          %677 = vmatprep.subr.mxu0 0.0
          %678 = vmatpush1.msra.mxu0 0.0
          %679 = vmatprep.subr.mxu0 0.0
          %680 = vmatpush1.msra.mxu0 0.0
          %681 = vmatprep.subr.mxu0 0.0
          %682 = vmatpush1.msra.mxu0 0.0
          %683 = vmatprep.subr.mxu0 0.0
          %684 = vmatpush1.msra.mxu0 0.0
          %685 = vmatprep.subr.mxu0 0.0
          %686 = vmatpush1.msra.mxu0 0.0
          %687 = vmatprep.subr.mxu0 0.0
          %688 = vmatpush1.msra.mxu0 0.0
          %689 = vmatprep.subr.mxu0 0.0
          %690 = vmatpush1.msra.mxu0 0.0
          %691 = vmatprep.subr.mxu0 0.0
          %692 = vmatpush1.msra.mxu0 0.0
          %693 = vmatprep.subr.mxu0 0.0
          %694 = vmatpush1.msra.mxu0 0.0
          %695 = vmatprep.subr.mxu0 0.0
          %696 = vmatpush1.msra.mxu0 0.0
          %697 = vmatprep.subr.mxu0 0.0
          %698 = vmatpush1.msra.mxu0 0.0
          %699 = vmatprep.subr.mxu0 0.0
          %700 = vmatpush1.msra.mxu0 0.0
          %701 = vmatprep.subr.mxu0 0.0
          %702 = vmatpush1.msra.mxu0 0.0
          %703 = vmatprep.subr.mxu0 0.0
          %704 = vmatpush1.msra.mxu0 0.0
          %705 = vmatprep.subr.mxu0 0.0
          %706 = vmatpush1.msra.mxu0 0.0
          %707 = vmatprep.subr.mxu0 0.0
          %708 = vmatpush1.msra.mxu0 0.0
          %709 = vmatprep.subr.mxu0 0.0
          %710 = vmatpush1.msra.mxu0 0.0
          %711 = vmatprep.subr.mxu0 0.0
          %712 = vmatpush1.msra.mxu0 0.0
          %713 = vmatprep.subr.mxu0 0.0
          %714 = vmatpush1.msra.mxu0 0.0
          %715 = vmatprep.subr.mxu0 0.0
          %716 = vmatpush1.msra.mxu0 0.0
          %717 = vmatprep.subr.mxu0 0.0
          %718 = vmatpush1.msra.mxu0 0.0
          %719 = vmatprep.subr.mxu0 0.0
          %720 = vmatpush1.msra.mxu0 0.0
          %721 = vmatprep.subr.mxu0 0.0
          %722 = vmatpush1.msra.mxu0 0.0
          %723 = vmatprep.subr.mxu0 0.0
          %724 = vmatpush1.msra.mxu0 0.0
          %725 = vmatprep.subr.mxu0 0.0
          %726 = vmatpush1.msra.mxu0 0.0
          %727 = vmatprep.mubr.f32.mxu0 0.0
          %728 = vmatmul.mubr.f32.gmra.mrb[0].mxu0 %v652
          %v729 = vpop.f32.mrb[0].mxu0
          %v730 = vadd.f32 %v649, %v729
          %v731 = vpop.f32.mrb[0].mxu0
          %732 = vmatprep.mubr.f32.mxu0 0.0
          %733 = vmatmul.mubr.f32.gmra.mrb[0].mxu0 %v655
          %v734 = vpop.f32.mrb[0].mxu0
          %v735 = vadd.f32 %v649, %v734
          %v736 = vpop.f32.mrb[0].mxu0
          %737 = vmatprep.mubr.f32.mxu0 0.0
          %738 = vmatmul.mubr.f32.gmra.mrb[0].mxu0 %v658
          %v739 = vpop.f32.mrb[0].mxu0
          %v740 = vadd.f32 %v649, %v739
          %v741 = vpop.f32.mrb[0].mxu0
          %742 = vmatprep.mubr.f32.mxu0 0.0
          %743 = vmatmul.mubr.f32.gmra.mrb[0].mxu0 %v661
          %v744 = vpop.f32.mrb[0].mxu0
          %v745 = vadd.f32 %v649, %v744
          %v746 = vpop.f32.mrb[0].mxu0
          %747 = vdwg.mxu0
          %748 = vxpose.xlu0.b32.start [1/16] %v730, 128
          %749 = vxpose.xlu0.b32.cont [2/16] %v735, 128
          %750 = vxpose.xlu0.b32.cont [3/16] %v740, 128
          %751 = vxpose.xlu0.b32.cont [4/16] %v745, 128
          %752 = vxpose.xlu0.b32.cont [5/16] 0.0, 128
          %753 = vxpose.xlu0.b32.cont [6/16] 0.0, 128
          %754 = vxpose.xlu0.b32.cont [7/16] 0.0, 128
          %755 = vxpose.xlu0.b32.cont [8/16] 0.0, 128
          %756 = vxpose.xlu0.b32.cont [9/16] 0.0, 128
          %757 = vxpose.xlu0.b32.cont [10/16] 0.0, 128
          %758 = vxpose.xlu0.b32.cont [11/16] 0.0, 128
          %759 = vxpose.xlu0.b32.cont [12/16] 0.0, 128
          %760 = vxpose.xlu0.b32.cont [13/16] 0.0, 128
          %761 = vxpose.xlu0.b32.cont [14/16] 0.0, 128
          %762 = vxpose.xlu0.b32.cont [15/16] 0.0, 128
          %763 = vxpose.xlu0.b32.end [16/16] 0.0, 128
          %v764 = vpop.trf.xlu0
          %v765 = vpop.trf.xlu0
          %v766 = vpop.trf.xlu0
          %v767 = vpop.trf.xlu0
          %v768 = vpop.trf.xlu0
          %v769 = vpop.trf.xlu0
          %v770 = vpop.trf.xlu0
          %v771 = vpop.trf.xlu0
          %v772 = vpop.trf.xlu0
          %v773 = vpop.trf.xlu0
          %v774 = vpop.trf.xlu0
          %v775 = vpop.trf.xlu0
          %v776 = vpop.trf.xlu0
          %v777 = vpop.trf.xlu0
          %v778 = vpop.trf.xlu0
          %v779 = vpop.trf.xlu0
          %780 = vst.msk [vmem:[#allocation3] sm:$0xff] %vm560, %v764
          %785 = vrot.lane.b32.xlu0 %v730, 96
          %v786 = vpop.permute.xlu0 %785
          %787 = vrot.lane.b32.xlu0 %v735, 96
          %v788 = vpop.permute.xlu0 %787
          %789 = vrot.lane.b32.xlu0 %v740, 96
          %v790 = vpop.permute.xlu0 %789
          %791 = vrot.lane.b32.xlu0 %v745, 96
          %v792 = vpop.permute.xlu0 %791
          %vm797 = vcmask 64512
          %798 = vst.msk [vmem:[#allocation4] sm:$0xff] %vm797, %v786
          %799 = vst.msk [vmem:[#allocation4 + $0x8] sm:$0xff] %vm797, %v788
          %800 = vst.msk [vmem:[#allocation4 + $0x10] sm:$0xff] %vm797, %v790
          %801 = vst.msk [vmem:[#allocation4 + $0x18] sm:$0xff] %vm797, %v792
          %802 = vrot.lane.b32.xlu0 %v730, 120
          %v803 = vpop.permute.xlu0 %802
          %804 = vrot.lane.b32.xlu0 %v735, 120
          %v805 = vpop.permute.xlu0 %804
          %806 = vrot.lane.b32.xlu0 %v740, 120
          %v807 = vpop.permute.xlu0 %806
          %808 = vrot.lane.b32.xlu0 %v745, 120
          %v809 = vpop.permute.xlu0 %808
          %814 = vxpose.xlu0.b32.start [1/16] %v803, 128
          %815 = vxpose.xlu0.b32.cont [2/16] %v805, 128
          %816 = vxpose.xlu0.b32.cont [3/16] %v807, 128
          %817 = vxpose.xlu0.b32.cont [4/16] %v809, 128
          %818 = vxpose.xlu0.b32.cont [5/16] 0.0, 128
          %819 = vxpose.xlu0.b32.cont [6/16] 0.0, 128
          %820 = vxpose.xlu0.b32.cont [7/16] 0.0, 128
          %821 = vxpose.xlu0.b32.cont [8/16] 0.0, 128
          %822 = vxpose.xlu0.b32.cont [9/16] 0.0, 128
          %823 = vxpose.xlu0.b32.cont [10/16] 0.0, 128
          %824 = vxpose.xlu0.b32.cont [11/16] 0.0, 128
          %825 = vxpose.xlu0.b32.cont [12/16] 0.0, 128
          %826 = vxpose.xlu0.b32.cont [13/16] 0.0, 128
          %827 = vxpose.xlu0.b32.cont [14/16] 0.0, 128
          %828 = vxpose.xlu0.b32.cont [15/16] 0.0, 128
          %829 = vxpose.xlu0.b32.end [16/16] 0.0, 128
          %v830 = vpop.trf.xlu0
          %v831 = vpop.trf.xlu0
          %v832 = vpop.trf.xlu0
          %v833 = vpop.trf.xlu0
          %v834 = vpop.trf.xlu0
          %v835 = vpop.trf.xlu0
          %v836 = vpop.trf.xlu0
          %v837 = vpop.trf.xlu0
          %v838 = vpop.trf.xlu0
          %v839 = vpop.trf.xlu0
          %v840 = vpop.trf.xlu0
          %v841 = vpop.trf.xlu0
          %v842 = vpop.trf.xlu0
          %v843 = vpop.trf.xlu0
          %v844 = vpop.trf.xlu0
          %v845 = vpop.trf.xlu0
          %s846 = scalar_lea.vmem [#allocation3], 8
          %847 = vst.msk [vmem:[%s846] sm:$0xff] %vm560, %v830
          %848 = vrot.lane.b32.xlu0 %v730, 88
          %v849 = vpop.permute.xlu0 %848
          %850 = vrot.lane.b32.xlu0 %v735, 88
          %v851 = vpop.permute.xlu0 %850
          %852 = vrot.lane.b32.xlu0 %v740, 88
          %v853 = vpop.permute.xlu0 %852
          %854 = vrot.lane.b32.xlu0 %v745, 88
          %v855 = vpop.permute.xlu0 %854
          %s860 = scalar_lea.vmem [#allocation4], 32
          %861 = vst.msk [vmem:[%s860] sm:$0xff] %vm797, %v849
          %862 = vst.msk [vmem:[%s860 + $0x8] sm:$0xff] %vm797, %v851
          %863 = vst.msk [vmem:[%s860 + $0x10] sm:$0xff] %vm797, %v853
          %864 = vst.msk [vmem:[%s860 + $0x18] sm:$0xff] %vm797, %v855
          %865 = vrot.lane.b32.xlu0 %v730, 112
          %v866 = vpop.permute.xlu0 %865
          %867 = vrot.lane.b32.xlu0 %v735, 112
          %v868 = vpop.permute.xlu0 %867
          %869 = vrot.lane.b32.xlu0 %v740, 112
          %v870 = vpop.permute.xlu0 %869
          %871 = vrot.lane.b32.xlu0 %v745, 112
          %v872 = vpop.permute.xlu0 %871
          %877 = vxpose.xlu0.b32.start [1/16] %v866, 128
          %878 = vxpose.xlu0.b32.cont [2/16] %v868, 128
          %879 = vxpose.xlu0.b32.cont [3/16] %v870, 128
          %880 = vxpose.xlu0.b32.cont [4/16] %v872, 128
          %881 = vxpose.xlu0.b32.cont [5/16] 0.0, 128
          %882 = vxpose.xlu0.b32.cont [6/16] 0.0, 128
          %883 = vxpose.xlu0.b32.cont [7/16] 0.0, 128
          %884 = vxpose.xlu0.b32.cont [8/16] 0.0, 128
          %885 = vxpose.xlu0.b32.cont [9/16] 0.0, 128
          %886 = vxpose.xlu0.b32.cont [10/16] 0.0, 128
          %887 = vxpose.xlu0.b32.cont [11/16] 0.0, 128
          %888 = vxpose.xlu0.b32.cont [12/16] 0.0, 128
          %889 = vxpose.xlu0.b32.cont [13/16] 0.0, 128
          %890 = vxpose.xlu0.b32.cont [14/16] 0.0, 128
          %891 = vxpose.xlu0.b32.cont [15/16] 0.0, 128
          %892 = vxpose.xlu0.b32.end [16/16] 0.0, 128
          %v893 = vpop.trf.xlu0
          %v894 = vpop.trf.xlu0
          %v895 = vpop.trf.xlu0
          %v896 = vpop.trf.xlu0
          %v897 = vpop.trf.xlu0
          %v898 = vpop.trf.xlu0
          %v899 = vpop.trf.xlu0
          %v900 = vpop.trf.xlu0
          %v901 = vpop.trf.xlu0
          %v902 = vpop.trf.xlu0
          %v903 = vpop.trf.xlu0
          %v904 = vpop.trf.xlu0
          %v905 = vpop.trf.xlu0
          %v906 = vpop.trf.xlu0
          %v907 = vpop.trf.xlu0
          %v908 = vpop.trf.xlu0
          %s909 = scalar_lea.vmem [#allocation3], 16
          %910 = vst.msk [vmem:[%s909] sm:$0xff] %vm560, %v893
          %911 = vrot.lane.b32.xlu0 %v730, 80
          %v912 = vpop.permute.xlu0 %911
          %913 = vrot.lane.b32.xlu0 %v735, 80
          %v914 = vpop.permute.xlu0 %913
          %915 = vrot.lane.b32.xlu0 %v740, 80
          %v916 = vpop.permute.xlu0 %915
          %917 = vrot.lane.b32.xlu0 %v745, 80
          %v918 = vpop.permute.xlu0 %917
          %s923 = scalar_lea.vmem [#allocation4], 64
          %924 = vst.msk [vmem:[%s923] sm:$0xff] %vm797, %v912
          %925 = vst.msk [vmem:[%s923 + $0x8] sm:$0xff] %vm797, %v914
          %926 = vst.msk [vmem:[%s923 + $0x10] sm:$0xff] %vm797, %v916
          %927 = vst.msk [vmem:[%s923 + $0x18] sm:$0xff] %vm797, %v918
          %928 = vrot.lane.b32.xlu0 %v730, 104
          %v929 = vpop.permute.xlu0 %928
          %930 = vrot.lane.b32.xlu0 %v735, 104
          %v931 = vpop.permute.xlu0 %930
          %932 = vrot.lane.b32.xlu0 %v740, 104
          %v933 = vpop.permute.xlu0 %932
          %934 = vrot.lane.b32.xlu0 %v745, 104
          %v935 = vpop.permute.xlu0 %934
          %940 = vxpose.xlu0.b32.start [1/16] %v929, 128
          %941 = vxpose.xlu0.b32.cont [2/16] %v931, 128
          %942 = vxpose.xlu0.b32.cont [3/16] %v933, 128
          %943 = vxpose.xlu0.b32.cont [4/16] %v935, 128
          %944 = vxpose.xlu0.b32.cont [5/16] 0.0, 128
          %945 = vxpose.xlu0.b32.cont [6/16] 0.0, 128
          %946 = vxpose.xlu0.b32.cont [7/16] 0.0, 128
          %947 = vxpose.xlu0.b32.cont [8/16] 0.0, 128
          %948 = vxpose.xlu0.b32.cont [9/16] 0.0, 128
          %949 = vxpose.xlu0.b32.cont [10/16] 0.0, 128
          %950 = vxpose.xlu0.b32.cont [11/16] 0.0, 128
          %951 = vxpose.xlu0.b32.cont [12/16] 0.0, 128
          %952 = vxpose.xlu0.b32.cont [13/16] 0.0, 128
          %953 = vxpose.xlu0.b32.cont [14/16] 0.0, 128
          %954 = vxpose.xlu0.b32.cont [15/16] 0.0, 128
          %955 = vxpose.xlu0.b32.end [16/16] 0.0, 128
          %v956 = vpop.trf.xlu0
          %v957 = vpop.trf.xlu0
          %v958 = vpop.trf.xlu0
          %v959 = vpop.trf.xlu0
          %v960 = vpop.trf.xlu0
          %v961 = vpop.trf.xlu0
          %v962 = vpop.trf.xlu0
          %v963 = vpop.trf.xlu0
          %v964 = vpop.trf.xlu0
          %v965 = vpop.trf.xlu0
          %v966 = vpop.trf.xlu0
          %v967 = vpop.trf.xlu0
          %v968 = vpop.trf.xlu0
          %v969 = vpop.trf.xlu0
          %v970 = vpop.trf.xlu0
          %v971 = vpop.trf.xlu0
          %s972 = scalar_lea.vmem [#allocation3], 24
          %973 = vst.msk [vmem:[%s972] sm:$0xff] %vm560, %v956
          %974 = vrot.lane.b32.xlu0 %v730, 72
          %v975 = vpop.permute.xlu0 %974
          %976 = vrot.lane.b32.xlu0 %v735, 72
          %v977 = vpop.permute.xlu0 %976
          %978 = vrot.lane.b32.xlu0 %v740, 72
          %v979 = vpop.permute.xlu0 %978
          %980 = vrot.lane.b32.xlu0 %v745, 72
          %v981 = vpop.permute.xlu0 %980
          %s986 = scalar_lea.vmem [#allocation4], 96
          %987 = vst.msk [vmem:[%s986] sm:$0xff] %vm797, %v975
          %988 = vst.msk [vmem:[%s986 + $0x8] sm:$0xff] %vm797, %v977
          %989 = vst.msk [vmem:[%s986 + $0x10] sm:$0xff] %vm797, %v979
          %990 = vst.msk [vmem:[%s986 + $0x18] sm:$0xff] %vm797, %v981
        $region96: #{tpu_custom_call.1} parent=79 // pred_fallthru
          _
        %s991 = smul.u32 %s36, 16
        %s992 = scalar_lea.vmem %s550, %s991
        %v993 = vld [vmem:[%s992] sm:$0xff]
        %v994 = vld [vmem:[%s992 + $0x8] sm:$0xff]
        %s995 = scalar_lea.vmem [#allocation2], %s991
        %v996 = vld [vmem:[%s995] sm:$0xff]
        %v997 = vld [vmem:[%s995 + $0x8] sm:$0xff]
        %v998 = vld [vmem:[%s3] sm:$0xff]
        %v999 = vld [vmem:[%s3 + $0x8] sm:$0xff]
        %v1000 = vld [vmem:[%s3 + $0x10] sm:$0xff]
        %v1001 = vld [vmem:[%s3 + $0x18] sm:$0xff]
        %v1002 = vld [vmem:[%s4] sm:$0x1]
        %v1004 = vlaneseq
        %v1005 = vshrl.u32 %v1004, 7
        %v1006 = vsub.s32 0, %v1005
        %v1007 = vrot.slane %v1002, %v1006
        %vm1009 = vcmask 261120
        %v1011 = vsel %vm1009, %v996, 0
        %v1014 = vsel %vm1009, %v997, 0
        %1016 = vmatprep.subr.mxu0 0.0
        %1017 = vmatpush1.msra.mxu0 %v998
        %1018 = vmatprep.subr.mxu0 0.0
        %1019 = vmatpush1.msra.mxu0 %v999
        %1020 = vmatprep.subr.mxu0 0.0
        %1021 = vmatpush1.msra.mxu0 %v1000
        %1022 = vmatprep.subr.mxu0 0.0
        %1023 = vmatpush1.msra.mxu0 %v1001
        %1024 = vmatprep.subr.mxu0 0.0
        %1025 = vmatpush1.msra.mxu0 0.0
        %1026 = vmatprep.subr.mxu0 0.0
        %1027 = vmatpush1.msra.mxu0 0.0
        %1028 = vmatprep.subr.mxu0 0.0
        %1029 = vmatpush1.msra.mxu0 0.0
        %1030 = vmatprep.subr.mxu0 0.0
        %1031 = vmatpush1.msra.mxu0 0.0
        %1032 = vmatprep.subr.mxu0 0.0
        %1033 = vmatpush1.msra.mxu0 0.0
        %1034 = vmatprep.subr.mxu0 0.0
        %1035 = vmatpush1.msra.mxu0 0.0
        %1036 = vmatprep.subr.mxu0 0.0
        %1037 = vmatpush1.msra.mxu0 0.0
        %1038 = vmatprep.subr.mxu0 0.0
        %1039 = vmatpush1.msra.mxu0 0.0
        %1040 = vmatprep.subr.mxu0 0.0
        %1041 = vmatpush1.msra.mxu0 0.0
        %1042 = vmatprep.subr.mxu0 0.0
        %1043 = vmatpush1.msra.mxu0 0.0
        %1044 = vmatprep.subr.mxu0 0.0
        %1045 = vmatpush1.msra.mxu0 0.0
        %1046 = vmatprep.subr.mxu0 0.0
        %1047 = vmatpush1.msra.mxu0 0.0
        %1048 = vmatprep.subr.mxu0 0.0
        %1049 = vmatpush1.msra.mxu0 0.0
        %1050 = vmatprep.subr.mxu0 0.0
        %1051 = vmatpush1.msra.mxu0 0.0
        %1052 = vmatprep.subr.mxu0 0.0
        %1053 = vmatpush1.msra.mxu0 0.0
        %1054 = vmatprep.subr.mxu0 0.0
        %1055 = vmatpush1.msra.mxu0 0.0
        %1056 = vmatprep.subr.mxu0 0.0
        %1057 = vmatpush1.msra.mxu0 0.0
        %1058 = vmatprep.subr.mxu0 0.0
        %1059 = vmatpush1.msra.mxu0 0.0
        %1060 = vmatprep.subr.mxu0 0.0
        %1061 = vmatpush1.msra.mxu0 0.0
        %1062 = vmatprep.subr.mxu0 0.0
        %1063 = vmatpush1.msra.mxu0 0.0
        %1064 = vmatprep.subr.mxu0 0.0
        %1065 = vmatpush1.msra.mxu0 0.0
        %1066 = vmatprep.subr.mxu0 0.0
        %1067 = vmatpush1.msra.mxu0 0.0
        %1068 = vmatprep.subr.mxu0 0.0
        %1069 = vmatpush1.msra.mxu0 0.0
        %1070 = vmatprep.subr.mxu0 0.0
        %1071 = vmatpush1.msra.mxu0 0.0
        %1072 = vmatprep.subr.mxu0 0.0
        %1073 = vmatpush1.msra.mxu0 0.0
        %1074 = vmatprep.subr.mxu0 0.0
        %1075 = vmatpush1.msra.mxu0 0.0
        %1076 = vmatprep.subr.mxu0 0.0
        %1077 = vmatpush1.msra.mxu0 0.0
        %1078 = vmatprep.subr.mxu0 0.0
        %1079 = vmatpush1.msra.mxu0 0.0
        %1080 = vmatprep.mubr.f32.mxu0 0.0
        %1081 = vmatmul.mubr.f32.gmra.mrb[0].mxu0 %v1011
        %v1082 = vpop.f32.mrb[0].mxu0
        %v1083 = vadd.f32 %v1007, %v1082
        %v1084 = vpop.f32.mrb[0].mxu0
        %1085 = vmatprep.mubr.f32.mxu0 0.0
        %1086 = vmatmul.mubr.f32.gmra.mrb[0].mxu0 %v1014
        %v1087 = vpop.f32.mrb[0].mxu0
        %v1088 = vadd.f32 %v1007, %v1087
        %v1089 = vpop.f32.mrb[0].mxu0
        %1090 = vdwg.mxu0
        %v1091 = vld [vmem:[#allocation3] sm:$0xff]
        %vm1092 = vcmask 64512
        %v1094 = vsel %vm1092, %v1083, 0
        %v1097 = vsel %vm1092, %v1088, 0
        %1099 = vmatprep.subr.mxu0 0.0
        %1100 = vmatpush1.msra.mxu0 %v1091
        %1101 = vmatprep.subr.mxu0 0.0
        %1102 = vmatpush1.msra.mxu0 0.0
        %1103 = vmatprep.subr.mxu0 0.0
        %1104 = vmatpush1.msra.mxu0 0.0
        %1105 = vmatprep.subr.mxu0 0.0
        %1106 = vmatpush1.msra.mxu0 0.0
        %1107 = vmatprep.subr.mxu0 0.0
        %1108 = vmatpush1.msra.mxu0 0.0
        %1109 = vmatprep.subr.mxu0 0.0
        %1110 = vmatpush1.msra.mxu0 0.0
        %1111 = vmatprep.subr.mxu0 0.0
        %1112 = vmatpush1.msra.mxu0 0.0
        %1113 = vmatprep.subr.mxu0 0.0
        %1114 = vmatpush1.msra.mxu0 0.0
        %1115 = vmatprep.subr.mxu0 0.0
        %1116 = vmatpush1.msra.mxu0 0.0
        %1117 = vmatprep.subr.mxu0 0.0
        %1118 = vmatpush1.msra.mxu0 0.0
        %1119 = vmatprep.subr.mxu0 0.0
        %1120 = vmatpush1.msra.mxu0 0.0
        %1121 = vmatprep.subr.mxu0 0.0
        %1122 = vmatpush1.msra.mxu0 0.0
        %1123 = vmatprep.subr.mxu0 0.0
        %1124 = vmatpush1.msra.mxu0 0.0
        %1125 = vmatprep.subr.mxu0 0.0
        %1126 = vmatpush1.msra.mxu0 0.0
        %1127 = vmatprep.subr.mxu0 0.0
        %1128 = vmatpush1.msra.mxu0 0.0
        %1129 = vmatprep.subr.mxu0 0.0
        %1130 = vmatpush1.msra.mxu0 0.0
        %1131 = vmatprep.subr.mxu0 0.0
        %1132 = vmatpush1.msra.mxu0 0.0
        %1133 = vmatprep.subr.mxu0 0.0
        %1134 = vmatpush1.msra.mxu0 0.0
        %1135 = vmatprep.subr.mxu0 0.0
        %1136 = vmatpush1.msra.mxu0 0.0
        %1137 = vmatprep.subr.mxu0 0.0
        %1138 = vmatpush1.msra.mxu0 0.0
        %1139 = vmatprep.subr.mxu0 0.0
        %1140 = vmatpush1.msra.mxu0 0.0
        %1141 = vmatprep.subr.mxu0 0.0
        %1142 = vmatpush1.msra.mxu0 0.0
        %1143 = vmatprep.subr.mxu0 0.0
        %1144 = vmatpush1.msra.mxu0 0.0
        %1145 = vmatprep.subr.mxu0 0.0
        %1146 = vmatpush1.msra.mxu0 0.0
        %1147 = vmatprep.subr.mxu0 0.0
        %1148 = vmatpush1.msra.mxu0 0.0
        %1149 = vmatprep.subr.mxu0 0.0
        %1150 = vmatpush1.msra.mxu0 0.0
        %1151 = vmatprep.subr.mxu0 0.0
        %1152 = vmatpush1.msra.mxu0 0.0
        %1153 = vmatprep.subr.mxu0 0.0
        %1154 = vmatpush1.msra.mxu0 0.0
        %1155 = vmatprep.subr.mxu0 0.0
        %1156 = vmatpush1.msra.mxu0 0.0
        %1157 = vmatprep.subr.mxu0 0.0
        %1158 = vmatpush1.msra.mxu0 0.0
        %1159 = vmatprep.subr.mxu0 0.0
        %1160 = vmatpush1.msra.mxu0 0.0
        %1161 = vmatprep.subr.mxu0 0.0
        %1162 = vmatpush1.msra.mxu0 0.0
        %1163 = vmatprep.mubr.f32.mxu0 0.0
        %1164 = vmatmul.mubr.f32.gmra.mrb[0].mxu0 %v1094
        %v1165 = vpop.f32.mrb[0].mxu0
        %v1166 = vadd.f32 0.0, %v1165
        %v1167 = vpop.f32.mrb[0].mxu0
        %1168 = vmatprep.mubr.f32.mxu0 0.0
        %1169 = vmatmul.mubr.f32.gmra.mrb[0].mxu0 %v1097
        %v1170 = vpop.f32.mrb[0].mxu0
        %v1171 = vadd.f32 0.0, %v1170
        %v1172 = vpop.f32.mrb[0].mxu0
        %1173 = vdwg.mxu0
        %v1174 = vsel %vm1009, %v1166, -inf
        %1175 = vmax.xlane.f32.xlu0 %v1174
        %v1176 = vpop.xlane.xlu0 %1175
        %v1177 = vsel %vm1009, %v1171, -inf
        %1178 = vmax.xlane.f32.xlu0 %v1177
        %v1179 = vpop.xlane.xlu0 %1178
        %v1180 = vsub.f32 %v1166, %v1176
        %v1181 = vsub.f32 %v1171, %v1179
        %v1182 = vmul.f32 %v1180, 1.442695
        %v1183 = vpow.pop %v1182
        %v1184 = vmul.f32 %v1181, 1.442695
        %v1185 = vpow.pop %v1184
        %v1186 = vsel %vm1009, %v1183, 0.0
        %1187 = vadd.xlane.f32.xlu0 %v1186
        %v1188 = vpop.xlane.xlu0 %1187
        %v1189 = vsel %vm1009, %v1185, 0.0
        %1190 = vadd.xlane.f32.xlu0 %v1189
        %v1191 = vpop.xlane.xlu0 %1190
        %v1192 = vrcp.pop %v1188
        %v1193 = vrcp.pop %v1191
        %v1194 = vmul.f32 %v1183, %v1192
        %v1195 = vmul.f32 %v1185, %v1193
        %v1196 = vld [vmem:[#allocation4] sm:$0xff]
        %v1197 = vld [vmem:[#allocation4 + $0x8] sm:$0xff]
        %v1198 = vld [vmem:[#allocation4 + $0x10] sm:$0xff]
        %v1199 = vld [vmem:[#allocation4 + $0x18] sm:$0xff]
        %v1201 = vsel %vm1009, %v1194, 0
        %v1204 = vsel %vm1009, %v1195, 0
        %1206 = vmatprep.subr.mxu0 0.0
        %1207 = vmatpush1.msra.mxu0 %v1196
        %1208 = vmatprep.subr.mxu0 0.0
        %1209 = vmatpush1.msra.mxu0 %v1197
        %1210 = vmatprep.subr.mxu0 0.0
        %1211 = vmatpush1.msra.mxu0 %v1198
        %1212 = vmatprep.subr.mxu0 0.0
        %1213 = vmatpush1.msra.mxu0 %v1199
        %1214 = vmatprep.subr.mxu0 0.0
        %1215 = vmatpush1.msra.mxu0 0.0
        %1216 = vmatprep.subr.mxu0 0.0
        %1217 = vmatpush1.msra.mxu0 0.0
        %1218 = vmatprep.subr.mxu0 0.0
        %1219 = vmatpush1.msra.mxu0 0.0
        %1220 = vmatprep.subr.mxu0 0.0
        %1221 = vmatpush1.msra.mxu0 0.0
        %1222 = vmatprep.subr.mxu0 0.0
        %1223 = vmatpush1.msra.mxu0 0.0
        %1224 = vmatprep.subr.mxu0 0.0
        %1225 = vmatpush1.msra.mxu0 0.0
        %1226 = vmatprep.subr.mxu0 0.0
        %1227 = vmatpush1.msra.mxu0 0.0
        %1228 = vmatprep.subr.mxu0 0.0
        %1229 = vmatpush1.msra.mxu0 0.0
        %1230 = vmatprep.subr.mxu0 0.0
        %1231 = vmatpush1.msra.mxu0 0.0
        %1232 = vmatprep.subr.mxu0 0.0
        %1233 = vmatpush1.msra.mxu0 0.0
        %1234 = vmatprep.subr.mxu0 0.0
        %1235 = vmatpush1.msra.mxu0 0.0
        %1236 = vmatprep.subr.mxu0 0.0
        %1237 = vmatpush1.msra.mxu0 0.0
        %1238 = vmatprep.subr.mxu0 0.0
        %1239 = vmatpush1.msra.mxu0 0.0
        %1240 = vmatprep.subr.mxu0 0.0
        %1241 = vmatpush1.msra.mxu0 0.0
        %1242 = vmatprep.subr.mxu0 0.0
        %1243 = vmatpush1.msra.mxu0 0.0
        %1244 = vmatprep.subr.mxu0 0.0
        %1245 = vmatpush1.msra.mxu0 0.0
        %1246 = vmatprep.subr.mxu0 0.0
        %1247 = vmatpush1.msra.mxu0 0.0
        %1248 = vmatprep.subr.mxu0 0.0
        %1249 = vmatpush1.msra.mxu0 0.0
        %1250 = vmatprep.subr.mxu0 0.0
        %1251 = vmatpush1.msra.mxu0 0.0
        %1252 = vmatprep.subr.mxu0 0.0
        %1253 = vmatpush1.msra.mxu0 0.0
        %1254 = vmatprep.subr.mxu0 0.0
        %1255 = vmatpush1.msra.mxu0 0.0
        %1256 = vmatprep.subr.mxu0 0.0
        %1257 = vmatpush1.msra.mxu0 0.0
        %1258 = vmatprep.subr.mxu0 0.0
        %1259 = vmatpush1.msra.mxu0 0.0
        %1260 = vmatprep.subr.mxu0 0.0
        %1261 = vmatpush1.msra.mxu0 0.0
        %1262 = vmatprep.subr.mxu0 0.0
        %1263 = vmatpush1.msra.mxu0 0.0
        %1264 = vmatprep.subr.mxu0 0.0
        %1265 = vmatpush1.msra.mxu0 0.0
        %1266 = vmatprep.subr.mxu0 0.0
        %1267 = vmatpush1.msra.mxu0 0.0
        %1268 = vmatprep.subr.mxu0 0.0
        %1269 = vmatpush1.msra.mxu0 0.0
        %1270 = vmatprep.mubr.f32.mxu0 0.0
        %1271 = vmatmul.mubr.f32.gmra.mrb[0].mxu0 %v1201
        %v1272 = vpop.f32.mrb[0].mxu0
        %v1273 = vadd.f32 0.0, %v1272
        %v1274 = vpop.f32.mrb[0].mxu0
        %1275 = vmatprep.mubr.f32.mxu0 0.0
        %1276 = vmatmul.mubr.f32.gmra.mrb[0].mxu0 %v1204
        %v1277 = vpop.f32.mrb[0].mxu0
        %v1278 = vadd.f32 0.0, %v1277
        %v1279 = vpop.f32.mrb[0].mxu0
        %1280 = vdwg.mxu0
        %v1281 = vld [vmem:[#allocation8] sm:$0xff]
        %s1282 = scalar_lea.vmem [#allocation3], 8
        %v1283 = vld [vmem:[%s1282] sm:$0xff]
        %1284 = vrot.lane.b32.xlu0 %v1083, 120
        %v1285 = vpop.permute.xlu0 %1284
        %1286 = vrot.lane.b32.xlu0 %v1088, 120
        %v1287 = vpop.permute.xlu0 %1286
        %v1288 = vsel %vm1092, %v1285, 0
        %v1290 = vsel %vm1092, %v1287, 0
        %1292 = vmatprep.subr.mxu0 0.0
        %1293 = vmatpush1.msra.mxu0 %v1283
        %1294 = vmatprep.subr.mxu0 0.0
        %1295 = vmatpush1.msra.mxu0 0.0
        %1296 = vmatprep.subr.mxu0 0.0
        %1297 = vmatpush1.msra.mxu0 0.0
        %1298 = vmatprep.subr.mxu0 0.0
        %1299 = vmatpush1.msra.mxu0 0.0
        %1300 = vmatprep.subr.mxu0 0.0
        %1301 = vmatpush1.msra.mxu0 0.0
        %1302 = vmatprep.subr.mxu0 0.0
        %1303 = vmatpush1.msra.mxu0 0.0
        %1304 = vmatprep.subr.mxu0 0.0
        %1305 = vmatpush1.msra.mxu0 0.0
        %1306 = vmatprep.subr.mxu0 0.0
        %1307 = vmatpush1.msra.mxu0 0.0
        %1308 = vmatprep.subr.mxu0 0.0
        %1309 = vmatpush1.msra.mxu0 0.0
        %1310 = vmatprep.subr.mxu0 0.0
        %1311 = vmatpush1.msra.mxu0 0.0
        %1312 = vmatprep.subr.mxu0 0.0
        %1313 = vmatpush1.msra.mxu0 0.0
        %1314 = vmatprep.subr.mxu0 0.0
        %1315 = vmatpush1.msra.mxu0 0.0
        %1316 = vmatprep.subr.mxu0 0.0
        %1317 = vmatpush1.msra.mxu0 0.0
        %1318 = vmatprep.subr.mxu0 0.0
        %1319 = vmatpush1.msra.mxu0 0.0
        %1320 = vmatprep.subr.mxu0 0.0
        %1321 = vmatpush1.msra.mxu0 0.0
        %1322 = vmatprep.subr.mxu0 0.0
        %1323 = vmatpush1.msra.mxu0 0.0
        %1324 = vmatprep.subr.mxu0 0.0
        %1325 = vmatpush1.msra.mxu0 0.0
        %1326 = vmatprep.subr.mxu0 0.0
        %1327 = vmatpush1.msra.mxu0 0.0
        %1328 = vmatprep.subr.mxu0 0.0
        %1329 = vmatpush1.msra.mxu0 0.0
        %1330 = vmatprep.subr.mxu0 0.0
        %1331 = vmatpush1.msra.mxu0 0.0
        %1332 = vmatprep.subr.mxu0 0.0
        %1333 = vmatpush1.msra.mxu0 0.0
        %1334 = vmatprep.subr.mxu0 0.0
        %1335 = vmatpush1.msra.mxu0 0.0
        %1336 = vmatprep.subr.mxu0 0.0
        %1337 = vmatpush1.msra.mxu0 0.0
        %1338 = vmatprep.subr.mxu0 0.0
        %1339 = vmatpush1.msra.mxu0 0.0
        %1340 = vmatprep.subr.mxu0 0.0
        %1341 = vmatpush1.msra.mxu0 0.0
        %1342 = vmatprep.subr.mxu0 0.0
        %1343 = vmatpush1.msra.mxu0 0.0
        %1344 = vmatprep.subr.mxu0 0.0
        %1345 = vmatpush1.msra.mxu0 0.0
        %1346 = vmatprep.subr.mxu0 0.0
        %1347 = vmatpush1.msra.mxu0 0.0
        %1348 = vmatprep.subr.mxu0 0.0
        %1349 = vmatpush1.msra.mxu0 0.0
        %1350 = vmatprep.subr.mxu0 0.0
        %1351 = vmatpush1.msra.mxu0 0.0
        %1352 = vmatprep.subr.mxu0 0.0
        %1353 = vmatpush1.msra.mxu0 0.0
        %1354 = vmatprep.subr.mxu0 0.0
        %1355 = vmatpush1.msra.mxu0 0.0
        %1356 = vmatprep.mubr.f32.mxu0 0.0
        %1357 = vmatmul.mubr.f32.gmra.mrb[0].mxu0 %v1288
        %v1358 = vpop.f32.mrb[0].mxu0
        %v1359 = vadd.f32 0.0, %v1358
        %v1360 = vpop.f32.mrb[0].mxu0
        %1361 = vmatprep.mubr.f32.mxu0 0.0
        %1362 = vmatmul.mubr.f32.gmra.mrb[0].mxu0 %v1290
        %v1363 = vpop.f32.mrb[0].mxu0
        %v1364 = vadd.f32 0.0, %v1363
        %v1365 = vpop.f32.mrb[0].mxu0
        %1366 = vdwg.mxu0
        %v1367 = vsel %vm1009, %v1359, -inf
        %1368 = vmax.xlane.f32.xlu0 %v1367
        %v1369 = vpop.xlane.xlu0 %1368
        %v1370 = vsel %vm1009, %v1364, -inf
        %1371 = vmax.xlane.f32.xlu0 %v1370
        %v1372 = vpop.xlane.xlu0 %1371
        %v1373 = vsub.f32 %v1359, %v1369
        %v1374 = vsub.f32 %v1364, %v1372
        %v1375 = vmul.f32 %v1373, 1.442695
        %v1376 = vpow.pop %v1375
        %v1377 = vmul.f32 %v1374, 1.442695
        %v1378 = vpow.pop %v1377
        %v1379 = vsel %vm1009, %v1376, 0.0
        %1380 = vadd.xlane.f32.xlu0 %v1379
        %v1381 = vpop.xlane.xlu0 %1380
        %v1382 = vsel %vm1009, %v1378, 0.0
        %1383 = vadd.xlane.f32.xlu0 %v1382
        %v1384 = vpop.xlane.xlu0 %1383
        %v1385 = vrcp.pop %v1381
        %v1386 = vrcp.pop %v1384
        %v1387 = vmul.f32 %v1376, %v1385
        %v1388 = vmul.f32 %v1378, %v1386
        %s1389 = scalar_lea.vmem [#allocation4], 32
        %v1390 = vld [vmem:[%s1389] sm:$0xff]
        %v1391 = vld [vmem:[%s1389 + $0x8] sm:$0xff]
        %v1392 = vld [vmem:[%s1389 + $0x10] sm:$0xff]
        %v1393 = vld [vmem:[%s1389 + $0x18] sm:$0xff]
        %v1395 = vsel %vm1009, %v1387, 0
        %v1398 = vsel %vm1009, %v1388, 0
        %1400 = vmatprep.subr.mxu0 0.0
        %1401 = vmatpush1.msra.mxu0 %v1390
        %1402 = vmatprep.subr.mxu0 0.0
        %1403 = vmatpush1.msra.mxu0 %v1391
        %1404 = vmatprep.subr.mxu0 0.0
        %1405 = vmatpush1.msra.mxu0 %v1392
        %1406 = vmatprep.subr.mxu0 0.0
        %1407 = vmatpush1.msra.mxu0 %v1393
        %1408 = vmatprep.subr.mxu0 0.0
        %1409 = vmatpush1.msra.mxu0 0.0
        %1410 = vmatprep.subr.mxu0 0.0
        %1411 = vmatpush1.msra.mxu0 0.0
        %1412 = vmatprep.subr.mxu0 0.0
        %1413 = vmatpush1.msra.mxu0 0.0
        %1414 = vmatprep.subr.mxu0 0.0
        %1415 = vmatpush1.msra.mxu0 0.0
        %1416 = vmatprep.subr.mxu0 0.0
        %1417 = vmatpush1.msra.mxu0 0.0
        %1418 = vmatprep.subr.mxu0 0.0
        %1419 = vmatpush1.msra.mxu0 0.0
        %1420 = vmatprep.subr.mxu0 0.0
        %1421 = vmatpush1.msra.mxu0 0.0
        %1422 = vmatprep.subr.mxu0 0.0
        %1423 = vmatpush1.msra.mxu0 0.0
        %1424 = vmatprep.subr.mxu0 0.0
        %1425 = vmatpush1.msra.mxu0 0.0
        %1426 = vmatprep.subr.mxu0 0.0
        %1427 = vmatpush1.msra.mxu0 0.0
        %1428 = vmatprep.subr.mxu0 0.0
        %1429 = vmatpush1.msra.mxu0 0.0
        %1430 = vmatprep.subr.mxu0 0.0
        %1431 = vmatpush1.msra.mxu0 0.0
        %1432 = vmatprep.subr.mxu0 0.0
        %1433 = vmatpush1.msra.mxu0 0.0
        %1434 = vmatprep.subr.mxu0 0.0
        %1435 = vmatpush1.msra.mxu0 0.0
        %1436 = vmatprep.subr.mxu0 0.0
        %1437 = vmatpush1.msra.mxu0 0.0
        %1438 = vmatprep.subr.mxu0 0.0
        %1439 = vmatpush1.msra.mxu0 0.0
        %1440 = vmatprep.subr.mxu0 0.0
        %1441 = vmatpush1.msra.mxu0 0.0
        %1442 = vmatprep.subr.mxu0 0.0
        %1443 = vmatpush1.msra.mxu0 0.0
        %1444 = vmatprep.subr.mxu0 0.0
        %1445 = vmatpush1.msra.mxu0 0.0
        %1446 = vmatprep.subr.mxu0 0.0
        %1447 = vmatpush1.msra.mxu0 0.0
        %1448 = vmatprep.subr.mxu0 0.0
        %1449 = vmatpush1.msra.mxu0 0.0
        %1450 = vmatprep.subr.mxu0 0.0
        %1451 = vmatpush1.msra.mxu0 0.0
        %1452 = vmatprep.subr.mxu0 0.0
        %1453 = vmatpush1.msra.mxu0 0.0
        %1454 = vmatprep.subr.mxu0 0.0
        %1455 = vmatpush1.msra.mxu0 0.0
        %1456 = vmatprep.subr.mxu0 0.0
        %1457 = vmatpush1.msra.mxu0 0.0
        %1458 = vmatprep.subr.mxu0 0.0
        %1459 = vmatpush1.msra.mxu0 0.0
        %1460 = vmatprep.subr.mxu0 0.0
        %1461 = vmatpush1.msra.mxu0 0.0
        %1462 = vmatprep.subr.mxu0 0.0
        %1463 = vmatpush1.msra.mxu0 0.0
        %1464 = vmatprep.mubr.f32.mxu0 0.0
        %1465 = vmatmul.mubr.f32.gmra.mrb[0].mxu0 %v1395
        %v1466 = vpop.f32.mrb[0].mxu0
        %v1467 = vadd.f32 0.0, %v1466
        %v1468 = vpop.f32.mrb[0].mxu0
        %1469 = vmatprep.mubr.f32.mxu0 0.0
        %1470 = vmatmul.mubr.f32.gmra.mrb[0].mxu0 %v1398
        %v1471 = vpop.f32.mrb[0].mxu0
        %v1472 = vadd.f32 0.0, %v1471
        %v1473 = vpop.f32.mrb[0].mxu0
        %1474 = vdwg.mxu0
        %s1475 = scalar_lea.vmem [#allocation8], 8
        %v1476 = vld [vmem:[%s1475] sm:$0xff]
        %v1478 = vsel %vm1092, %v1467, 0
        %v1481 = vsel %vm1092, %v1472, 0
        %1483 = vmatprep.subr.mxu0 0.0
        %1484 = vmatpush1.msra.mxu0 %v1476
        %1485 = vmatprep.subr.mxu0 0.0
        %1486 = vmatpush1.msra.mxu0 0.0
        %1487 = vmatprep.subr.mxu0 0.0
        %1488 = vmatpush1.msra.mxu0 0.0
        %1489 = vmatprep.subr.mxu0 0.0
        %1490 = vmatpush1.msra.mxu0 0.0
        %1491 = vmatprep.subr.mxu0 0.0
        %1492 = vmatpush1.msra.mxu0 0.0
        %1493 = vmatprep.subr.mxu0 0.0
        %1494 = vmatpush1.msra.mxu0 0.0
        %1495 = vmatprep.subr.mxu0 0.0
        %1496 = vmatpush1.msra.mxu0 0.0
        %1497 = vmatprep.subr.mxu0 0.0
        %1498 = vmatpush1.msra.mxu0 0.0
        %1499 = vmatprep.subr.mxu0 0.0
        %1500 = vmatpush1.msra.mxu0 0.0
        %1501 = vmatprep.subr.mxu0 0.0
        %1502 = vmatpush1.msra.mxu0 0.0
        %1503 = vmatprep.subr.mxu0 0.0
        %1504 = vmatpush1.msra.mxu0 0.0
        %1505 = vmatprep.subr.mxu0 0.0
        %1506 = vmatpush1.msra.mxu0 0.0
        %1507 = vmatprep.subr.mxu0 0.0
        %1508 = vmatpush1.msra.mxu0 0.0
        %1509 = vmatprep.subr.mxu0 0.0
        %1510 = vmatpush1.msra.mxu0 0.0
        %1511 = vmatprep.subr.mxu0 0.0
        %1512 = vmatpush1.msra.mxu0 0.0
        %1513 = vmatprep.subr.mxu0 0.0
        %1514 = vmatpush1.msra.mxu0 0.0
        %1515 = vmatprep.subr.mxu0 0.0
        %1516 = vmatpush1.msra.mxu0 0.0
        %1517 = vmatprep.subr.mxu0 0.0
        %1518 = vmatpush1.msra.mxu0 0.0
        %1519 = vmatprep.subr.mxu0 0.0
        %1520 = vmatpush1.msra.mxu0 0.0
        %1521 = vmatprep.subr.mxu0 0.0
        %1522 = vmatpush1.msra.mxu0 0.0
        %1523 = vmatprep.subr.mxu0 0.0
        %1524 = vmatpush1.msra.mxu0 0.0
        %1525 = vmatprep.subr.mxu0 0.0
        %1526 = vmatpush1.msra.mxu0 0.0
        %1527 = vmatprep.subr.mxu0 0.0
        %1528 = vmatpush1.msra.mxu0 0.0
        %1529 = vmatprep.subr.mxu0 0.0
        %1530 = vmatpush1.msra.mxu0 0.0
        %1531 = vmatprep.subr.mxu0 0.0
        %1532 = vmatpush1.msra.mxu0 0.0
        %1533 = vmatprep.subr.mxu0 0.0
        %1534 = vmatpush1.msra.mxu0 0.0
        %1535 = vmatprep.subr.mxu0 0.0
        %1536 = vmatpush1.msra.mxu0 0.0
        %1537 = vmatprep.subr.mxu0 0.0
        %1538 = vmatpush1.msra.mxu0 0.0
        %1539 = vmatprep.subr.mxu0 0.0
        %1540 = vmatpush1.msra.mxu0 0.0
        %1541 = vmatprep.subr.mxu0 0.0
        %1542 = vmatpush1.msra.mxu0 0.0
        %1543 = vmatprep.subr.mxu0 0.0
        %1544 = vmatpush1.msra.mxu0 0.0
        %1545 = vmatprep.subr.mxu0 0.0
        %1546 = vmatpush1.msra.mxu0 0.0
        %1547 = vmatprep.mubr.f32.mxu0 0.0
        %1548 = vmatmul.mubr.f32.gmra.mrb[0].mxu0 %v1478
        %v1549 = vpop.f32.mrb[0].mxu0
        %v1550 = vadd.f32 0.0, %v1549
        %v1551 = vpop.f32.mrb[0].mxu0
        %1552 = vmatprep.mubr.f32.mxu0 0.0
        %1553 = vmatmul.mubr.f32.gmra.mrb[0].mxu0 %v1481
        %v1554 = vpop.f32.mrb[0].mxu0
        %v1555 = vadd.f32 0.0, %v1554
        %v1556 = vpop.f32.mrb[0].mxu0
        %1557 = vdwg.mxu0
        %v1559 = vsel %vm1092, %v1273, 0
        %v1562 = vsel %vm1092, %v1278, 0
        %1564 = vmatprep.subr.mxu0 0.0
        %1565 = vmatpush1.msra.mxu0 %v1281
        %1566 = vmatprep.subr.mxu0 0.0
        %1567 = vmatpush1.msra.mxu0 0.0
        %1568 = vmatprep.subr.mxu0 0.0
        %1569 = vmatpush1.msra.mxu0 0.0
        %1570 = vmatprep.subr.mxu0 0.0
        %1571 = vmatpush1.msra.mxu0 0.0
        %1572 = vmatprep.subr.mxu0 0.0
        %1573 = vmatpush1.msra.mxu0 0.0
        %1574 = vmatprep.subr.mxu0 0.0
        %1575 = vmatpush1.msra.mxu0 0.0
        %1576 = vmatprep.subr.mxu0 0.0
        %1577 = vmatpush1.msra.mxu0 0.0
        %1578 = vmatprep.subr.mxu0 0.0
        %1579 = vmatpush1.msra.mxu0 0.0
        %1580 = vmatprep.subr.mxu0 0.0
        %1581 = vmatpush1.msra.mxu0 0.0
        %1582 = vmatprep.subr.mxu0 0.0
        %1583 = vmatpush1.msra.mxu0 0.0
        %1584 = vmatprep.subr.mxu0 0.0
        %1585 = vmatpush1.msra.mxu0 0.0
        %1586 = vmatprep.subr.mxu0 0.0
        %1587 = vmatpush1.msra.mxu0 0.0
        %1588 = vmatprep.subr.mxu0 0.0
        %1589 = vmatpush1.msra.mxu0 0.0
        %1590 = vmatprep.subr.mxu0 0.0
        %1591 = vmatpush1.msra.mxu0 0.0
        %1592 = vmatprep.subr.mxu0 0.0
        %1593 = vmatpush1.msra.mxu0 0.0
        %1594 = vmatprep.subr.mxu0 0.0
        %1595 = vmatpush1.msra.mxu0 0.0
        %1596 = vmatprep.subr.mxu0 0.0
        %1597 = vmatpush1.msra.mxu0 0.0
        %1598 = vmatprep.subr.mxu0 0.0
        %1599 = vmatpush1.msra.mxu0 0.0
        %1600 = vmatprep.subr.mxu0 0.0
        %1601 = vmatpush1.msra.mxu0 0.0
        %1602 = vmatprep.subr.mxu0 0.0
        %1603 = vmatpush1.msra.mxu0 0.0
        %1604 = vmatprep.subr.mxu0 0.0
        %1605 = vmatpush1.msra.mxu0 0.0
        %1606 = vmatprep.subr.mxu0 0.0
        %1607 = vmatpush1.msra.mxu0 0.0
        %1608 = vmatprep.subr.mxu0 0.0
        %1609 = vmatpush1.msra.mxu0 0.0
        %1610 = vmatprep.subr.mxu0 0.0
        %1611 = vmatpush1.msra.mxu0 0.0
        %1612 = vmatprep.subr.mxu0 0.0
        %1613 = vmatpush1.msra.mxu0 0.0
        %1614 = vmatprep.subr.mxu0 0.0
        %1615 = vmatpush1.msra.mxu0 0.0
        %1616 = vmatprep.subr.mxu0 0.0
        %1617 = vmatpush1.msra.mxu0 0.0
        %1618 = vmatprep.subr.mxu0 0.0
        %1619 = vmatpush1.msra.mxu0 0.0
        %1620 = vmatprep.subr.mxu0 0.0
        %1621 = vmatpush1.msra.mxu0 0.0
        %1622 = vmatprep.subr.mxu0 0.0
        %1623 = vmatpush1.msra.mxu0 0.0
        %1624 = vmatprep.subr.mxu0 0.0
        %1625 = vmatpush1.msra.mxu0 0.0
        %1626 = vmatprep.subr.mxu0 0.0
        %1627 = vmatpush1.msra.mxu0 0.0
        %1628 = vmatprep.mubr.f32.mxu0 0.0
        %1629 = vmatmul.mubr.f32.gmra.mrb[0].mxu0 %v1559
        %v1630 = vpop.f32.mrb[0].mxu0
        %v1631 = vadd.f32 %v1550, %v1630
        %v1632 = vpop.f32.mrb[0].mxu0
        %1633 = vmatprep.mubr.f32.mxu0 0.0
        %1634 = vmatmul.mubr.f32.gmra.mrb[0].mxu0 %v1562
        %v1635 = vpop.f32.mrb[0].mxu0
        %v1636 = vadd.f32 %v1555, %v1635
        %v1637 = vpop.f32.mrb[0].mxu0
        %1638 = vdwg.mxu0
        %s1639 = scalar_lea.vmem [#allocation3], 16
        %v1640 = vld [vmem:[%s1639] sm:$0xff]
        %1641 = vrot.lane.b32.xlu0 %v1083, 112
        %v1642 = vpop.permute.xlu0 %1641
        %1643 = vrot.lane.b32.xlu0 %v1088, 112
        %v1644 = vpop.permute.xlu0 %1643
        %v1645 = vsel %vm1092, %v1642, 0
        %v1647 = vsel %vm1092, %v1644, 0
        %1649 = vmatprep.subr.mxu0 0.0
        %1650 = vmatpush1.msra.mxu0 %v1640
        %1651 = vmatprep.subr.mxu0 0.0
        %1652 = vmatpush1.msra.mxu0 0.0
        %1653 = vmatprep.subr.mxu0 0.0
        %1654 = vmatpush1.msra.mxu0 0.0
        %1655 = vmatprep.subr.mxu0 0.0
        %1656 = vmatpush1.msra.mxu0 0.0
        %1657 = vmatprep.subr.mxu0 0.0
        %1658 = vmatpush1.msra.mxu0 0.0
        %1659 = vmatprep.subr.mxu0 0.0
        %1660 = vmatpush1.msra.mxu0 0.0
        %1661 = vmatprep.subr.mxu0 0.0
        %1662 = vmatpush1.msra.mxu0 0.0
        %1663 = vmatprep.subr.mxu0 0.0
        %1664 = vmatpush1.msra.mxu0 0.0
        %1665 = vmatprep.subr.mxu0 0.0
        %1666 = vmatpush1.msra.mxu0 0.0
        %1667 = vmatprep.subr.mxu0 0.0
        %1668 = vmatpush1.msra.mxu0 0.0
        %1669 = vmatprep.subr.mxu0 0.0
        %1670 = vmatpush1.msra.mxu0 0.0
        %1671 = vmatprep.subr.mxu0 0.0
        %1672 = vmatpush1.msra.mxu0 0.0
        %1673 = vmatprep.subr.mxu0 0.0
        %1674 = vmatpush1.msra.mxu0 0.0
        %1675 = vmatprep.subr.mxu0 0.0
        %1676 = vmatpush1.msra.mxu0 0.0
        %1677 = vmatprep.subr.mxu0 0.0
        %1678 = vmatpush1.msra.mxu0 0.0
        %1679 = vmatprep.subr.mxu0 0.0
        %1680 = vmatpush1.msra.mxu0 0.0
        %1681 = vmatprep.subr.mxu0 0.0
        %1682 = vmatpush1.msra.mxu0 0.0
        %1683 = vmatprep.subr.mxu0 0.0
        %1684 = vmatpush1.msra.mxu0 0.0
        %1685 = vmatprep.subr.mxu0 0.0
        %1686 = vmatpush1.msra.mxu0 0.0
        %1687 = vmatprep.subr.mxu0 0.0
        %1688 = vmatpush1.msra.mxu0 0.0
        %1689 = vmatprep.subr.mxu0 0.0
        %1690 = vmatpush1.msra.mxu0 0.0
        %1691 = vmatprep.subr.mxu0 0.0
        %1692 = vmatpush1.msra.mxu0 0.0
        %1693 = vmatprep.subr.mxu0 0.0
        %1694 = vmatpush1.msra.mxu0 0.0
        %1695 = vmatprep.subr.mxu0 0.0
        %1696 = vmatpush1.msra.mxu0 0.0
        %1697 = vmatprep.subr.mxu0 0.0
        %1698 = vmatpush1.msra.mxu0 0.0
        %1699 = vmatprep.subr.mxu0 0.0
        %1700 = vmatpush1.msra.mxu0 0.0
        %1701 = vmatprep.subr.mxu0 0.0
        %1702 = vmatpush1.msra.mxu0 0.0
        %1703 = vmatprep.subr.mxu0 0.0
        %1704 = vmatpush1.msra.mxu0 0.0
        %1705 = vmatprep.subr.mxu0 0.0
        %1706 = vmatpush1.msra.mxu0 0.0
        %1707 = vmatprep.subr.mxu0 0.0
        %1708 = vmatpush1.msra.mxu0 0.0
        %1709 = vmatprep.subr.mxu0 0.0
        %1710 = vmatpush1.msra.mxu0 0.0
        %1711 = vmatprep.subr.mxu0 0.0
        %1712 = vmatpush1.msra.mxu0 0.0
        %1713 = vmatprep.mubr.f32.mxu0 0.0
        %1714 = vmatmul.mubr.f32.gmra.mrb[0].mxu0 %v1645
        %v1715 = vpop.f32.mrb[0].mxu0
        %v1716 = vadd.f32 0.0, %v1715
        %v1717 = vpop.f32.mrb[0].mxu0
        %1718 = vmatprep.mubr.f32.mxu0 0.0
        %1719 = vmatmul.mubr.f32.gmra.mrb[0].mxu0 %v1647
        %v1720 = vpop.f32.mrb[0].mxu0
        %v1721 = vadd.f32 0.0, %v1720
        %v1722 = vpop.f32.mrb[0].mxu0
        %1723 = vdwg.mxu0
        %v1724 = vsel %vm1009, %v1716, -inf
        %1725 = vmax.xlane.f32.xlu0 %v1724
        %v1726 = vpop.xlane.xlu0 %1725
        %v1727 = vsel %vm1009, %v1721, -inf
        %1728 = vmax.xlane.f32.xlu0 %v1727
        %v1729 = vpop.xlane.xlu0 %1728
        %v1730 = vsub.f32 %v1716, %v1726
        %v1731 = vsub.f32 %v1721, %v1729
        %v1732 = vmul.f32 %v1730, 1.442695
        %v1733 = vpow.pop %v1732
        %v1734 = vmul.f32 %v1731, 1.442695
        %v1735 = vpow.pop %v1734
        %v1736 = vsel %vm1009, %v1733, 0.0
        %1737 = vadd.xlane.f32.xlu0 %v1736
        %v1738 = vpop.xlane.xlu0 %1737
        %v1739 = vsel %vm1009, %v1735, 0.0
        %1740 = vadd.xlane.f32.xlu0 %v1739
        %v1741 = vpop.xlane.xlu0 %1740
        %v1742 = vrcp.pop %v1738
        %v1743 = vrcp.pop %v1741
        %v1744 = vmul.f32 %v1733, %v1742
        %v1745 = vmul.f32 %v1735, %v1743
        %s1746 = scalar_lea.vmem [#allocation4], 64
        %v1747 = vld [vmem:[%s1746] sm:$0xff]
        %v1748 = vld [vmem:[%s1746 + $0x8] sm:$0xff]
        %v1749 = vld [vmem:[%s1746 + $0x10] sm:$0xff]
        %v1750 = vld [vmem:[%s1746 + $0x18] sm:$0xff]
        %v1752 = vsel %vm1009, %v1744, 0
        %v1755 = vsel %vm1009, %v1745, 0
        %1757 = vmatprep.subr.mxu0 0.0
        %1758 = vmatpush1.msra.mxu0 %v1747
        %1759 = vmatprep.subr.mxu0 0.0
        %1760 = vmatpush1.msra.mxu0 %v1748
        %1761 = vmatprep.subr.mxu0 0.0
        %1762 = vmatpush1.msra.mxu0 %v1749
        %1763 = vmatprep.subr.mxu0 0.0
        %1764 = vmatpush1.msra.mxu0 %v1750
        %1765 = vmatprep.subr.mxu0 0.0
        %1766 = vmatpush1.msra.mxu0 0.0
        %1767 = vmatprep.subr.mxu0 0.0
        %1768 = vmatpush1.msra.mxu0 0.0
        %1769 = vmatprep.subr.mxu0 0.0
        %1770 = vmatpush1.msra.mxu0 0.0
        %1771 = vmatprep.subr.mxu0 0.0
        %1772 = vmatpush1.msra.mxu0 0.0
        %1773 = vmatprep.subr.mxu0 0.0
        %1774 = vmatpush1.msra.mxu0 0.0
        %1775 = vmatprep.subr.mxu0 0.0
        %1776 = vmatpush1.msra.mxu0 0.0
        %1777 = vmatprep.subr.mxu0 0.0
        %1778 = vmatpush1.msra.mxu0 0.0
        %1779 = vmatprep.subr.mxu0 0.0
        %1780 = vmatpush1.msra.mxu0 0.0
        %1781 = vmatprep.subr.mxu0 0.0
        %1782 = vmatpush1.msra.mxu0 0.0
        %1783 = vmatprep.subr.mxu0 0.0
        %1784 = vmatpush1.msra.mxu0 0.0
        %1785 = vmatprep.subr.mxu0 0.0
        %1786 = vmatpush1.msra.mxu0 0.0
        %1787 = vmatprep.subr.mxu0 0.0
        %1788 = vmatpush1.msra.mxu0 0.0
        %1789 = vmatprep.subr.mxu0 0.0
        %1790 = vmatpush1.msra.mxu0 0.0
        %1791 = vmatprep.subr.mxu0 0.0
        %1792 = vmatpush1.msra.mxu0 0.0
        %1793 = vmatprep.subr.mxu0 0.0
        %1794 = vmatpush1.msra.mxu0 0.0
        %1795 = vmatprep.subr.mxu0 0.0
        %1796 = vmatpush1.msra.mxu0 0.0
        %1797 = vmatprep.subr.mxu0 0.0
        %1798 = vmatpush1.msra.mxu0 0.0
        %1799 = vmatprep.subr.mxu0 0.0
        %1800 = vmatpush1.msra.mxu0 0.0
        %1801 = vmatprep.subr.mxu0 0.0
        %1802 = vmatpush1.msra.mxu0 0.0
        %1803 = vmatprep.subr.mxu0 0.0
        %1804 = vmatpush1.msra.mxu0 0.0
        %1805 = vmatprep.subr.mxu0 0.0
        %1806 = vmatpush1.msra.mxu0 0.0
        %1807 = vmatprep.subr.mxu0 0.0
        %1808 = vmatpush1.msra.mxu0 0.0
        %1809 = vmatprep.subr.mxu0 0.0
        %1810 = vmatpush1.msra.mxu0 0.0
        %1811 = vmatprep.subr.mxu0 0.0
        %1812 = vmatpush1.msra.mxu0 0.0
        %1813 = vmatprep.subr.mxu0 0.0
        %1814 = vmatpush1.msra.mxu0 0.0
        %1815 = vmatprep.subr.mxu0 0.0
        %1816 = vmatpush1.msra.mxu0 0.0
        %1817 = vmatprep.subr.mxu0 0.0
        %1818 = vmatpush1.msra.mxu0 0.0
        %1819 = vmatprep.subr.mxu0 0.0
        %1820 = vmatpush1.msra.mxu0 0.0
        %1821 = vmatprep.mubr.f32.mxu0 0.0
        %1822 = vmatmul.mubr.f32.gmra.mrb[0].mxu0 %v1752
        %v1823 = vpop.f32.mrb[0].mxu0
        %v1824 = vadd.f32 0.0, %v1823
        %v1825 = vpop.f32.mrb[0].mxu0
        %1826 = vmatprep.mubr.f32.mxu0 0.0
        %1827 = vmatmul.mubr.f32.gmra.mrb[0].mxu0 %v1755
        %v1828 = vpop.f32.mrb[0].mxu0
        %v1829 = vadd.f32 0.0, %v1828
        %v1830 = vpop.f32.mrb[0].mxu0
        %1831 = vdwg.mxu0
        %s1832 = scalar_lea.vmem [#allocation8], 16
        %v1833 = vld [vmem:[%s1832] sm:$0xff]
        %v1835 = vsel %vm1092, %v1824, 0
        %v1838 = vsel %vm1092, %v1829, 0
        %1840 = vmatprep.subr.mxu0 0.0
        %1841 = vmatpush1.msra.mxu0 %v1833
        %1842 = vmatprep.subr.mxu0 0.0
        %1843 = vmatpush1.msra.mxu0 0.0
        %1844 = vmatprep.subr.mxu0 0.0
        %1845 = vmatpush1.msra.mxu0 0.0
        %1846 = vmatprep.subr.mxu0 0.0
        %1847 = vmatpush1.msra.mxu0 0.0
        %1848 = vmatprep.subr.mxu0 0.0
        %1849 = vmatpush1.msra.mxu0 0.0
        %1850 = vmatprep.subr.mxu0 0.0
        %1851 = vmatpush1.msra.mxu0 0.0
        %1852 = vmatprep.subr.mxu0 0.0
        %1853 = vmatpush1.msra.mxu0 0.0
        %1854 = vmatprep.subr.mxu0 0.0
        %1855 = vmatpush1.msra.mxu0 0.0
        %1856 = vmatprep.subr.mxu0 0.0
        %1857 = vmatpush1.msra.mxu0 0.0
        %1858 = vmatprep.subr.mxu0 0.0
        %1859 = vmatpush1.msra.mxu0 0.0
        %1860 = vmatprep.subr.mxu0 0.0
        %1861 = vmatpush1.msra.mxu0 0.0
        %1862 = vmatprep.subr.mxu0 0.0
        %1863 = vmatpush1.msra.mxu0 0.0
        %1864 = vmatprep.subr.mxu0 0.0
        %1865 = vmatpush1.msra.mxu0 0.0
        %1866 = vmatprep.subr.mxu0 0.0
        %1867 = vmatpush1.msra.mxu0 0.0
        %1868 = vmatprep.subr.mxu0 0.0
        %1869 = vmatpush1.msra.mxu0 0.0
        %1870 = vmatprep.subr.mxu0 0.0
        %1871 = vmatpush1.msra.mxu0 0.0
        %1872 = vmatprep.subr.mxu0 0.0
        %1873 = vmatpush1.msra.mxu0 0.0
        %1874 = vmatprep.subr.mxu0 0.0
        %1875 = vmatpush1.msra.mxu0 0.0
        %1876 = vmatprep.subr.mxu0 0.0
        %1877 = vmatpush1.msra.mxu0 0.0
        %1878 = vmatprep.subr.mxu0 0.0
        %1879 = vmatpush1.msra.mxu0 0.0
        %1880 = vmatprep.subr.mxu0 0.0
        %1881 = vmatpush1.msra.mxu0 0.0
        %1882 = vmatprep.subr.mxu0 0.0
        %1883 = vmatpush1.msra.mxu0 0.0
        %1884 = vmatprep.subr.mxu0 0.0
        %1885 = vmatpush1.msra.mxu0 0.0
        %1886 = vmatprep.subr.mxu0 0.0
        %1887 = vmatpush1.msra.mxu0 0.0
        %1888 = vmatprep.subr.mxu0 0.0
        %1889 = vmatpush1.msra.mxu0 0.0
        %1890 = vmatprep.subr.mxu0 0.0
        %1891 = vmatpush1.msra.mxu0 0.0
        %1892 = vmatprep.subr.mxu0 0.0
        %1893 = vmatpush1.msra.mxu0 0.0
        %1894 = vmatprep.subr.mxu0 0.0
        %1895 = vmatpush1.msra.mxu0 0.0
        %1896 = vmatprep.subr.mxu0 0.0
        %1897 = vmatpush1.msra.mxu0 0.0
        %1898 = vmatprep.subr.mxu0 0.0
        %1899 = vmatpush1.msra.mxu0 0.0
        %1900 = vmatprep.subr.mxu0 0.0
        %1901 = vmatpush1.msra.mxu0 0.0
        %1902 = vmatprep.subr.mxu0 0.0
        %1903 = vmatpush1.msra.mxu0 0.0
        %1904 = vmatprep.mubr.f32.mxu0 0.0
        %1905 = vmatmul.mubr.f32.gmra.mrb[0].mxu0 %v1835
        %v1906 = vpop.f32.mrb[0].mxu0
        %v1907 = vadd.f32 0.0, %v1906
        %v1908 = vpop.f32.mrb[0].mxu0
        %1909 = vmatprep.mubr.f32.mxu0 0.0
        %1910 = vmatmul.mubr.f32.gmra.mrb[0].mxu0 %v1838
        %v1911 = vpop.f32.mrb[0].mxu0
        %v1912 = vadd.f32 0.0, %v1911
        %v1913 = vpop.f32.mrb[0].mxu0
        %1914 = vdwg.mxu0
        %v1915 = vadd.f32 %v1631, %v1907
        %v1916 = vadd.f32 %v1636, %v1912
        %s1917 = scalar_lea.vmem [#allocation3], 24
        %v1918 = vld [vmem:[%s1917] sm:$0xff]
        %1919 = vrot.lane.b32.xlu0 %v1083, 104
        %v1920 = vpop.permute.xlu0 %1919
        %1921 = vrot.lane.b32.xlu0 %v1088, 104
        %v1922 = vpop.permute.xlu0 %1921
        %v1923 = vsel %vm1092, %v1920, 0
        %v1925 = vsel %vm1092, %v1922, 0
        %1927 = vmatprep.subr.mxu0 0.0
        %1928 = vmatpush1.msra.mxu0 %v1918
        %1929 = vmatprep.subr.mxu0 0.0
        %1930 = vmatpush1.msra.mxu0 0.0
        %1931 = vmatprep.subr.mxu0 0.0
        %1932 = vmatpush1.msra.mxu0 0.0
        %1933 = vmatprep.subr.mxu0 0.0
        %1934 = vmatpush1.msra.mxu0 0.0
        %1935 = vmatprep.subr.mxu0 0.0
        %1936 = vmatpush1.msra.mxu0 0.0
        %1937 = vmatprep.subr.mxu0 0.0
        %1938 = vmatpush1.msra.mxu0 0.0
        %1939 = vmatprep.subr.mxu0 0.0
        %1940 = vmatpush1.msra.mxu0 0.0
        %1941 = vmatprep.subr.mxu0 0.0
        %1942 = vmatpush1.msra.mxu0 0.0
        %1943 = vmatprep.subr.mxu0 0.0
        %1944 = vmatpush1.msra.mxu0 0.0
        %1945 = vmatprep.subr.mxu0 0.0
        %1946 = vmatpush1.msra.mxu0 0.0
        %1947 = vmatprep.subr.mxu0 0.0
        %1948 = vmatpush1.msra.mxu0 0.0
        %1949 = vmatprep.subr.mxu0 0.0
        %1950 = vmatpush1.msra.mxu0 0.0
        %1951 = vmatprep.subr.mxu0 0.0
        %1952 = vmatpush1.msra.mxu0 0.0
        %1953 = vmatprep.subr.mxu0 0.0
        %1954 = vmatpush1.msra.mxu0 0.0
        %1955 = vmatprep.subr.mxu0 0.0
        %1956 = vmatpush1.msra.mxu0 0.0
        %1957 = vmatprep.subr.mxu0 0.0
        %1958 = vmatpush1.msra.mxu0 0.0
        %1959 = vmatprep.subr.mxu0 0.0
        %1960 = vmatpush1.msra.mxu0 0.0
        %1961 = vmatprep.subr.mxu0 0.0
        %1962 = vmatpush1.msra.mxu0 0.0
        %1963 = vmatprep.subr.mxu0 0.0
        %1964 = vmatpush1.msra.mxu0 0.0
        %1965 = vmatprep.subr.mxu0 0.0
        %1966 = vmatpush1.msra.mxu0 0.0
        %1967 = vmatprep.subr.mxu0 0.0
        %1968 = vmatpush1.msra.mxu0 0.0
        %1969 = vmatprep.subr.mxu0 0.0
        %1970 = vmatpush1.msra.mxu0 0.0
        %1971 = vmatprep.subr.mxu0 0.0
        %1972 = vmatpush1.msra.mxu0 0.0
        %1973 = vmatprep.subr.mxu0 0.0
        %1974 = vmatpush1.msra.mxu0 0.0
        %1975 = vmatprep.subr.mxu0 0.0
        %1976 = vmatpush1.msra.mxu0 0.0
        %1977 = vmatprep.subr.mxu0 0.0
        %1978 = vmatpush1.msra.mxu0 0.0
        %1979 = vmatprep.subr.mxu0 0.0
        %1980 = vmatpush1.msra.mxu0 0.0
        %1981 = vmatprep.subr.mxu0 0.0
        %1982 = vmatpush1.msra.mxu0 0.0
        %1983 = vmatprep.subr.mxu0 0.0
        %1984 = vmatpush1.msra.mxu0 0.0
        %1985 = vmatprep.subr.mxu0 0.0
        %1986 = vmatpush1.msra.mxu0 0.0
        %1987 = vmatprep.subr.mxu0 0.0
        %1988 = vmatpush1.msra.mxu0 0.0
        %1989 = vmatprep.subr.mxu0 0.0
        %1990 = vmatpush1.msra.mxu0 0.0
        %1991 = vmatprep.mubr.f32.mxu0 0.0
        %1992 = vmatmul.mubr.f32.gmra.mrb[0].mxu0 %v1923
        %v1993 = vpop.f32.mrb[0].mxu0
        %v1994 = vadd.f32 0.0, %v1993
        %v1995 = vpop.f32.mrb[0].mxu0
        %1996 = vmatprep.mubr.f32.mxu0 0.0
        %1997 = vmatmul.mubr.f32.gmra.mrb[0].mxu0 %v1925
        %v1998 = vpop.f32.mrb[0].mxu0
        %v1999 = vadd.f32 0.0, %v1998
        %v2000 = vpop.f32.mrb[0].mxu0
        %2001 = vdwg.mxu0
        %v2002 = vsel %vm1009, %v1994, -inf
        %2003 = vmax.xlane.f32.xlu0 %v2002
        %v2004 = vpop.xlane.xlu0 %2003
        %v2005 = vsel %vm1009, %v1999, -inf
        %2006 = vmax.xlane.f32.xlu0 %v2005
        %v2007 = vpop.xlane.xlu0 %2006
        %v2008 = vsub.f32 %v1994, %v2004
        %v2009 = vsub.f32 %v1999, %v2007
        %v2010 = vmul.f32 %v2008, 1.442695
        %v2011 = vpow.pop %v2010
        %v2012 = vmul.f32 %v2009, 1.442695
        %v2013 = vpow.pop %v2012
        %v2014 = vsel %vm1009, %v2011, 0.0
        %2015 = vadd.xlane.f32.xlu0 %v2014
        %v2016 = vpop.xlane.xlu0 %2015
        %v2017 = vsel %vm1009, %v2013, 0.0
        %2018 = vadd.xlane.f32.xlu0 %v2017
        %v2019 = vpop.xlane.xlu0 %2018
        %v2020 = vrcp.pop %v2016
        %v2021 = vrcp.pop %v2019
        %v2022 = vmul.f32 %v2011, %v2020
        %v2023 = vmul.f32 %v2013, %v2021
        %s2024 = scalar_lea.vmem [#allocation4], 96
        %v2025 = vld [vmem:[%s2024] sm:$0xff]
        %v2026 = vld [vmem:[%s2024 + $0x8] sm:$0xff]
        %v2027 = vld [vmem:[%s2024 + $0x10] sm:$0xff]
        %v2028 = vld [vmem:[%s2024 + $0x18] sm:$0xff]
        %v2030 = vsel %vm1009, %v2022, 0
        %v2033 = vsel %vm1009, %v2023, 0
        %2035 = vmatprep.subr.mxu0 0.0
        %2036 = vmatpush1.msra.mxu0 %v2025
        %2037 = vmatprep.subr.mxu0 0.0
        %2038 = vmatpush1.msra.mxu0 %v2026
        %2039 = vmatprep.subr.mxu0 0.0
        %2040 = vmatpush1.msra.mxu0 %v2027
        %2041 = vmatprep.subr.mxu0 0.0
        %2042 = vmatpush1.msra.mxu0 %v2028
        %2043 = vmatprep.subr.mxu0 0.0
        %2044 = vmatpush1.msra.mxu0 0.0
        %2045 = vmatprep.subr.mxu0 0.0
        %2046 = vmatpush1.msra.mxu0 0.0
        %2047 = vmatprep.subr.mxu0 0.0
        %2048 = vmatpush1.msra.mxu0 0.0
        %2049 = vmatprep.subr.mxu0 0.0
        %2050 = vmatpush1.msra.mxu0 0.0
        %2051 = vmatprep.subr.mxu0 0.0
        %2052 = vmatpush1.msra.mxu0 0.0
        %2053 = vmatprep.subr.mxu0 0.0
        %2054 = vmatpush1.msra.mxu0 0.0
        %2055 = vmatprep.subr.mxu0 0.0
        %2056 = vmatpush1.msra.mxu0 0.0
        %2057 = vmatprep.subr.mxu0 0.0
        %2058 = vmatpush1.msra.mxu0 0.0
        %2059 = vmatprep.subr.mxu0 0.0
        %2060 = vmatpush1.msra.mxu0 0.0
        %2061 = vmatprep.subr.mxu0 0.0
        %2062 = vmatpush1.msra.mxu0 0.0
        %2063 = vmatprep.subr.mxu0 0.0
        %2064 = vmatpush1.msra.mxu0 0.0
        %2065 = vmatprep.subr.mxu0 0.0
        %2066 = vmatpush1.msra.mxu0 0.0
        %2067 = vmatprep.subr.mxu0 0.0
        %2068 = vmatpush1.msra.mxu0 0.0
        %2069 = vmatprep.subr.mxu0 0.0
        %2070 = vmatpush1.msra.mxu0 0.0
        %2071 = vmatprep.subr.mxu0 0.0
        %2072 = vmatpush1.msra.mxu0 0.0
        %2073 = vmatprep.subr.mxu0 0.0
        %2074 = vmatpush1.msra.mxu0 0.0
        %2075 = vmatprep.subr.mxu0 0.0
        %2076 = vmatpush1.msra.mxu0 0.0
        %2077 = vmatprep.subr.mxu0 0.0
        %2078 = vmatpush1.msra.mxu0 0.0
        %2079 = vmatprep.subr.mxu0 0.0
        %2080 = vmatpush1.msra.mxu0 0.0
        %2081 = vmatprep.subr.mxu0 0.0
        %2082 = vmatpush1.msra.mxu0 0.0
        %2083 = vmatprep.subr.mxu0 0.0
        %2084 = vmatpush1.msra.mxu0 0.0
        %2085 = vmatprep.subr.mxu0 0.0
        %2086 = vmatpush1.msra.mxu0 0.0
        %2087 = vmatprep.subr.mxu0 0.0
        %2088 = vmatpush1.msra.mxu0 0.0
        %2089 = vmatprep.subr.mxu0 0.0
        %2090 = vmatpush1.msra.mxu0 0.0
        %2091 = vmatprep.subr.mxu0 0.0
        %2092 = vmatpush1.msra.mxu0 0.0
        %2093 = vmatprep.subr.mxu0 0.0
        %2094 = vmatpush1.msra.mxu0 0.0
        %2095 = vmatprep.subr.mxu0 0.0
        %2096 = vmatpush1.msra.mxu0 0.0
        %2097 = vmatprep.subr.mxu0 0.0
        %2098 = vmatpush1.msra.mxu0 0.0
        %2099 = vmatprep.mubr.f32.mxu0 0.0
        %2100 = vmatmul.mubr.f32.gmra.mrb[0].mxu0 %v2030
        %v2101 = vpop.f32.mrb[0].mxu0
        %v2102 = vadd.f32 0.0, %v2101
        %v2103 = vpop.f32.mrb[0].mxu0
        %2104 = vmatprep.mubr.f32.mxu0 0.0
        %2105 = vmatmul.mubr.f32.gmra.mrb[0].mxu0 %v2033
        %v2106 = vpop.f32.mrb[0].mxu0
        %v2107 = vadd.f32 0.0, %v2106
        %v2108 = vpop.f32.mrb[0].mxu0
        %2109 = vdwg.mxu0
        %s2110 = scalar_lea.vmem [#allocation8], 24
        %v2111 = vld [vmem:[%s2110] sm:$0xff]
        %v2113 = vsel %vm1092, %v2102, 0
        %v2116 = vsel %vm1092, %v2107, 0
        %2118 = vmatprep.subr.mxu0 0.0
        %2119 = vmatpush1.msra.mxu0 %v2111
        %2120 = vmatprep.subr.mxu0 0.0
        %2121 = vmatpush1.msra.mxu0 0.0
        %2122 = vmatprep.subr.mxu0 0.0
        %2123 = vmatpush1.msra.mxu0 0.0
        %2124 = vmatprep.subr.mxu0 0.0
        %2125 = vmatpush1.msra.mxu0 0.0
        %2126 = vmatprep.subr.mxu0 0.0
        %2127 = vmatpush1.msra.mxu0 0.0
        %2128 = vmatprep.subr.mxu0 0.0
        %2129 = vmatpush1.msra.mxu0 0.0
        %2130 = vmatprep.subr.mxu0 0.0
        %2131 = vmatpush1.msra.mxu0 0.0
        %2132 = vmatprep.subr.mxu0 0.0
        %2133 = vmatpush1.msra.mxu0 0.0
        %2134 = vmatprep.subr.mxu0 0.0
        %2135 = vmatpush1.msra.mxu0 0.0
        %2136 = vmatprep.subr.mxu0 0.0
        %2137 = vmatpush1.msra.mxu0 0.0
        %2138 = vmatprep.subr.mxu0 0.0
        %2139 = vmatpush1.msra.mxu0 0.0
        %2140 = vmatprep.subr.mxu0 0.0
        %2141 = vmatpush1.msra.mxu0 0.0
        %2142 = vmatprep.subr.mxu0 0.0
        %2143 = vmatpush1.msra.mxu0 0.0
        %2144 = vmatprep.subr.mxu0 0.0
        %2145 = vmatpush1.msra.mxu0 0.0
        %2146 = vmatprep.subr.mxu0 0.0
        %2147 = vmatpush1.msra.mxu0 0.0
        %2148 = vmatprep.subr.mxu0 0.0
        %2149 = vmatpush1.msra.mxu0 0.0
        %2150 = vmatprep.subr.mxu0 0.0
        %2151 = vmatpush1.msra.mxu0 0.0
        %2152 = vmatprep.subr.mxu0 0.0
        %2153 = vmatpush1.msra.mxu0 0.0
        %2154 = vmatprep.subr.mxu0 0.0
        %2155 = vmatpush1.msra.mxu0 0.0
        %2156 = vmatprep.subr.mxu0 0.0
        %2157 = vmatpush1.msra.mxu0 0.0
        %2158 = vmatprep.subr.mxu0 0.0
        %2159 = vmatpush1.msra.mxu0 0.0
        %2160 = vmatprep.subr.mxu0 0.0
        %2161 = vmatpush1.msra.mxu0 0.0
        %2162 = vmatprep.subr.mxu0 0.0
        %2163 = vmatpush1.msra.mxu0 0.0
        %2164 = vmatprep.subr.mxu0 0.0
        %2165 = vmatpush1.msra.mxu0 0.0
        %2166 = vmatprep.subr.mxu0 0.0
        %2167 = vmatpush1.msra.mxu0 0.0
        %2168 = vmatprep.subr.mxu0 0.0
        %2169 = vmatpush1.msra.mxu0 0.0
        %2170 = vmatprep.subr.mxu0 0.0
        %2171 = vmatpush1.msra.mxu0 0.0
        %2172 = vmatprep.subr.mxu0 0.0
        %2173 = vmatpush1.msra.mxu0 0.0
        %2174 = vmatprep.subr.mxu0 0.0
        %2175 = vmatpush1.msra.mxu0 0.0
        %2176 = vmatprep.subr.mxu0 0.0
        %2177 = vmatpush1.msra.mxu0 0.0
        %2178 = vmatprep.subr.mxu0 0.0
        %2179 = vmatpush1.msra.mxu0 0.0
        %2180 = vmatprep.subr.mxu0 0.0
        %2181 = vmatpush1.msra.mxu0 0.0
        %2182 = vmatprep.mubr.f32.mxu0 0.0
        %2183 = vmatmul.mubr.f32.gmra.mrb[0].mxu0 %v2113
        %v2184 = vpop.f32.mrb[0].mxu0
        %v2185 = vadd.f32 0.0, %v2184
        %v2186 = vpop.f32.mrb[0].mxu0
        %2187 = vmatprep.mubr.f32.mxu0 0.0
        %2188 = vmatmul.mubr.f32.gmra.mrb[0].mxu0 %v2116
        %v2189 = vpop.f32.mrb[0].mxu0
        %v2190 = vadd.f32 0.0, %v2189
        %v2191 = vpop.f32.mrb[0].mxu0
        %2192 = vdwg.mxu0
        %v2193 = vadd.f32 %v1915, %v2185
        %v2194 = vadd.f32 %v1916, %v2190
        %v2195 = vld [vmem:[%s8] sm:$0x1]
        %v2197 = vlaneseq
        %v2198 = vshrl.u32 %v2197, 7
        %v2199 = vsub.s32 0, %v2198
        %v2200 = vrot.slane %v2195, %v2199
        %v2202 = vadd.f32 %v2193, %v2200
        %v2203 = vadd.f32 %v2194, %v2200
        %v2204 = vadd.f32 %v993, %v2202
        %v2205 = vadd.f32 %v994, %v2203
        %v2206 = vsel %vm1009, %v2204, 0.0
        %2207 = vadd.xlane.f32.xlu0 %v2206
        %v2208 = vpop.xlane.xlu0 %2207
        %v2209 = vsel %vm1009, %v2205, 0.0
        %2210 = vadd.xlane.f32.xlu0 %v2209
        %v2211 = vpop.xlane.xlu0 %2210
        %v2212 = vrcp.pop 32.0
        %v2213 = vmul.f32 %v2208, %v2212
        %v2214 = vmul.f32 %v2211, %v2212
        %v2215 = vsub.f32 %v2204, %v2213
        %v2216 = vsub.f32 %v2205, %v2214
        %v2217 = vmul.f32 %v2215, %v2215
        %v2218 = vmul.f32 %v2216, %v2216
        %v2219 = vsel %vm1009, %v2217, 0.0
        %2220 = vadd.xlane.f32.xlu0 %v2219
        %v2221 = vpop.xlane.xlu0 %2220
        %v2222 = vsel %vm1009, %v2218, 0.0
        %2223 = vadd.xlane.f32.xlu0 %v2222
        %v2224 = vpop.xlane.xlu0 %2223
        %v2225 = vmul.f32 %v2221, %v2212
        %v2226 = vmul.f32 %v2224, %v2212
        %v2227 = vadd.f32 %v2225, 1e-06
        %v2228 = vadd.f32 %v2226, 1e-06
        %v2229 = vrsqrt.pop %v2227
        %v2230 = vrsqrt.pop %v2228
        %v2231 = vmul.f32 %v2215, %v2229
        %v2232 = vmul.f32 %v2216, %v2230
        %v2233 = vld [vmem:[%s9] sm:$0x1]
        %v2235 = vlaneseq
        %v2236 = vshrl.u32 %v2235, 7
        %v2237 = vsub.s32 0, %v2236
        %v2238 = vrot.slane %v2233, %v2237
        %v2240 = vmul.f32 %v2231, %v2238
        %v2241 = vmul.f32 %v2232, %v2238
        %v2242 = vld [vmem:[%s10] sm:$0x1]
        %v2244 = vlaneseq
        %v2245 = vshrl.u32 %v2244, 7
        %v2246 = vsub.s32 0, %v2245
        %v2247 = vrot.slane %v2242, %v2246
        %v2249 = vadd.f32 %v2240, %v2247
        %v2250 = vadd.f32 %v2241, %v2247
        %v2251 = vld [vmem:[#allocation10] sm:$0xff]
        %v2252 = vld [vmem:[#allocation10 + $0x8] sm:$0xff]
        %v2253 = vld [vmem:[#allocation10 + $0x10] sm:$0xff]
        %v2254 = vld [vmem:[#allocation10 + $0x18] sm:$0xff]
        %v2255 = vld [vmem:[%s12] sm:$0x1]
        %v2257 = vlaneseq
        %v2258 = vshrl.u32 %v2257, 7
        %v2259 = vsub.s32 0, %v2258
        %v2260 = vrot.slane %v2255, %v2259
        %v2263 = vsel %vm1009, %v2249, 0
        %v2266 = vsel %vm1009, %v2250, 0
        %2268 = vmatprep.subr.mxu0 0.0
        %2269 = vmatpush1.msra.mxu0 %v2251
        %2270 = vmatprep.subr.mxu0 0.0
        %2271 = vmatpush1.msra.mxu0 %v2252
        %2272 = vmatprep.subr.mxu0 0.0
        %2273 = vmatpush1.msra.mxu0 %v2253
        %2274 = vmatprep.subr.mxu0 0.0
        %2275 = vmatpush1.msra.mxu0 %v2254
        %2276 = vmatprep.subr.mxu0 0.0
        %2277 = vmatpush1.msra.mxu0 0.0
        %2278 = vmatprep.subr.mxu0 0.0
        %2279 = vmatpush1.msra.mxu0 0.0
        %2280 = vmatprep.subr.mxu0 0.0
        %2281 = vmatpush1.msra.mxu0 0.0
        %2282 = vmatprep.subr.mxu0 0.0
        %2283 = vmatpush1.msra.mxu0 0.0
        %2284 = vmatprep.subr.mxu0 0.0
        %2285 = vmatpush1.msra.mxu0 0.0
        %2286 = vmatprep.subr.mxu0 0.0
        %2287 = vmatpush1.msra.mxu0 0.0
        %2288 = vmatprep.subr.mxu0 0.0
        %2289 = vmatpush1.msra.mxu0 0.0
        %2290 = vmatprep.subr.mxu0 0.0
        %2291 = vmatpush1.msra.mxu0 0.0
        %2292 = vmatprep.subr.mxu0 0.0
        %2293 = vmatpush1.msra.mxu0 0.0
        %2294 = vmatprep.subr.mxu0 0.0
        %2295 = vmatpush1.msra.mxu0 0.0
        %2296 = vmatprep.subr.mxu0 0.0
        %2297 = vmatpush1.msra.mxu0 0.0
        %2298 = vmatprep.subr.mxu0 0.0
        %2299 = vmatpush1.msra.mxu0 0.0
        %2300 = vmatprep.subr.mxu0 0.0
        %2301 = vmatpush1.msra.mxu0 0.0
        %2302 = vmatprep.subr.mxu0 0.0
        %2303 = vmatpush1.msra.mxu0 0.0
        %2304 = vmatprep.subr.mxu0 0.0
        %2305 = vmatpush1.msra.mxu0 0.0
        %2306 = vmatprep.subr.mxu0 0.0
        %2307 = vmatpush1.msra.mxu0 0.0
        %2308 = vmatprep.subr.mxu0 0.0
        %2309 = vmatpush1.msra.mxu0 0.0
        %2310 = vmatprep.subr.mxu0 0.0
        %2311 = vmatpush1.msra.mxu0 0.0
        %2312 = vmatprep.subr.mxu0 0.0
        %2313 = vmatpush1.msra.mxu0 0.0
        %2314 = vmatprep.subr.mxu0 0.0
        %2315 = vmatpush1.msra.mxu0 0.0
        %2316 = vmatprep.subr.mxu0 0.0
        %2317 = vmatpush1.msra.mxu0 0.0
        %2318 = vmatprep.subr.mxu0 0.0
        %2319 = vmatpush1.msra.mxu0 0.0
        %2320 = vmatprep.subr.mxu0 0.0
        %2321 = vmatpush1.msra.mxu0 0.0
        %2322 = vmatprep.subr.mxu0 0.0
        %2323 = vmatpush1.msra.mxu0 0.0
        %2324 = vmatprep.subr.mxu0 0.0
        %2325 = vmatpush1.msra.mxu0 0.0
        %2326 = vmatprep.subr.mxu0 0.0
        %2327 = vmatpush1.msra.mxu0 0.0
        %2328 = vmatprep.subr.mxu0 0.0
        %2329 = vmatpush1.msra.mxu0 0.0
        %2330 = vmatprep.subr.mxu0 0.0
        %2331 = vmatpush1.msra.mxu0 0.0
        %2332 = vmatprep.mubr.f32.mxu0 0.0
        %2333 = vmatmul.mubr.f32.gmra.mrb[0].mxu0 %v2263
        %v2334 = vpop.f32.mrb[0].mxu0
        %v2335 = vadd.f32 %v2260, %v2334
        %v2336 = vpop.f32.mrb[0].mxu0
        %2337 = vmatprep.mubr.f32.mxu0 0.0
        %2338 = vmatmul.mubr.f32.gmra.mrb[0].mxu0 %v2266
        %v2339 = vpop.f32.mrb[0].mxu0
        %v2340 = vadd.f32 %v2260, %v2339
        %v2341 = vpop.f32.mrb[0].mxu0
        %2342 = vdwg.mxu0
        %v2343 = vmul.f32 %v2335, 0.5
        %v2344 = vmul.f32 %v2340, 0.5
        %v2345 = vmul.f32 %v2335, %v2335
        %v2346 = vmul.f32 %v2340, %v2340
        %v2347 = vmul.f32 %v2345, %v2335
        %v2348 = vmul.f32 %v2346, %v2340
        %v2349 = vmul.f32 %v2347, 0.044715
        %v2350 = vmul.f32 %v2348, 0.044715
        %v2351 = vadd.f32 %v2335, %v2349
        %v2352 = vadd.f32 %v2340, %v2350
        %v2353 = vmul.f32 %v2351, 0.7978846
        %v2354 = vmul.f32 %v2352, 0.7978846
        %v2355 = vtanh.pop %v2353
        %v2356 = vtanh.pop %v2354
        %v2357 = vadd.f32 %v2355, 1.0
        %v2358 = vadd.f32 %v2356, 1.0
        %v2359 = vmul.f32 %v2343, %v2357
        %v2360 = vmul.f32 %v2344, %v2358
        %v2361 = vld [vmem:[%s13] sm:$0xff]
        %v2362 = vld [vmem:[%s13 + $0x8] sm:$0xff]
        %v2363 = vld [vmem:[%s13 + $0x10] sm:$0xff]
        %v2364 = vld [vmem:[%s13 + $0x18] sm:$0xff]
        %v2365 = vld [vmem:[%s13 + $0x20] sm:$0xff]
        %v2366 = vld [vmem:[%s13 + $0x28] sm:$0xff]
        %v2367 = vld [vmem:[%s13 + $0x30] sm:$0xff]
        %v2368 = vld [vmem:[%s13 + $0x38] sm:$0xff]
        %v2369 = vld [vmem:[%s14] sm:$0x1]
        %v2371 = vlaneseq
        %v2372 = vshrl.u32 %v2371, 7
        %v2373 = vsub.s32 0, %v2372
        %v2374 = vrot.slane %v2369, %v2373
        %vm2376 = vcmask 523264
        %v2378 = vsel %vm2376, %v2359, 0
        %v2381 = vsel %vm2376, %v2360, 0
        %2383 = vmatprep.subr.mxu0 0.0
        %2384 = vmatpush1.msra.mxu0 %v2361
        %2385 = vmatprep.subr.mxu0 0.0
        %2386 = vmatpush1.msra.mxu0 %v2362
        %2387 = vmatprep.subr.mxu0 0.0
        %2388 = vmatpush1.msra.mxu0 %v2363
        %2389 = vmatprep.subr.mxu0 0.0
        %2390 = vmatpush1.msra.mxu0 %v2364
        %2391 = vmatprep.subr.mxu0 0.0
        %2392 = vmatpush1.msra.mxu0 %v2365
        %2393 = vmatprep.subr.mxu0 0.0
        %2394 = vmatpush1.msra.mxu0 %v2366
        %2395 = vmatprep.subr.mxu0 0.0
        %2396 = vmatpush1.msra.mxu0 %v2367
        %2397 = vmatprep.subr.mxu0 0.0
        %2398 = vmatpush1.msra.mxu0 %v2368
        %2399 = vmatprep.subr.mxu0 0.0
        %2400 = vmatpush1.msra.mxu0 0.0
        %2401 = vmatprep.subr.mxu0 0.0
        %2402 = vmatpush1.msra.mxu0 0.0
        %2403 = vmatprep.subr.mxu0 0.0
        %2404 = vmatpush1.msra.mxu0 0.0
        %2405 = vmatprep.subr.mxu0 0.0
        %2406 = vmatpush1.msra.mxu0 0.0
        %2407 = vmatprep.subr.mxu0 0.0
        %2408 = vmatpush1.msra.mxu0 0.0
        %2409 = vmatprep.subr.mxu0 0.0
        %2410 = vmatpush1.msra.mxu0 0.0
        %2411 = vmatprep.subr.mxu0 0.0
        %2412 = vmatpush1.msra.mxu0 0.0
        %2413 = vmatprep.subr.mxu0 0.0
        %2414 = vmatpush1.msra.mxu0 0.0
        %2415 = vmatprep.subr.mxu0 0.0
        %2416 = vmatpush1.msra.mxu0 0.0
        %2417 = vmatprep.subr.mxu0 0.0
        %2418 = vmatpush1.msra.mxu0 0.0
        %2419 = vmatprep.subr.mxu0 0.0
        %2420 = vmatpush1.msra.mxu0 0.0
        %2421 = vmatprep.subr.mxu0 0.0
        %2422 = vmatpush1.msra.mxu0 0.0
        %2423 = vmatprep.subr.mxu0 0.0
        %2424 = vmatpush1.msra.mxu0 0.0
        %2425 = vmatprep.subr.mxu0 0.0
        %2426 = vmatpush1.msra.mxu0 0.0
        %2427 = vmatprep.subr.mxu0 0.0
        %2428 = vmatpush1.msra.mxu0 0.0
        %2429 = vmatprep.subr.mxu0 0.0
        %2430 = vmatpush1.msra.mxu0 0.0
        %2431 = vmatprep.subr.mxu0 0.0
        %2432 = vmatpush1.msra.mxu0 0.0
        %2433 = vmatprep.subr.mxu0 0.0
        %2434 = vmatpush1.msra.mxu0 0.0
        %2435 = vmatprep.subr.mxu0 0.0
        %2436 = vmatpush1.msra.mxu0 0.0
        %2437 = vmatprep.subr.mxu0 0.0
        %2438 = vmatpush1.msra.mxu0 0.0
        %2439 = vmatprep.subr.mxu0 0.0
        %2440 = vmatpush1.msra.mxu0 0.0
        %2441 = vmatprep.subr.mxu0 0.0
        %2442 = vmatpush1.msra.mxu0 0.0
        %2443 = vmatprep.subr.mxu0 0.0
        %2444 = vmatpush1.msra.mxu0 0.0
        %2445 = vmatprep.subr.mxu0 0.0
        %2446 = vmatpush1.msra.mxu0 0.0
        %2447 = vmatprep.mubr.f32.mxu0 0.0
        %2448 = vmatmul.mubr.f32.gmra.mrb[0].mxu0 %v2378
        %v2449 = vpop.f32.mrb[0].mxu0
        %v2450 = vadd.f32 %v2374, %v2449
        %v2451 = vpop.f32.mrb[0].mxu0
        %2452 = vmatprep.mubr.f32.mxu0 0.0
        %2453 = vmatmul.mubr.f32.gmra.mrb[0].mxu0 %v2381
        %v2454 = vpop.f32.mrb[0].mxu0
        %v2455 = vadd.f32 %v2374, %v2454
        %v2456 = vpop.f32.mrb[0].mxu0
        %2457 = vdwg.mxu0
        %v2458 = vadd.f32 %v2204, %v2450
        %v2459 = vadd.f32 %v2205, %v2455
        %2460 = vst.msk [vmem:[%s545] sm:$0xff] %vm1009, %v2458
        %2461 = vst.msk [vmem:[%s545 + $0x8] sm:$0xff] %vm1009, %v2459
        %s2462 = sand.u32 %s373, 1
        %s2463 = scalar_lea.sflag [#allocation7], %s2462
        %s2464 = sand.u32 %s373, 1
        %s2465 = smul.addr %s2464, 16
        %s2466 = scalar_lea.vmem [#allocation11], %s2465
        // Predicated region
        $region97: #{tpu_custom_call.1} parent=79 // pred_check
          %p2467 = pneg %p383
        $region98: #{tpu_custom_call.1} parent=79 // pred_check_branch
          %2469 = sbr.rel (%p2467) target = $region100
        $region99: #{tpu_custom_call.1} parent=79 // pred_region
          %s2470 = smul.u32 2, %s36
          %s2472 = ssub.s32 256, 256
          %2473 = vsyncadd %s2463, %s2472
          %s2474 = smul.addr %s35, 4
          %s2475 = sadd.s32 %s2470, %s2474
          %s2476 = smul.addr %s2475, 128
          %s2477 = scalar_lea.hbm %s15, %s2476
          %s2478 = sshll.u32 %s2466, 4
          %s2479 = int_to_ptr.vmem [resolvable:$true] %s2478
          %2484 = dma.vmem_to_hbm [thread:$0]  %s2479, 256, %s2477, %s2463, 128, 128, 8
        $region100: #{tpu_custom_call.1} parent=79 // pred_fallthru
          _
      $region80: #{tpu_custom_call.1} parent=5 // pred_fallthru
        _
      %p2485 = scmp.le.s32.totalorder 2, %s26
      // Predicated region
      $region101: #{tpu_custom_call.1} parent=5 // pred_check
        %p2486 = pneg %p2485
      $region102: #{tpu_custom_call.1} parent=5 // pred_check_branch
        %2488 = sbr.rel (%p2486) target = $region104
      $region103: #{tpu_custom_call.1} parent=5 // pred_region
        %s2489 = ssub.s32 %s26, 2
        // Predicated region
        $region105: #{tpu_custom_call.1} parent=103 // pred_check
          %p2490 = pneg %p389
        $region106: #{tpu_custom_call.1} parent=103 // pred_check_branch
          %2492 = sbr.rel (%p2490) target = $region108
        $region107: #{tpu_custom_call.1} parent=103 // pred_region
          %s2493 = sand.u32 %s374, 1
          %s2494 = scalar_lea.sflag [#allocation7], %s2493
          %s2495 = sand.u32 %s374, 1
          %s2496 = smul.addr %s2495, 16
          %s2497 = scalar_lea.vmem [#allocation11], %s2496
          %2498 = dma.done %s2494, 256
        $region108: #{tpu_custom_call.1} parent=103 // pred_fallthru
          _
      $region104: #{tpu_custom_call.1} parent=5 // pred_fallthru
        _
    $region6: #{tpu_custom_call.1} parent=1 // loop_footer
      %s30 = sadd.s32 1, %s26
    $region7: #{tpu_custom_call.1} parent=1 // loop_footer_branch
      %25 = sbr.rel target = $region3
    $region8: #{tpu_custom_call.1} parent=1 // loop_exit
      _
    %2499 = vsyncpa [#allocation6], 1
    %s2500 = scalar_lea.sflag [#allocation6], 1
    %2501 = vsyncpa %s2500, 1
    %2502 = vsyncpa [#allocation9], 1
    %2503 = vsyncpa [#allocation7], 1
    %s2504 = scalar_lea.sflag [#allocation7], 1
    %2505 = vsyncpa %s2504, 1

</llo_original>
